<compile_context>
chip_gen: v7x
topology: tpu7x:2x2x1
jax: 0.10.0
libtpu: 0.0.40
codegen_flags: <defaults>
</compile_context>

<pallas_src>
import functools

import numpy as np

import jax
import jax.numpy as jnp
from jax.experimental import pallas as pl
from jax.experimental.pallas import tpu as pltpu

BN_EPS = 1e-5
_MARGIN = 128   # lane margin so every 3x3 tap is a plain static offset load


# ----------------------------------------------------------------------------
# Fused kernel
# ----------------------------------------------------------------------------
def _mynet_fused_kernel(x_ref, vmask_ref, w3_ref, b3_ref, g3_ref, be3_ref,
                        w1_ref, b1_ref, g1_ref, be1_ref,
                        out_ref, xbuf_ref, xcat_ref, *, n, h, w):
    """Whole-network forward; activation stays resident in VMEM.

    x_ref    : (CP, 2*_MARGIN + SP)  bf16  input already in padded layout
    vmask_ref: (1, SP)               f32   1.0 at real-pixel positions, else 0
    w3_ref   : (L, CP, 9*CP)         bf16  3x3 conv weights, taps stacked on K
    b3_ref   : (L, CP, 1)            f32   conv biases
    g3_ref   : (L, CP, 1)            f32   BN gamma
    be3_ref  : (L, CP, 1)            f32   BN beta
    w1_ref   : (CP, CP)              bf16  1x1 conv weight (cout, cin)
    b1_ref / g1_ref / be1_ref : (CP, 1) f32
    out_ref  : (CP, SP)              f32
    xbuf_ref : (CP, 2*_MARGIN + SP)  bf16  resident activation (padded layout)
    xcat_ref : (9*CP, SP)            bf16  persistent im2col operand
    """
    cp, sp = out_ref.shape
    n_layers = w3_ref.shape[0]
    wp = w + 2
    inv_count = 1.0 / float(n * h * w)   # BN stats over real pixels only

    vmask = vmask_ref[...]               # (1, SP)

    # Input arrives pre-padded and pre-zeroed from the wrapper: a single
    # aligned lane-dense bulk copy primes the resident activation buffer
    # (replaces the old N*H masked 16-lane stores + full-buffer memset).
    xbuf_ref[...] = x_ref[...]

    def build_taps():
        """Fill the persistent (9*CP, SP) bf16 im2col scratch.

        Tap (ky, kx) is the activation shifted by (ky-1)*(W+2)+(kx-1) lanes;
        each tap is one sublane-aligned, lane-dense bf16 store (no concat,
        no per-tap dtype cast).
        """
        t = 0
        for ky in range(3):
            for kx in range(3):
                start = _MARGIN + (ky - 1) * wp + (kx - 1)
                xcat_ref[t * cp:(t + 1) * cp, :] = xbuf_ref[:, start:start + sp]
                t += 1

    def batchnorm(y, gamma, beta):
        """Training-mode BN; masked single-pass stats; folded scale/shift.

        The mask is applied once (ym) and reused for s1, s2 and the output.
        """
        ym = y * vmask
        s1 = jnp.sum(ym, axis=1, keepdims=True)
        s2 = jnp.sum(ym * y, axis=1, keepdims=True)
        mean = s1 * inv_count
        var = jnp.maximum(s2 * inv_count - mean * mean, 0.0)
        scale = gamma * jax.lax.rsqrt(var + BN_EPS)   # gamma folded into scale
        shift = beta - mean * scale                   # beta/mean folded in
        # TODO(synk): use a two-pass / mean-centered variance once the spatial
        # axis is tiled (single-pass E[x^2]-E[x]^2 can cancel at larger scale).
        return ym * scale + shift * vmask             # padding lanes stay 0

    # --- nConv x [conv3x3 -> ReLU -> BN], activation resident in VMEM -------
    # TODO(synk): for larger nConv, move layers onto a grid axis (weights via
    # BlockSpec index_map, xbuf persisting across iterations) or lax.fori_loop
    # to bound vreg live ranges; at nConv=2 the full unroll is preferable.
    for l in range(n_layers):
        build_taps()
        y = jnp.dot(w3_ref[l], xcat_ref[...],
                    preferred_element_type=jnp.float32)        # (CP, SP) f32
        y = jnp.maximum(y + b3_ref[l], 0.0)                    # bias + ReLU
        # Single f32->bf16 cast on write-back; next layer's taps load bf16.
        xbuf_ref[:, _MARGIN:_MARGIN + sp] = batchnorm(
            y, g3_ref[l], be3_ref[l]).astype(jnp.bfloat16)

    # --- conv1x1 -> BN (no ReLU, matches conv3/bn3) --------------------------
    xa = xbuf_ref[:, _MARGIN:_MARGIN + sp]                     # aligned bf16
    y = jnp.dot(w1_ref[...], xa, preferred_element_type=jnp.float32)
    y = y + b1_ref[...]
    out_ref[...] = batchnorm(y, g1_ref[...], be1_ref[...])


# ----------------------------------------------------------------------------
# Wrapper
# ----------------------------------------------------------------------------
_VMEM_SPEC = pl.BlockSpec(memory_space=pltpu.MemorySpace.VMEM)


def mynet_forward(params, x_nchw, *, n_channel):
    """Full MyNet forward. Input/output in NCHW to mirror PyTorch."""
    N, Cin, H, W = x_nchw.shape
    CP = params["w3x3"].shape[1]
    Hp, Wp = H + 2, W + 2
    S = N * Hp * Wp
    Spad = -(-S // 128) * 128                    # lane-dense spatial extent
    XW = 2 * _MARGIN + Spad

    # One-time boundary layout plumbing (pure XLA, outside the kernel):
    # channel-major + channel pad, per-image zero borders, flatten, margin
    # pad, cast to bf16.  The kernel then only does one bulk copy.
    x_cm = jnp.transpose(x_nchw, (1, 0, 2, 3))                 # (Cin, N, H, W)
    x_cm = jnp.pad(x_cm, ((0, CP - Cin), (0, 0), (0, 0), (0, 0)))
    x_pad = jnp.pad(x_cm, ((0, 0), (0, 0), (1, 1), (1, 1))).reshape(CP, S)
    x_pad = jnp.pad(x_pad, ((0, 0), (_MARGIN, XW - _MARGIN - S)))
    x_pad = x_pad.astype(jnp.bfloat16)                         # (CP, XW)

    # Static 0/1 mask of real-pixel positions in the flattened padded layout.
    m = np.zeros((N, Hp, Wp), np.float32)
    m[:, 1:H + 1, 1:W + 1] = 1.0
    vmask = jnp.asarray(np.pad(m.reshape(1, S), ((0, 0), (0, Spad - S))))

    kernel = functools.partial(_mynet_fused_kernel, n=N, h=H, w=W)
    out_flat = pl.pallas_call(
        kernel,
        out_shape=jax.ShapeDtypeStruct((CP, Spad), jnp.float32),
        in_specs=[_VMEM_SPEC] * 10,
        out_specs=_VMEM_SPEC,
        scratch_shapes=[
            pltpu.VMEM((CP, XW), jnp.bfloat16),        # resident activation
            pltpu.VMEM((9 * CP, Spad), jnp.bfloat16),  # persistent im2col
        ],
    )(x_pad, vmask,
      params["w3x3"].astype(jnp.bfloat16), params["b3x3"],
      params["g3x3"], params["beta3x3"],
      params["w1x1"].astype(jnp.bfloat16), params["b1x1"],
      params["g1x1"], params["beta1x1"])

    out = out_flat[:, :S].reshape(CP, N, Hp, Wp)[:, :, 1:H + 1, 1:W + 1]
    return jnp.transpose(out, (1, 0, 2, 3))[:, :n_channel]


# ----------------------------------------------------------------------------
# Parameters (synthetic init mirroring PyTorch Conv2d/BatchNorm2d defaults)
# ----------------------------------------------------------------------------
def init_params(key, input_dim, n_channel, n_conv):
    cp = -(-max(input_dim, n_channel) // 8) * 8   # channel pad (sublane axis)

    def conv_init(k, cin, cout, ksize):
        kw_, kb_ = jax.random.split(k)
        bound = 1.0 / float(np.sqrt(cin * ksize * ksize))
        wgt = jax.random.uniform(kw_, (cout, cin, ksize, ksize), jnp.float32,
                                 -bound, bound)
        b = jax.random.uniform(kb_, (cout,), jnp.float32, -bound, bound)
        return wgt, b

    keys = jax.random.split(key, n_conv + 1)

    w3_l, b3_l, g3_l, be3_l = [], [], [], []
    for l in range(n_conv):
        cin = input_dim if l == 0 else n_channel
        wgt, b = conv_init(keys[l], cin, n_channel, 3)
        wgt = jnp.pad(wgt, ((0, cp - n_channel), (0, cp - cin), (0, 0), (0, 0)))
        # (cout, cin, ky, kx) -> (cout, ky, kx, cin) -> (cout, 9*cin): tap-major K.
        w3_l.append(jnp.transpose(wgt, (0, 2, 3, 1)).reshape(cp, 9 * cp))
        b3_l.append(jnp.pad(b, (0, cp - n_channel)).reshape(cp, 1))
        g3_l.append(jnp.pad(jnp.ones((n_channel,), jnp.float32),
                            (0, cp - n_channel)).reshape(cp, 1))
        be3_l.append(jnp.zeros((cp, 1), jnp.float32))

    w1, b1 = conv_init(keys[n_conv], n_channel, n_channel, 1)
    w1 = jnp.pad(w1[:, :, 0, 0], ((0, cp - n_channel), (0, cp - n_channel)))

    return {
        "w3x3": jnp.stack(w3_l), "b3x3": jnp.stack(b3_l),
        "g3x3": jnp.stack(g3_l), "beta3x3": jnp.stack(be3_l),
        "w1x1": w1,
        "b1x1": jnp.pad(b1, (0, cp - n_channel)).reshape(cp, 1),
        "g1x1": jnp.pad(jnp.ones((n_channel,), jnp.float32),
                        (0, cp - n_channel)).reshape(cp, 1),
        "beta1x1": jnp.zeros((cp, 1), jnp.float32),
    }


# ----------------------------------------------------------------------------
# Pure-JAX reference (same bf16-input / f32-accumulate matmul precision)
# ----------------------------------------------------------------------------
def _ref_forward(params, x_nchw, n_channel):
    w3 = params["w3x3"]
    L, CP = w3.shape[0], w3.shape[1]
    N, Cin, H, W = x_nchw.shape

    x = jnp.transpose(x_nchw, (0, 2, 3, 1))                       # NHWC
    x = jnp.pad(x, ((0, 0), (0, 0), (0, 0), (0, CP - Cin)))

    def conv3x3(x, w_big, b):
        # (cout, 9*cin) tap-major -> HWIO
        w_hwio = jnp.transpose(w_big.reshape(CP, 3, 3, CP), (1, 2, 3, 0))
        y = jax.lax.conv_general_dilated(
            x.astype(jnp.bfloat16), w_hwio.astype(jnp.bfloat16),
            window_strides=(1, 1), padding=((1, 1), (1, 1)),
            dimension_numbers=("NHWC", "HWIO", "NHWC"),
            preferred_element_type=jnp.float32)
        return y + b.reshape(1, 1, 1, CP)

    def bn(y, g, beta):
        mean = jnp.mean(y, axis=(0, 1, 2), keepdims=True)
        var = jnp.mean((y - mean) ** 2, axis=(0, 1, 2), keepdims=True)
        yn = (y - mean) * jax.lax.rsqrt(var + BN_EPS)
        return yn * g.reshape(1, 1, 1, CP) + beta.reshape(1, 1, 1, CP)

    for l in range(L):
        y = jnp.maximum(conv3x3(x, w3[l], params["b3x3"][l]), 0.0)
        x = bn(y, params["g3x3"][l], params["beta3x3"][l])

    y = jnp.einsum("nhwc,oc->nhwo", x.astype(jnp.bfloat16),
                   params["w1x1"].astype(jnp.bfloat16),
                   preferred_element_type=jnp.float32)
    y = y + params["b1x1"].reshape(1, 1, 1, CP)
    x = bn(y, params["g1x1"], params["beta1x1"])
    return jnp.transpose(x, (0, 3, 1, 2))[:, :n_channel]


# ----------------------------------------------------------------------------
if __name__ == "__main__":
    # Small, module-consistent shapes (args.nChannel, args.nConv picked here).
    N, INPUT_DIM, H, W = 2, 4, 16, 16
    N_CHANNEL, N_CONV = 32, 2

    key = jax.random.PRNGKey(0)
    k_x, k_p = jax.random.split(key)
    x = jax.random.normal(k_x, (N, INPUT_DIM, H, W), jnp.float32)   # NCHW
    params = init_params(k_p, INPUT_DIM, N_CHANNEL, N_CONV)

    fwd = jax.jit(functools.partial(mynet_forward, n_channel=N_CHANNEL))
    out = jax.block_until_ready(fwd(params, x))
    assert out.shape == (N, N_CHANNEL, H, W), out.shape

    ref = _ref_forward(params, x, N_CHANNEL)
    err = float(jnp.max(jnp.abs(out - ref)))
    assert jnp.allclose(out, ref, rtol=1e-2, atol=1e-2), err

    print("KERNEL_OK")
</pallas_src>

<mosaic_0001>
module attributes {stable_mosaic.version = 11 : i64} {
  func.func @_mynet_fused_kernel(%arg0: memref<32x1024xbf16, #tpu.memory_space<vmem>>, %arg1: memref<1x768xf32, #tpu.memory_space<vmem>>, %arg2: memref<2x32x288xbf16, #tpu.memory_space<vmem>>, %arg3: memref<2x32x1xf32, #tpu.memory_space<vmem>>, %arg4: memref<2x32x1xf32, #tpu.memory_space<vmem>>, %arg5: memref<2x32x1xf32, #tpu.memory_space<vmem>>, %arg6: memref<32x32xbf16, #tpu.memory_space<vmem>>, %arg7: memref<32x1xf32, #tpu.memory_space<vmem>>, %arg8: memref<32x1xf32, #tpu.memory_space<vmem>>, %arg9: memref<32x1xf32, #tpu.memory_space<vmem>>, %arg10: memref<32x768xf32, #tpu.memory_space<vmem>>, %arg11: memref<32x1024xbf16, #tpu.memory_space<vmem>>, %arg12: memref<288x768xbf16, #tpu.memory_space<vmem>>) attributes {dimension_semantics = [], scalar_prefetch = 0 : i64, scratch_operands = 2 : i64, tpu.core_type = #tpu.core_type<tc>} {
    %c0 = arith.constant 0 : index
    %c0_0 = arith.constant 0 : index
    %0 = vector.load %arg1[%c0, %c0_0] : memref<1x768xf32, #tpu.memory_space<vmem>>, vector<1x768xf32>
    %c0_1 = arith.constant 0 : index
    %c0_2 = arith.constant 0 : index
    %1 = vector.load %arg0[%c0_1, %c0_2] : memref<32x1024xbf16, #tpu.memory_space<vmem>>, vector<32x1024xbf16>
    %c0_3 = arith.constant 0 : index
    %c0_4 = arith.constant 0 : index
    %2 = vector.load %arg11[%c0_3, %c0_4] : memref<32x1024xbf16, #tpu.memory_space<vmem>>, vector<32x1024xbf16>
    tpu.vector_store %arg11[%c0_3, %c0_4], %1 {strides = array<i32>} : memref<32x1024xbf16, #tpu.memory_space<vmem>>, vector<32x1024xbf16>,
    %c0_5 = arith.constant 0 : index
    %c109 = arith.constant 109 : index
    %3 = vector.load %arg11[%c0_5, %c109] : memref<32x1024xbf16, #tpu.memory_space<vmem>>, vector<32x768xbf16>
    %c0_6 = arith.constant 0 : index
    %c0_7 = arith.constant 0 : index
    %4 = vector.load %arg12[%c0_6, %c0_7] : memref<288x768xbf16, #tpu.memory_space<vmem>>, vector<32x768xbf16>
    tpu.vector_store %arg12[%c0_6, %c0_7], %3 {strides = array<i32>} : memref<288x768xbf16, #tpu.memory_space<vmem>>, vector<32x768xbf16>,
    %c0_8 = arith.constant 0 : index
    %c110 = arith.constant 110 : index
    %5 = vector.load %arg11[%c0_8, %c110] : memref<32x1024xbf16, #tpu.memory_space<vmem>>, vector<32x768xbf16>
    %c32 = arith.constant 32 : index
    %c0_9 = arith.constant 0 : index
    %6 = vector.load %arg12[%c32, %c0_9] : memref<288x768xbf16, #tpu.memory_space<vmem>>, vector<32x768xbf16>
    tpu.vector_store %arg12[%c32, %c0_9], %5 {strides = array<i32>} : memref<288x768xbf16, #tpu.memory_space<vmem>>, vector<32x768xbf16>,
    %c0_10 = arith.constant 0 : index
    %c111 = arith.constant 111 : index
    %7 = vector.load %arg11[%c0_10, %c111] : memref<32x1024xbf16, #tpu.memory_space<vmem>>, vector<32x768xbf16>
    %c64 = arith.constant 64 : index
    %c0_11 = arith.constant 0 : index
    %8 = vector.load %arg12[%c64, %c0_11] : memref<288x768xbf16, #tpu.memory_space<vmem>>, vector<32x768xbf16>
    tpu.vector_store %arg12[%c64, %c0_11], %7 {strides = array<i32>} : memref<288x768xbf16, #tpu.memory_space<vmem>>, vector<32x768xbf16>,
    %c0_12 = arith.constant 0 : index
    %c127 = arith.constant 127 : index
    %9 = vector.load %arg11[%c0_12, %c127] : memref<32x1024xbf16, #tpu.memory_space<vmem>>, vector<32x768xbf16>
    %c96 = arith.constant 96 : index
    %c0_13 = arith.constant 0 : index
    %10 = vector.load %arg12[%c96, %c0_13] : memref<288x768xbf16, #tpu.memory_space<vmem>>, vector<32x768xbf16>
    tpu.vector_store %arg12[%c96, %c0_13], %9 {strides = array<i32>} : memref<288x768xbf16, #tpu.memory_space<vmem>>, vector<32x768xbf16>,
    %c0_14 = arith.constant 0 : index
    %c128 = arith.constant 128 : index
    %11 = vector.load %arg11[%c0_14, %c128] : memref<32x1024xbf16, #tpu.memory_space<vmem>>, vector<32x768xbf16>
    %c128_15 = arith.constant 128 : index
    %c0_16 = arith.constant 0 : index
    %12 = vector.load %arg12[%c128_15, %c0_16] : memref<288x768xbf16, #tpu.memory_space<vmem>>, vector<32x768xbf16>
    tpu.vector_store %arg12[%c128_15, %c0_16], %11 {strides = array<i32>} : memref<288x768xbf16, #tpu.memory_space<vmem>>, vector<32x768xbf16>,
    %c0_17 = arith.constant 0 : index
    %c129 = arith.constant 129 : index
    %13 = vector.load %arg11[%c0_17, %c129] : memref<32x1024xbf16, #tpu.memory_space<vmem>>, vector<32x768xbf16>
    %c160 = arith.constant 160 : index
    %c0_18 = arith.constant 0 : index
    %14 = vector.load %arg12[%c160, %c0_18] : memref<288x768xbf16, #tpu.memory_space<vmem>>, vector<32x768xbf16>
    tpu.vector_store %arg12[%c160, %c0_18], %13 {strides = array<i32>} : memref<288x768xbf16, #tpu.memory_space<vmem>>, vector<32x768xbf16>,
    %c0_19 = arith.constant 0 : index
    %c145 = arith.constant 145 : index
    %15 = vector.load %arg11[%c0_19, %c145] : memref<32x1024xbf16, #tpu.memory_space<vmem>>, vector<32x768xbf16>
    %c192 = arith.constant 192 : index
    %c0_20 = arith.constant 0 : index
    %16 = vector.load %arg12[%c192, %c0_20] : memref<288x768xbf16, #tpu.memory_space<vmem>>, vector<32x768xbf16>
    tpu.vector_store %arg12[%c192, %c0_20], %15 {strides = array<i32>} : memref<288x768xbf16, #tpu.memory_space<vmem>>, vector<32x768xbf16>,
    %c0_21 = arith.constant 0 : index
    %c146 = arith.constant 146 : index
    %17 = vector.load %arg11[%c0_21, %c146] : memref<32x1024xbf16, #tpu.memory_space<vmem>>, vector<32x768xbf16>
    %c224 = arith.constant 224 : index
    %c0_22 = arith.constant 0 : index
    %18 = vector.load %arg12[%c224, %c0_22] : memref<288x768xbf16, #tpu.memory_space<vmem>>, vector<32x768xbf16>
    tpu.vector_store %arg12[%c224, %c0_22], %17 {strides = array<i32>} : memref<288x768xbf16, #tpu.memory_space<vmem>>, vector<32x768xbf16>,
    %c0_23 = arith.constant 0 : index
    %c147 = arith.constant 147 : index
    %19 = vector.load %arg11[%c0_23, %c147] : memref<32x1024xbf16, #tpu.memory_space<vmem>>, vector<32x768xbf16>
    %c256 = arith.constant 256 : index
    %c0_24 = arith.constant 0 : index
    %20 = vector.load %arg12[%c256, %c0_24] : memref<288x768xbf16, #tpu.memory_space<vmem>>, vector<32x768xbf16>
    tpu.vector_store %arg12[%c256, %c0_24], %19 {strides = array<i32>} : memref<288x768xbf16, #tpu.memory_space<vmem>>, vector<32x768xbf16>,
    %c0_25 = arith.constant 0 : index
    %c0_26 = arith.constant 0 : index
    %c0_27 = arith.constant 0 : index
    %21 = vector.load %arg2[%c0_25, %c0_26, %c0_27] : memref<2x32x288xbf16, #tpu.memory_space<vmem>>, vector<1x32x288xbf16>
    %22 = vector.shape_cast %21 : vector<1x32x288xbf16> to vector<32x288xbf16>
    %c0_28 = arith.constant 0 : index
    %c0_29 = arith.constant 0 : index
    %23 = vector.load %arg12[%c0_28, %c0_29] : memref<288x768xbf16, #tpu.memory_space<vmem>>, vector<288x768xbf16>
    %cst = arith.constant dense<0.000000e+00> : vector<32x768xf32>
    %24 = tpu.matmul %22, %23, %cst {dimension_numbers = #tpu.dot_dimension_numbers<[1], [0], [0], [1], [0, 0, 1, 1], [], []>} : vector<32x288xbf16>, vector<288x768xbf16>, vector<32x768xf32> -> vector<32x768xf32>
    %c0_30 = arith.constant 0 : index
    %c0_31 = arith.constant 0 : index
    %c0_32 = arith.constant 0 : index
    %25 = vector.load %arg3[%c0_30, %c0_31, %c0_32] : memref<2x32x1xf32, #tpu.memory_space<vmem>>, vector<1x32x1xf32>
    %26 = vector.shape_cast %25 : vector<1x32x1xf32> to vector<32x1xf32>
    %27 = vector.broadcast %26 : vector<32x1xf32> to vector<32x768xf32>
    %28 = arith.addf %24, %27 : vector<32x768xf32>
    %cst_33 = arith.constant 0.000000e+00 : f32
    %29 = vector.broadcast %cst_33 : f32 to vector<32x768xf32>
    %30 = arith.maximumf %28, %29 : vector<32x768xf32>
    %c0_34 = arith.constant 0 : index
    %c0_35 = arith.constant 0 : index
    %c0_36 = arith.constant 0 : index
    %31 = vector.load %arg4[%c0_34, %c0_35, %c0_36] : memref<2x32x1xf32, #tpu.memory_space<vmem>>, vector<1x32x1xf32>
    %32 = vector.shape_cast %31 : vector<1x32x1xf32> to vector<32x1xf32>
    %c0_37 = arith.constant 0 : index
    %c0_38 = arith.constant 0 : index
    %c0_39 = arith.constant 0 : index
    %33 = vector.load %arg5[%c0_37, %c0_38, %c0_39] : memref<2x32x1xf32, #tpu.memory_space<vmem>>, vector<1x32x1xf32>
    %34 = vector.shape_cast %33 : vector<1x32x1xf32> to vector<32x1xf32>
    %35 = vector.broadcast %0 : vector<1x768xf32> to vector<32x768xf32>
    %36 = arith.mulf %30, %35 : vector<32x768xf32>
    %cst_40 = arith.constant dense<0.000000e+00> : vector<32xf32>
    %37 = vector.multi_reduction <add>, %36, %cst_40 [1] : vector<32x768xf32> to vector<32xf32>
    %38 = vector.shape_cast %37 : vector<32xf32> to vector<32x1xf32>
    %39 = arith.mulf %36, %30 : vector<32x768xf32>
    %cst_41 = arith.constant dense<0.000000e+00> : vector<32xf32>
    %40 = vector.multi_reduction <add>, %39, %cst_41 [1] : vector<32x768xf32> to vector<32xf32>
    %41 = vector.shape_cast %40 : vector<32xf32> to vector<32x1xf32>
    %cst_42 = arith.constant 0.001953125 : f32
    %42 = vector.broadcast %cst_42 : f32 to vector<32x1xf32>
    %43 = arith.mulf %38, %42 : vector<32x1xf32>
    %cst_43 = arith.constant 0.001953125 : f32
    %44 = vector.broadcast %cst_43 : f32 to vector<32x1xf32>
    %45 = arith.mulf %41, %44 : vector<32x1xf32>
    %46 = arith.mulf %43, %43 : vector<32x1xf32>
    %47 = arith.subf %45, %46 : vector<32x1xf32>
    %cst_44 = arith.constant 0.000000e+00 : f32
    %48 = vector.broadcast %cst_44 : f32 to vector<32x1xf32>
    %49 = arith.maximumf %47, %48 : vector<32x1xf32>
    %cst_45 = arith.constant 9.99999974E-6 : f32
    %50 = vector.broadcast %cst_45 : f32 to vector<32x1xf32>
    %51 = arith.addf %49, %50 : vector<32x1xf32>
    %52 = math.rsqrt %51 : vector<32x1xf32>
    %53 = arith.mulf %32, %52 : vector<32x1xf32>
    %54 = arith.mulf %43, %53 : vector<32x1xf32>
    %55 = arith.subf %34, %54 : vector<32x1xf32>
    %56 = vector.broadcast %53 : vector<32x1xf32> to vector<32x768xf32>
    %57 = arith.mulf %36, %56 : vector<32x768xf32>
    %58 = vector.broadcast %55 : vector<32x1xf32> to vector<32x768xf32>
    %59 = vector.broadcast %0 : vector<1x768xf32> to vector<32x768xf32>
    %60 = arith.mulf %58, %59 : vector<32x768xf32>
    %61 = arith.addf %57, %60 : vector<32x768xf32>
    %62 = arith.truncf %61 : vector<32x768xf32> to vector<32x768xbf16>
    %c0_46 = arith.constant 0 : index
    %c128_47 = arith.constant 128 : index
    %63 = vector.load %arg11[%c0_46, %c128_47] : memref<32x1024xbf16, #tpu.memory_space<vmem>>, vector<32x768xbf16>
    tpu.vector_store %arg11[%c0_46, %c128_47], %62 {strides = array<i32>} : memref<32x1024xbf16, #tpu.memory_space<vmem>>, vector<32x768xbf16>,
    %c0_48 = arith.constant 0 : index
    %c109_49 = arith.constant 109 : index
    %64 = vector.load %arg11[%c0_48, %c109_49] : memref<32x1024xbf16, #tpu.memory_space<vmem>>, vector<32x768xbf16>
    %c0_50 = arith.constant 0 : index
    %c0_51 = arith.constant 0 : index
    %65 = vector.load %arg12[%c0_50, %c0_51] : memref<288x768xbf16, #tpu.memory_space<vmem>>, vector<32x768xbf16>
    tpu.vector_store %arg12[%c0_50, %c0_51], %64 {strides = array<i32>} : memref<288x768xbf16, #tpu.memory_space<vmem>>, vector<32x768xbf16>,
    %c0_52 = arith.constant 0 : index
    %c110_53 = arith.constant 110 : index
    %66 = vector.load %arg11[%c0_52, %c110_53] : memref<32x1024xbf16, #tpu.memory_space<vmem>>, vector<32x768xbf16>
    %c32_54 = arith.constant 32 : index
    %c0_55 = arith.constant 0 : index
    %67 = vector.load %arg12[%c32_54, %c0_55] : memref<288x768xbf16, #tpu.memory_space<vmem>>, vector<32x768xbf16>
    tpu.vector_store %arg12[%c32_54, %c0_55], %66 {strides = array<i32>} : memref<288x768xbf16, #tpu.memory_space<vmem>>, vector<32x768xbf16>,
    %c0_56 = arith.constant 0 : index
    %c111_57 = arith.constant 111 : index
    %68 = vector.load %arg11[%c0_56, %c111_57] : memref<32x1024xbf16, #tpu.memory_space<vmem>>, vector<32x768xbf16>
    %c64_58 = arith.constant 64 : index
    %c0_59 = arith.constant 0 : index
    %69 = vector.load %arg12[%c64_58, %c0_59] : memref<288x768xbf16, #tpu.memory_space<vmem>>, vector<32x768xbf16>
    tpu.vector_store %arg12[%c64_58, %c0_59], %68 {strides = array<i32>} : memref<288x768xbf16, #tpu.memory_space<vmem>>, vector<32x768xbf16>,
    %c0_60 = arith.constant 0 : index
    %c127_61 = arith.constant 127 : index
    %70 = vector.load %arg11[%c0_60, %c127_61] : memref<32x1024xbf16, #tpu.memory_space<vmem>>, vector<32x768xbf16>
    %c96_62 = arith.constant 96 : index
    %c0_63 = arith.constant 0 : index
    %71 = vector.load %arg12[%c96_62, %c0_63] : memref<288x768xbf16, #tpu.memory_space<vmem>>, vector<32x768xbf16>
    tpu.vector_store %arg12[%c96_62, %c0_63], %70 {strides = array<i32>} : memref<288x768xbf16, #tpu.memory_space<vmem>>, vector<32x768xbf16>,
    %c0_64 = arith.constant 0 : index
    %c128_65 = arith.constant 128 : index
    %72 = vector.load %arg11[%c0_64, %c128_65] : memref<32x1024xbf16, #tpu.memory_space<vmem>>, vector<32x768xbf16>
    %c128_66 = arith.constant 128 : index
    %c0_67 = arith.constant 0 : index
    %73 = vector.load %arg12[%c128_66, %c0_67] : memref<288x768xbf16, #tpu.memory_space<vmem>>, vector<32x768xbf16>
    tpu.vector_store %arg12[%c128_66, %c0_67], %72 {strides = array<i32>} : memref<288x768xbf16, #tpu.memory_space<vmem>>, vector<32x768xbf16>,
    %c0_68 = arith.constant 0 : index
    %c129_69 = arith.constant 129 : index
    %74 = vector.load %arg11[%c0_68, %c129_69] : memref<32x1024xbf16, #tpu.memory_space<vmem>>, vector<32x768xbf16>
    %c160_70 = arith.constant 160 : index
    %c0_71 = arith.constant 0 : index
    %75 = vector.load %arg12[%c160_70, %c0_71] : memref<288x768xbf16, #tpu.memory_space<vmem>>, vector<32x768xbf16>
    tpu.vector_store %arg12[%c160_70, %c0_71], %74 {strides = array<i32>} : memref<288x768xbf16, #tpu.memory_space<vmem>>, vector<32x768xbf16>,
    %c0_72 = arith.constant 0 : index
    %c145_73 = arith.constant 145 : index
    %76 = vector.load %arg11[%c0_72, %c145_73] : memref<32x1024xbf16, #tpu.memory_space<vmem>>, vector<32x768xbf16>
    %c192_74 = arith.constant 192 : index
    %c0_75 = arith.constant 0 : index
    %77 = vector.load %arg12[%c192_74, %c0_75] : memref<288x768xbf16, #tpu.memory_space<vmem>>, vector<32x768xbf16>
    tpu.vector_store %arg12[%c192_74, %c0_75], %76 {strides = array<i32>} : memref<288x768xbf16, #tpu.memory_space<vmem>>, vector<32x768xbf16>,
    %c0_76 = arith.constant 0 : index
    %c146_77 = arith.constant 146 : index
    %78 = vector.load %arg11[%c0_76, %c146_77] : memref<32x1024xbf16, #tpu.memory_space<vmem>>, vector<32x768xbf16>
    %c224_78 = arith.constant 224 : index
    %c0_79 = arith.constant 0 : index
    %79 = vector.load %arg12[%c224_78, %c0_79] : memref<288x768xbf16, #tpu.memory_space<vmem>>, vector<32x768xbf16>
    tpu.vector_store %arg12[%c224_78, %c0_79], %78 {strides = array<i32>} : memref<288x768xbf16, #tpu.memory_space<vmem>>, vector<32x768xbf16>,
    %c0_80 = arith.constant 0 : index
    %c147_81 = arith.constant 147 : index
    %80 = vector.load %arg11[%c0_80, %c147_81] : memref<32x1024xbf16, #tpu.memory_space<vmem>>, vector<32x768xbf16>
    %c256_82 = arith.constant 256 : index
    %c0_83 = arith.constant 0 : index
    %81 = vector.load %arg12[%c256_82, %c0_83] : memref<288x768xbf16, #tpu.memory_space<vmem>>, vector<32x768xbf16>
    tpu.vector_store %arg12[%c256_82, %c0_83], %80 {strides = array<i32>} : memref<288x768xbf16, #tpu.memory_space<vmem>>, vector<32x768xbf16>,
    %c1 = arith.constant 1 : index
    %c0_84 = arith.constant 0 : index
    %c0_85 = arith.constant 0 : index
    %82 = vector.load %arg2[%c1, %c0_84, %c0_85] : memref<2x32x288xbf16, #tpu.memory_space<vmem>>, vector<1x32x288xbf16>
    %83 = vector.shape_cast %82 : vector<1x32x288xbf16> to vector<32x288xbf16>
    %c0_86 = arith.constant 0 : index
    %c0_87 = arith.constant 0 : index
    %84 = vector.load %arg12[%c0_86, %c0_87] : memref<288x768xbf16, #tpu.memory_space<vmem>>, vector<288x768xbf16>
    %cst_88 = arith.constant dense<0.000000e+00> : vector<32x768xf32>
    %85 = tpu.matmul %83, %84, %cst_88 {dimension_numbers = #tpu.dot_dimension_numbers<[1], [0], [0], [1], [0, 0, 1, 1], [], []>} : vector<32x288xbf16>, vector<288x768xbf16>, vector<32x768xf32> -> vector<32x768xf32>
    %c1_89 = arith.constant 1 : index
    %c0_90 = arith.constant 0 : index
    %c0_91 = arith.constant 0 : index
    %86 = vector.load %arg3[%c1_89, %c0_90, %c0_91] : memref<2x32x1xf32, #tpu.memory_space<vmem>>, vector<1x32x1xf32>
    %87 = vector.shape_cast %86 : vector<1x32x1xf32> to vector<32x1xf32>
    %88 = vector.broadcast %87 : vector<32x1xf32> to vector<32x768xf32>
    %89 = arith.addf %85, %88 : vector<32x768xf32>
    %cst_92 = arith.constant 0.000000e+00 : f32
    %90 = vector.broadcast %cst_92 : f32 to vector<32x768xf32>
    %91 = arith.maximumf %89, %90 : vector<32x768xf32>
    %c1_93 = arith.constant 1 : index
    %c0_94 = arith.constant 0 : index
    %c0_95 = arith.constant 0 : index
    %92 = vector.load %arg4[%c1_93, %c0_94, %c0_95] : memref<2x32x1xf32, #tpu.memory_space<vmem>>, vector<1x32x1xf32>
    %93 = vector.shape_cast %92 : vector<1x32x1xf32> to vector<32x1xf32>
    %c1_96 = arith.constant 1 : index
    %c0_97 = arith.constant 0 : index
    %c0_98 = arith.constant 0 : index
    %94 = vector.load %arg5[%c1_96, %c0_97, %c0_98] : memref<2x32x1xf32, #tpu.memory_space<vmem>>, vector<1x32x1xf32>
    %95 = vector.shape_cast %94 : vector<1x32x1xf32> to vector<32x1xf32>
    %96 = vector.broadcast %0 : vector<1x768xf32> to vector<32x768xf32>
    %97 = arith.mulf %91, %96 : vector<32x768xf32>
    %cst_99 = arith.constant dense<0.000000e+00> : vector<32xf32>
    %98 = vector.multi_reduction <add>, %97, %cst_99 [1] : vector<32x768xf32> to vector<32xf32>
    %99 = vector.shape_cast %98 : vector<32xf32> to vector<32x1xf32>
    %100 = arith.mulf %97, %91 : vector<32x768xf32>
    %cst_100 = arith.constant dense<0.000000e+00> : vector<32xf32>
    %101 = vector.multi_reduction <add>, %100, %cst_100 [1] : vector<32x768xf32> to vector<32xf32>
    %102 = vector.shape_cast %101 : vector<32xf32> to vector<32x1xf32>
    %cst_101 = arith.constant 0.001953125 : f32
    %103 = vector.broadcast %cst_101 : f32 to vector<32x1xf32>
    %104 = arith.mulf %99, %103 : vector<32x1xf32>
    %cst_102 = arith.constant 0.001953125 : f32
    %105 = vector.broadcast %cst_102 : f32 to vector<32x1xf32>
    %106 = arith.mulf %102, %105 : vector<32x1xf32>
    %107 = arith.mulf %104, %104 : vector<32x1xf32>
    %108 = arith.subf %106, %107 : vector<32x1xf32>
    %cst_103 = arith.constant 0.000000e+00 : f32
    %109 = vector.broadcast %cst_103 : f32 to vector<32x1xf32>
    %110 = arith.maximumf %108, %109 : vector<32x1xf32>
    %cst_104 = arith.constant 9.99999974E-6 : f32
    %111 = vector.broadcast %cst_104 : f32 to vector<32x1xf32>
    %112 = arith.addf %110, %111 : vector<32x1xf32>
    %113 = math.rsqrt %112 : vector<32x1xf32>
    %114 = arith.mulf %93, %113 : vector<32x1xf32>
    %115 = arith.mulf %104, %114 : vector<32x1xf32>
    %116 = arith.subf %95, %115 : vector<32x1xf32>
    %117 = vector.broadcast %114 : vector<32x1xf32> to vector<32x768xf32>
    %118 = arith.mulf %97, %117 : vector<32x768xf32>
    %119 = vector.broadcast %116 : vector<32x1xf32> to vector<32x768xf32>
    %120 = vector.broadcast %0 : vector<1x768xf32> to vector<32x768xf32>
    %121 = arith.mulf %119, %120 : vector<32x768xf32>
    %122 = arith.addf %118, %121 : vector<32x768xf32>
    %123 = arith.truncf %122 : vector<32x768xf32> to vector<32x768xbf16>
    %c0_105 = arith.constant 0 : index
    %c128_106 = arith.constant 128 : index
    %124 = vector.load %arg11[%c0_105, %c128_106] : memref<32x1024xbf16, #tpu.memory_space<vmem>>, vector<32x768xbf16>
    tpu.vector_store %arg11[%c0_105, %c128_106], %123 {strides = array<i32>} : memref<32x1024xbf16, #tpu.memory_space<vmem>>, vector<32x768xbf16>,
    %c0_107 = arith.constant 0 : index
    %c128_108 = arith.constant 128 : index
    %125 = vector.load %arg11[%c0_107, %c128_108] : memref<32x1024xbf16, #tpu.memory_space<vmem>>, vector<32x768xbf16>
    %c0_109 = arith.constant 0 : index
    %c0_110 = arith.constant 0 : index
    %126 = vector.load %arg6[%c0_109, %c0_110] : memref<32x32xbf16, #tpu.memory_space<vmem>>, vector<32x32xbf16>
    %cst_111 = arith.constant dense<0.000000e+00> : vector<32x768xf32>
    %127 = tpu.matmul %126, %125, %cst_111 {dimension_numbers = #tpu.dot_dimension_numbers<[1], [0], [0], [1], [0, 0, 1, 1], [], []>} : vector<32x32xbf16>, vector<32x768xbf16>, vector<32x768xf32> -> vector<32x768xf32>
    %c0_112 = arith.constant 0 : index
    %c0_113 = arith.constant 0 : index
    %128 = vector.load %arg7[%c0_112, %c0_113] : memref<32x1xf32, #tpu.memory_space<vmem>>, vector<32x1xf32>
    %129 = vector.broadcast %128 : vector<32x1xf32> to vector<32x768xf32>
    %130 = arith.addf %127, %129 : vector<32x768xf32>
    %c0_114 = arith.constant 0 : index
    %c0_115 = arith.constant 0 : index
    %131 = vector.load %arg8[%c0_114, %c0_115] : memref<32x1xf32, #tpu.memory_space<vmem>>, vector<32x1xf32>
    %c0_116 = arith.constant 0 : index
    %c0_117 = arith.constant 0 : index
    %132 = vector.load %arg9[%c0_116, %c0_117] : memref<32x1xf32, #tpu.memory_space<vmem>>, vector<32x1xf32>
    %133 = vector.broadcast %0 : vector<1x768xf32> to vector<32x768xf32>
    %134 = arith.mulf %130, %133 : vector<32x768xf32>
    %cst_118 = arith.constant dense<0.000000e+00> : vector<32xf32>
    %135 = vector.multi_reduction <add>, %134, %cst_118 [1] : vector<32x768xf32> to vector<32xf32>
    %136 = vector.shape_cast %135 : vector<32xf32> to vector<32x1xf32>
    %137 = arith.mulf %134, %130 : vector<32x768xf32>
    %cst_119 = arith.constant dense<0.000000e+00> : vector<32xf32>
    %138 = vector.multi_reduction <add>, %137, %cst_119 [1] : vector<32x768xf32> to vector<32xf32>
    %139 = vector.shape_cast %138 : vector<32xf32> to vector<32x1xf32>
    %cst_120 = arith.constant 0.001953125 : f32
    %140 = vector.broadcast %cst_120 : f32 to vector<32x1xf32>
    %141 = arith.mulf %136, %140 : vector<32x1xf32>
    %cst_121 = arith.constant 0.001953125 : f32
    %142 = vector.broadcast %cst_121 : f32 to vector<32x1xf32>
    %143 = arith.mulf %139, %142 : vector<32x1xf32>
    %144 = arith.mulf %141, %141 : vector<32x1xf32>
    %145 = arith.subf %143, %144 : vector<32x1xf32>
    %cst_122 = arith.constant 0.000000e+00 : f32
    %146 = vector.broadcast %cst_122 : f32 to vector<32x1xf32>
    %147 = arith.maximumf %145, %146 : vector<32x1xf32>
    %cst_123 = arith.constant 9.99999974E-6 : f32
    %148 = vector.broadcast %cst_123 : f32 to vector<32x1xf32>
    %149 = arith.addf %147, %148 : vector<32x1xf32>
    %150 = math.rsqrt %149 : vector<32x1xf32>
    %151 = arith.mulf %131, %150 : vector<32x1xf32>
    %152 = arith.mulf %141, %151 : vector<32x1xf32>
    %153 = arith.subf %132, %152 : vector<32x1xf32>
    %154 = vector.broadcast %151 : vector<32x1xf32> to vector<32x768xf32>
    %155 = arith.mulf %134, %154 : vector<32x768xf32>
    %156 = vector.broadcast %153 : vector<32x1xf32> to vector<32x768xf32>
    %157 = vector.broadcast %0 : vector<1x768xf32> to vector<32x768xf32>
    %158 = arith.mulf %156, %157 : vector<32x768xf32>
    %159 = arith.addf %155, %158 : vector<32x768xf32>
    %c0_124 = arith.constant 0 : index
    %c0_125 = arith.constant 0 : index
    %160 = vector.load %arg10[%c0_124, %c0_125] : memref<32x768xf32, #tpu.memory_space<vmem>>, vector<32x768xf32>
    tpu.vector_store %arg10[%c0_124, %c0_125], %159 {strides = array<i32>} : memref<32x768xf32, #tpu.memory_space<vmem>>, vector<32x768xf32>,
    return
  }
}

</mosaic_0001>

<llo_original>
// kernel: mynet_forward.1
$region0: #{mynet_forward.1}
  #allocation0 [shape = 'u32[]', space=smem, size = 0x4, offset = 0x4, fixed_abs, tag = 'smem constant byte address 0x4 - core index']
  #allocation1 [shape = 'u32[144,128]{1,0:T(1,128)}', space=vmem, size = 0x12000, scoped, tag = 'internal scratch']
  #allocation2 [shape = 'bf16[32,1024]{1,0:T(16,128)(2,1)}', space=vmem, size = 0x10000, scoped, tag = 'scratch operand']
  #allocation3 [shape = 'bf16[288,768]{1,0:T(16,128)(2,1)}', space=vmem, size = 0x6c000, scoped, tag = 'scratch operand']
  %s0 = inlined_call_operand.vmem [shape: bf16[32,1024], index: 0, kind: input, shape index: {}]
  %s1 = inlined_call_operand.vmem [shape: f32[1,768], index: 1, kind: input, shape index: {}]
  %s2 = inlined_call_operand.vmem [shape: bf16[2,32,288], index: 2, kind: input, shape index: {}]
  %s3 = inlined_call_operand.vmem [shape: f32[2,32,1], index: 3, kind: input, shape index: {}]
  %s4 = inlined_call_operand.vmem [shape: f32[2,32,1], index: 4, kind: input, shape index: {}]
  %s5 = inlined_call_operand.vmem [shape: f32[2,32,1], index: 5, kind: input, shape index: {}]
  %s6 = inlined_call_operand.vmem [shape: bf16[32,32], index: 6, kind: input, shape index: {}]
  %s7 = inlined_call_operand.vmem [shape: f32[32,1], index: 7, kind: input, shape index: {}]
  %s8 = inlined_call_operand.vmem [shape: f32[32,1], index: 8, kind: input, shape index: {}]
  %s9 = inlined_call_operand.vmem [shape: f32[32,1], index: 9, kind: input, shape index: {}]
  %s10 = inlined_call_operand.vmem [shape: f32[32,768], index: 10, kind: output, shape index: {}]
  %s11 = sld [smem:[#allocation0]]
  $region50: #{mynet_forward.1} parent=0
    _
  %s13 = ssub.s32 1, %s11
  %s14 = scalar_select 0, %s13, %s11
  // Predicated region
  $region2: #{mynet_forward.1} parent=0 // pred_check
    _
  $region3: #{mynet_forward.1} parent=0 // pred_check_branch
    %16 = sbr.rel (0) target = $region5
  $region4: #{mynet_forward.1} parent=0 // pred_region
    _
  $region5: #{mynet_forward.1} parent=0 // pred_fallthru
    _
  // Predicated region
  $region6: #{mynet_forward.1} parent=0 // pred_check
    _
  $region7: #{mynet_forward.1} parent=0 // pred_check_branch
    %18 = sbr.rel (0) target = $region9
  $region8: #{mynet_forward.1} parent=0 // pred_region
    _
  $region9: #{mynet_forward.1} parent=0 // pred_fallthru
    _
  // Predicated region
  $region10: #{mynet_forward.1} parent=0 // pred_check
    _
  $region11: #{mynet_forward.1} parent=0 // pred_check_branch
    %20 = sbr.rel (0) target = $region13
  $region12: #{mynet_forward.1} parent=0 // pred_region
    _
  $region13: #{mynet_forward.1} parent=0 // pred_fallthru
    _
  // Predicated region
  $region14: #{mynet_forward.1} parent=0 // pred_check
    _
  $region15: #{mynet_forward.1} parent=0 // pred_check_branch
    %22 = sbr.rel (0) target = $region17
  $region16: #{mynet_forward.1} parent=0 // pred_region
    _
  $region17: #{mynet_forward.1} parent=0 // pred_fallthru
    _
  // Predicated region
  $region18: #{mynet_forward.1} parent=0 // pred_check
    _
  $region19: #{mynet_forward.1} parent=0 // pred_check_branch
    %24 = sbr.rel (0) target = $region21
  $region20: #{mynet_forward.1} parent=0 // pred_region
    _
  $region21: #{mynet_forward.1} parent=0 // pred_fallthru
    _
  // Predicated region
  $region22: #{mynet_forward.1} parent=0 // pred_check
    _
  $region23: #{mynet_forward.1} parent=0 // pred_check_branch
    %26 = sbr.rel (0) target = $region25
  $region24: #{mynet_forward.1} parent=0 // pred_region
    _
  $region25: #{mynet_forward.1} parent=0 // pred_fallthru
    _
  // Predicated region
  $region26: #{mynet_forward.1} parent=0 // pred_check
    _
  $region27: #{mynet_forward.1} parent=0 // pred_check_branch
    %28 = sbr.rel (0) target = $region29
  $region28: #{mynet_forward.1} parent=0 // pred_region
    _
  $region29: #{mynet_forward.1} parent=0 // pred_fallthru
    _
  // Predicated region
  $region30: #{mynet_forward.1} parent=0 // pred_check
    _
  $region31: #{mynet_forward.1} parent=0 // pred_check_branch
    %30 = sbr.rel (0) target = $region33
  $region32: #{mynet_forward.1} parent=0 // pred_region
    _
  $region33: #{mynet_forward.1} parent=0 // pred_fallthru
    _
  // Predicated region
  $region34: #{mynet_forward.1} parent=0 // pred_check
    _
  $region35: #{mynet_forward.1} parent=0 // pred_check_branch
    %32 = sbr.rel (0) target = $region37
  $region36: #{mynet_forward.1} parent=0 // pred_region
    _
  $region37: #{mynet_forward.1} parent=0 // pred_fallthru
    _
  // Predicated region
  $region38: #{mynet_forward.1} parent=0 // pred_check
    _
  $region39: #{mynet_forward.1} parent=0 // pred_check_branch
    %34 = sbr.rel (0) target = $region41
  $region40: #{mynet_forward.1} parent=0 // pred_region
    _
  $region41: #{mynet_forward.1} parent=0 // pred_fallthru
    _
  %v36 = vld [vmem:[%s1] sm:$0x3f]
  %v37 = vld [vmem:[%s0] sm:$0xff]
  %v38 = vld [vmem:[%s0 + $0x8] sm:$0xff]
  %v39 = vld [vmem:[%s0 + $0x10] sm:$0xff]
  %v40 = vld [vmem:[%s0 + $0x18] sm:$0xff]
  %v41 = vld [vmem:[%s0 + $0x20] sm:$0xff]
  %v42 = vld [vmem:[%s0 + $0x28] sm:$0xff]
  %v43 = vld [vmem:[%s0 + $0x30] sm:$0xff]
  %v44 = vld [vmem:[%s0 + $0x38] sm:$0xff]
  %v45 = vld [vmem:[%s0 + $0x40] sm:$0xff]
  %v46 = vld [vmem:[%s0 + $0x48] sm:$0xff]
  %v47 = vld [vmem:[%s0 + $0x50] sm:$0xff]
  %v48 = vld [vmem:[%s0 + $0x58] sm:$0xff]
  %v49 = vld [vmem:[%s0 + $0x60] sm:$0xff]
  %v50 = vld [vmem:[%s0 + $0x68] sm:$0xff]
  %v51 = vld [vmem:[%s0 + $0x70] sm:$0xff]
  %v52 = vld [vmem:[%s0 + $0x78] sm:$0xff]
  %v69 = vunpack.c.l.b16 %v37
  %v70 = vunpack.c.h.b16 %v37
  %v71 = vunpack.c.l.b16 %v38
  %v72 = vunpack.c.h.b16 %v38
  %v73 = vunpack.c.l.b16 %v39
  %v74 = vunpack.c.h.b16 %v39
  %v75 = vunpack.c.l.b16 %v40
  %v76 = vunpack.c.h.b16 %v40
  %v77 = vunpack.c.l.b16 %v41
  %v78 = vunpack.c.h.b16 %v41
  %v79 = vunpack.c.l.b16 %v42
  %v80 = vunpack.c.h.b16 %v42
  %v81 = vunpack.c.l.b16 %v43
  %v82 = vunpack.c.h.b16 %v43
  %v83 = vunpack.c.l.b16 %v44
  %v84 = vunpack.c.h.b16 %v44
  %v85 = vunpack.c.l.b16 %v45
  %v86 = vunpack.c.h.b16 %v45
  %v87 = vunpack.c.l.b16 %v46
  %v88 = vunpack.c.h.b16 %v46
  %v89 = vunpack.c.l.b16 %v47
  %v90 = vunpack.c.h.b16 %v47
  %v91 = vunpack.c.l.b16 %v48
  %v92 = vunpack.c.h.b16 %v48
  %v93 = vunpack.c.l.b16 %v49
  %v94 = vunpack.c.h.b16 %v49
  %v95 = vunpack.c.l.b16 %v50
  %v96 = vunpack.c.h.b16 %v50
  %v97 = vunpack.c.l.b16 %v51
  %v98 = vunpack.c.h.b16 %v51
  %v99 = vunpack.c.l.b16 %v52
  %v100 = vunpack.c.h.b16 %v52
  %v101 = vpack.c.b16 %v77, %v69
  %v102 = vpack.c.b16 %v78, %v70
  %v103 = vpack.c.b16 %v79, %v71
  %v104 = vpack.c.b16 %v80, %v72
  %v105 = vpack.c.b16 %v81, %v73
  %v106 = vpack.c.b16 %v82, %v74
  %v107 = vpack.c.b16 %v83, %v75
  %v108 = vpack.c.b16 %v84, %v76
  %v109 = vpack.c.b16 %v93, %v85
  %v110 = vpack.c.b16 %v94, %v86
  %v111 = vpack.c.b16 %v95, %v87
  %v112 = vpack.c.b16 %v96, %v88
  %v113 = vpack.c.b16 %v97, %v89
  %v114 = vpack.c.b16 %v98, %v90
  %v115 = vpack.c.b16 %v99, %v91
  %v116 = vpack.c.b16 %v100, %v92
  %133 = vst [vmem:[#allocation2] sm:$0xff] %v101
  %134 = vst [vmem:[#allocation2 + $0x8] sm:$0xff] %v102
  %135 = vst [vmem:[#allocation2 + $0x10] sm:$0xff] %v103
  %136 = vst [vmem:[#allocation2 + $0x18] sm:$0xff] %v104
  %137 = vst [vmem:[#allocation2 + $0x20] sm:$0xff] %v105
  %138 = vst [vmem:[#allocation2 + $0x28] sm:$0xff] %v106
  %139 = vst [vmem:[#allocation2 + $0x30] sm:$0xff] %v107
  %140 = vst [vmem:[#allocation2 + $0x38] sm:$0xff] %v108
  %141 = vst [vmem:[#allocation2 + $0x40] sm:$0xff] %v109
  %142 = vst [vmem:[#allocation2 + $0x48] sm:$0xff] %v110
  %143 = vst [vmem:[#allocation2 + $0x50] sm:$0xff] %v111
  %144 = vst [vmem:[#allocation2 + $0x58] sm:$0xff] %v112
  %145 = vst [vmem:[#allocation2 + $0x60] sm:$0xff] %v113
  %146 = vst [vmem:[#allocation2 + $0x68] sm:$0xff] %v114
  %147 = vst [vmem:[#allocation2 + $0x70] sm:$0xff] %v115
  %148 = vst [vmem:[#allocation2 + $0x78] sm:$0xff] %v116
  %v149 = vld [vmem:[#allocation2] sm:$0xff]
  %v150 = vld [vmem:[#allocation2 + $0x8] sm:$0xff]
  %v151 = vld [vmem:[#allocation2 + $0x10] sm:$0xff]
  %v152 = vld [vmem:[#allocation2 + $0x18] sm:$0xff]
  %v153 = vld [vmem:[#allocation2 + $0x20] sm:$0xff]
  %v154 = vld [vmem:[#allocation2 + $0x28] sm:$0xff]
  %v155 = vld [vmem:[#allocation2 + $0x30] sm:$0xff]
  %v156 = vld [vmem:[#allocation2 + $0x40] sm:$0xff]
  %v157 = vld [vmem:[#allocation2 + $0x48] sm:$0xff]
  %v158 = vld [vmem:[#allocation2 + $0x50] sm:$0xff]
  %v159 = vld [vmem:[#allocation2 + $0x58] sm:$0xff]
  %v160 = vld [vmem:[#allocation2 + $0x60] sm:$0xff]
  %v161 = vld [vmem:[#allocation2 + $0x68] sm:$0xff]
  %v162 = vld [vmem:[#allocation2 + $0x70] sm:$0xff]
  %177 = vrot.lane.b32.xlu0 %v149, 19
  %v178 = vpop.permute.xlu0 %177
  %179 = vrot.lane.b32.xlu0 %v150, 19
  %v180 = vpop.permute.xlu0 %179
  %181 = vrot.lane.b32.xlu0 %v151, 19
  %v182 = vpop.permute.xlu0 %181
  %183 = vrot.lane.b32.xlu0 %v152, 19
  %v184 = vpop.permute.xlu0 %183
  %185 = vrot.lane.b32.xlu0 %v153, 19
  %v186 = vpop.permute.xlu0 %185
  %187 = vrot.lane.b32.xlu0 %v154, 19
  %v188 = vpop.permute.xlu0 %187
  %189 = vrot.lane.b32.xlu0 %v155, 19
  %v190 = vpop.permute.xlu0 %189
  %191 = vrot.lane.b32.xlu0 %v156, 19
  %v192 = vpop.permute.xlu0 %191
  %193 = vrot.lane.b32.xlu0 %v157, 19
  %v194 = vpop.permute.xlu0 %193
  %195 = vrot.lane.b32.xlu0 %v158, 19
  %v196 = vpop.permute.xlu0 %195
  %197 = vrot.lane.b32.xlu0 %v159, 19
  %v198 = vpop.permute.xlu0 %197
  %199 = vrot.lane.b32.xlu0 %v160, 19
  %v200 = vpop.permute.xlu0 %199
  %201 = vrot.lane.b32.xlu0 %v161, 19
  %v202 = vpop.permute.xlu0 %201
  %203 = vrot.lane.b32.xlu0 %v162, 19
  %v204 = vpop.permute.xlu0 %203
  %vm205 = vcmask 154624
  %v206 = vsel %vm205, %v178, %v180
  %v207 = vsel %vm205, %v180, %v182
  %v208 = vsel %vm205, %v182, %v184
  %v209 = vsel %vm205, %v184, %v186
  %v210 = vsel %vm205, %v186, %v188
  %v211 = vsel %vm205, %v188, %v190
  %v212 = vsel %vm205, %v192, %v194
  %v213 = vsel %vm205, %v194, %v196
  %v214 = vsel %vm205, %v196, %v198
  %v215 = vsel %vm205, %v198, %v200
  %v216 = vsel %vm205, %v200, %v202
  %v217 = vsel %vm205, %v202, %v204
  %230 = vst [vmem:[#allocation3] sm:$0xff] %v206
  %231 = vst [vmem:[#allocation3 + $0x8] sm:$0xff] %v207
  %232 = vst [vmem:[#allocation3 + $0x10] sm:$0xff] %v208
  %233 = vst [vmem:[#allocation3 + $0x18] sm:$0xff] %v209
  %234 = vst [vmem:[#allocation3 + $0x20] sm:$0xff] %v210
  %235 = vst [vmem:[#allocation3 + $0x28] sm:$0xff] %v211
  %236 = vst [vmem:[#allocation3 + $0x30] sm:$0xff] %v212
  %237 = vst [vmem:[#allocation3 + $0x38] sm:$0xff] %v213
  %238 = vst [vmem:[#allocation3 + $0x40] sm:$0xff] %v214
  %239 = vst [vmem:[#allocation3 + $0x48] sm:$0xff] %v215
  %240 = vst [vmem:[#allocation3 + $0x50] sm:$0xff] %v216
  %241 = vst [vmem:[#allocation3 + $0x58] sm:$0xff] %v217
  %v242 = vld [vmem:[#allocation2] sm:$0xff]
  %v243 = vld [vmem:[#allocation2 + $0x8] sm:$0xff]
  %v244 = vld [vmem:[#allocation2 + $0x10] sm:$0xff]
  %v245 = vld [vmem:[#allocation2 + $0x18] sm:$0xff]
  %v246 = vld [vmem:[#allocation2 + $0x20] sm:$0xff]
  %v247 = vld [vmem:[#allocation2 + $0x28] sm:$0xff]
  %v248 = vld [vmem:[#allocation2 + $0x30] sm:$0xff]
  %v249 = vld [vmem:[#allocation2 + $0x40] sm:$0xff]
  %v250 = vld [vmem:[#allocation2 + $0x48] sm:$0xff]
  %v251 = vld [vmem:[#allocation2 + $0x50] sm:$0xff]
  %v252 = vld [vmem:[#allocation2 + $0x58] sm:$0xff]
  %v253 = vld [vmem:[#allocation2 + $0x60] sm:$0xff]
  %v254 = vld [vmem:[#allocation2 + $0x68] sm:$0xff]
  %v255 = vld [vmem:[#allocation2 + $0x70] sm:$0xff]
  %270 = vrot.lane.b32.xlu0 %v242, 18
  %v271 = vpop.permute.xlu0 %270
  %272 = vrot.lane.b32.xlu0 %v243, 18
  %v273 = vpop.permute.xlu0 %272
  %274 = vrot.lane.b32.xlu0 %v244, 18
  %v275 = vpop.permute.xlu0 %274
  %276 = vrot.lane.b32.xlu0 %v245, 18
  %v277 = vpop.permute.xlu0 %276
  %278 = vrot.lane.b32.xlu0 %v246, 18
  %v279 = vpop.permute.xlu0 %278
  %280 = vrot.lane.b32.xlu0 %v247, 18
  %v281 = vpop.permute.xlu0 %280
  %282 = vrot.lane.b32.xlu0 %v248, 18
  %v283 = vpop.permute.xlu0 %282
  %284 = vrot.lane.b32.xlu0 %v249, 18
  %v285 = vpop.permute.xlu0 %284
  %286 = vrot.lane.b32.xlu0 %v250, 18
  %v287 = vpop.permute.xlu0 %286
  %288 = vrot.lane.b32.xlu0 %v251, 18
  %v289 = vpop.permute.xlu0 %288
  %290 = vrot.lane.b32.xlu0 %v252, 18
  %v291 = vpop.permute.xlu0 %290
  %292 = vrot.lane.b32.xlu0 %v253, 18
  %v293 = vpop.permute.xlu0 %292
  %294 = vrot.lane.b32.xlu0 %v254, 18
  %v295 = vpop.permute.xlu0 %294
  %296 = vrot.lane.b32.xlu0 %v255, 18
  %v297 = vpop.permute.xlu0 %296
  %vm298 = vcmask 146432
  %v299 = vsel %vm298, %v271, %v273
  %v300 = vsel %vm298, %v273, %v275
  %v301 = vsel %vm298, %v275, %v277
  %v302 = vsel %vm298, %v277, %v279
  %v303 = vsel %vm298, %v279, %v281
  %v304 = vsel %vm298, %v281, %v283
  %v305 = vsel %vm298, %v285, %v287
  %v306 = vsel %vm298, %v287, %v289
  %v307 = vsel %vm298, %v289, %v291
  %v308 = vsel %vm298, %v291, %v293
  %v309 = vsel %vm298, %v293, %v295
  %v310 = vsel %vm298, %v295, %v297
  %323 = vst [vmem:[#allocation3 + $0x60] sm:$0xff] %v299
  %324 = vst [vmem:[#allocation3 + $0x68] sm:$0xff] %v300
  %325 = vst [vmem:[#allocation3 + $0x70] sm:$0xff] %v301
  %326 = vst [vmem:[#allocation3 + $0x78] sm:$0xff] %v302
  %327 = vst [vmem:[#allocation3 + $0x80] sm:$0xff] %v303
  %328 = vst [vmem:[#allocation3 + $0x88] sm:$0xff] %v304
  %329 = vst [vmem:[#allocation3 + $0x90] sm:$0xff] %v305
  %330 = vst [vmem:[#allocation3 + $0x98] sm:$0xff] %v306
  %331 = vst [vmem:[#allocation3 + $0xa0] sm:$0xff] %v307
  %332 = vst [vmem:[#allocation3 + $0xa8] sm:$0xff] %v308
  %333 = vst [vmem:[#allocation3 + $0xb0] sm:$0xff] %v309
  %334 = vst [vmem:[#allocation3 + $0xb8] sm:$0xff] %v310
  %v335 = vld [vmem:[#allocation2] sm:$0xff]
  %v336 = vld [vmem:[#allocation2 + $0x8] sm:$0xff]
  %v337 = vld [vmem:[#allocation2 + $0x10] sm:$0xff]
  %v338 = vld [vmem:[#allocation2 + $0x18] sm:$0xff]
  %v339 = vld [vmem:[#allocation2 + $0x20] sm:$0xff]
  %v340 = vld [vmem:[#allocation2 + $0x28] sm:$0xff]
  %v341 = vld [vmem:[#allocation2 + $0x30] sm:$0xff]
  %v342 = vld [vmem:[#allocation2 + $0x40] sm:$0xff]
  %v343 = vld [vmem:[#allocation2 + $0x48] sm:$0xff]
  %v344 = vld [vmem:[#allocation2 + $0x50] sm:$0xff]
  %v345 = vld [vmem:[#allocation2 + $0x58] sm:$0xff]
  %v346 = vld [vmem:[#allocation2 + $0x60] sm:$0xff]
  %v347 = vld [vmem:[#allocation2 + $0x68] sm:$0xff]
  %v348 = vld [vmem:[#allocation2 + $0x70] sm:$0xff]
  %363 = vrot.lane.b32.xlu0 %v335, 17
  %v364 = vpop.permute.xlu0 %363
  %365 = vrot.lane.b32.xlu0 %v336, 17
  %v366 = vpop.permute.xlu0 %365
  %367 = vrot.lane.b32.xlu0 %v337, 17
  %v368 = vpop.permute.xlu0 %367
  %369 = vrot.lane.b32.xlu0 %v338, 17
  %v370 = vpop.permute.xlu0 %369
  %371 = vrot.lane.b32.xlu0 %v339, 17
  %v372 = vpop.permute.xlu0 %371
  %373 = vrot.lane.b32.xlu0 %v340, 17
  %v374 = vpop.permute.xlu0 %373
  %375 = vrot.lane.b32.xlu0 %v341, 17
  %v376 = vpop.permute.xlu0 %375
  %377 = vrot.lane.b32.xlu0 %v342, 17
  %v378 = vpop.permute.xlu0 %377
  %379 = vrot.lane.b32.xlu0 %v343, 17
  %v380 = vpop.permute.xlu0 %379
  %381 = vrot.lane.b32.xlu0 %v344, 17
  %v382 = vpop.permute.xlu0 %381
  %383 = vrot.lane.b32.xlu0 %v345, 17
  %v384 = vpop.permute.xlu0 %383
  %385 = vrot.lane.b32.xlu0 %v346, 17
  %v386 = vpop.permute.xlu0 %385
  %387 = vrot.lane.b32.xlu0 %v347, 17
  %v388 = vpop.permute.xlu0 %387
  %389 = vrot.lane.b32.xlu0 %v348, 17
  %v390 = vpop.permute.xlu0 %389
  %vm391 = vcmask 138240
  %v392 = vsel %vm391, %v364, %v366
  %v393 = vsel %vm391, %v366, %v368
  %v394 = vsel %vm391, %v368, %v370
  %v395 = vsel %vm391, %v370, %v372
  %v396 = vsel %vm391, %v372, %v374
  %v397 = vsel %vm391, %v374, %v376
  %v398 = vsel %vm391, %v378, %v380
  %v399 = vsel %vm391, %v380, %v382
  %v400 = vsel %vm391, %v382, %v384
  %v401 = vsel %vm391, %v384, %v386
  %v402 = vsel %vm391, %v386, %v388
  %v403 = vsel %vm391, %v388, %v390
  %416 = vst [vmem:[#allocation3 + $0xc0] sm:$0xff] %v392
  %417 = vst [vmem:[#allocation3 + $0xc8] sm:$0xff] %v393
  %418 = vst [vmem:[#allocation3 + $0xd0] sm:$0xff] %v394
  %419 = vst [vmem:[#allocation3 + $0xd8] sm:$0xff] %v395
  %420 = vst [vmem:[#allocation3 + $0xe0] sm:$0xff] %v396
  %421 = vst [vmem:[#allocation3 + $0xe8] sm:$0xff] %v397
  %422 = vst [vmem:[#allocation3 + $0xf0] sm:$0xff] %v398
  %423 = vst [vmem:[#allocation3 + $0xf8] sm:$0xff] %v399
  %424 = vst [vmem:[#allocation3 + $0x100] sm:$0xff] %v400
  %425 = vst [vmem:[#allocation3 + $0x108] sm:$0xff] %v401
  %426 = vst [vmem:[#allocation3 + $0x110] sm:$0xff] %v402
  %427 = vst [vmem:[#allocation3 + $0x118] sm:$0xff] %v403
  %v428 = vld [vmem:[#allocation2] sm:$0xff]
  %v429 = vld [vmem:[#allocation2 + $0x8] sm:$0xff]
  %v430 = vld [vmem:[#allocation2 + $0x10] sm:$0xff]
  %v431 = vld [vmem:[#allocation2 + $0x18] sm:$0xff]
  %v432 = vld [vmem:[#allocation2 + $0x20] sm:$0xff]
  %v433 = vld [vmem:[#allocation2 + $0x28] sm:$0xff]
  %v434 = vld [vmem:[#allocation2 + $0x30] sm:$0xff]
  %v435 = vld [vmem:[#allocation2 + $0x40] sm:$0xff]
  %v436 = vld [vmem:[#allocation2 + $0x48] sm:$0xff]
  %v437 = vld [vmem:[#allocation2 + $0x50] sm:$0xff]
  %v438 = vld [vmem:[#allocation2 + $0x58] sm:$0xff]
  %v439 = vld [vmem:[#allocation2 + $0x60] sm:$0xff]
  %v440 = vld [vmem:[#allocation2 + $0x68] sm:$0xff]
  %v441 = vld [vmem:[#allocation2 + $0x70] sm:$0xff]
  %456 = vrot.lane.b32.xlu0 %v428, 1
  %v457 = vpop.permute.xlu0 %456
  %458 = vrot.lane.b32.xlu0 %v429, 1
  %v459 = vpop.permute.xlu0 %458
  %460 = vrot.lane.b32.xlu0 %v430, 1
  %v461 = vpop.permute.xlu0 %460
  %462 = vrot.lane.b32.xlu0 %v431, 1
  %v463 = vpop.permute.xlu0 %462
  %464 = vrot.lane.b32.xlu0 %v432, 1
  %v465 = vpop.permute.xlu0 %464
  %466 = vrot.lane.b32.xlu0 %v433, 1
  %v467 = vpop.permute.xlu0 %466
  %468 = vrot.lane.b32.xlu0 %v434, 1
  %v469 = vpop.permute.xlu0 %468
  %470 = vrot.lane.b32.xlu0 %v435, 1
  %v471 = vpop.permute.xlu0 %470
  %472 = vrot.lane.b32.xlu0 %v436, 1
  %v473 = vpop.permute.xlu0 %472
  %474 = vrot.lane.b32.xlu0 %v437, 1
  %v475 = vpop.permute.xlu0 %474
  %476 = vrot.lane.b32.xlu0 %v438, 1
  %v477 = vpop.permute.xlu0 %476
  %478 = vrot.lane.b32.xlu0 %v439, 1
  %v479 = vpop.permute.xlu0 %478
  %480 = vrot.lane.b32.xlu0 %v440, 1
  %v481 = vpop.permute.xlu0 %480
  %482 = vrot.lane.b32.xlu0 %v441, 1
  %v483 = vpop.permute.xlu0 %482
  %vm484 = vcmask 7168
  %v485 = vsel %vm484, %v457, %v459
  %v486 = vsel %vm484, %v459, %v461
  %v487 = vsel %vm484, %v461, %v463
  %v488 = vsel %vm484, %v463, %v465
  %v489 = vsel %vm484, %v465, %v467
  %v490 = vsel %vm484, %v467, %v469
  %v491 = vsel %vm484, %v471, %v473
  %v492 = vsel %vm484, %v473, %v475
  %v493 = vsel %vm484, %v475, %v477
  %v494 = vsel %vm484, %v477, %v479
  %v495 = vsel %vm484, %v479, %v481
  %v496 = vsel %vm484, %v481, %v483
  %509 = vst [vmem:[#allocation3 + $0x120] sm:$0xff] %v485
  %510 = vst [vmem:[#allocation3 + $0x128] sm:$0xff] %v486
  %511 = vst [vmem:[#allocation3 + $0x130] sm:$0xff] %v487
  %512 = vst [vmem:[#allocation3 + $0x138] sm:$0xff] %v488
  %513 = vst [vmem:[#allocation3 + $0x140] sm:$0xff] %v489
  %514 = vst [vmem:[#allocation3 + $0x148] sm:$0xff] %v490
  %515 = vst [vmem:[#allocation3 + $0x150] sm:$0xff] %v491
  %516 = vst [vmem:[#allocation3 + $0x158] sm:$0xff] %v492
  %517 = vst [vmem:[#allocation3 + $0x160] sm:$0xff] %v493
  %518 = vst [vmem:[#allocation3 + $0x168] sm:$0xff] %v494
  %519 = vst [vmem:[#allocation3 + $0x170] sm:$0xff] %v495
  %520 = vst [vmem:[#allocation3 + $0x178] sm:$0xff] %v496
  %v521 = vld [vmem:[#allocation2 + $0x8] sm:$0xff]
  %v522 = vld [vmem:[#allocation2 + $0x10] sm:$0xff]
  %v523 = vld [vmem:[#allocation2 + $0x18] sm:$0xff]
  %v524 = vld [vmem:[#allocation2 + $0x20] sm:$0xff]
  %v525 = vld [vmem:[#allocation2 + $0x28] sm:$0xff]
  %v526 = vld [vmem:[#allocation2 + $0x30] sm:$0xff]
  %v527 = vld [vmem:[#allocation2 + $0x48] sm:$0xff]
  %v528 = vld [vmem:[#allocation2 + $0x50] sm:$0xff]
  %v529 = vld [vmem:[#allocation2 + $0x58] sm:$0xff]
  %v530 = vld [vmem:[#allocation2 + $0x60] sm:$0xff]
  %v531 = vld [vmem:[#allocation2 + $0x68] sm:$0xff]
  %v532 = vld [vmem:[#allocation2 + $0x70] sm:$0xff]
  %533 = vst [vmem:[#allocation3 + $0x180] sm:$0xff] %v521
  %534 = vst [vmem:[#allocation3 + $0x188] sm:$0xff] %v522
  %535 = vst [vmem:[#allocation3 + $0x190] sm:$0xff] %v523
  %536 = vst [vmem:[#allocation3 + $0x198] sm:$0xff] %v524
  %537 = vst [vmem:[#allocation3 + $0x1a0] sm:$0xff] %v525
  %538 = vst [vmem:[#allocation3 + $0x1a8] sm:$0xff] %v526
  %539 = vst [vmem:[#allocation3 + $0x1b0] sm:$0xff] %v527
  %540 = vst [vmem:[#allocation3 + $0x1b8] sm:$0xff] %v528
  %541 = vst [vmem:[#allocation3 + $0x1c0] sm:$0xff] %v529
  %542 = vst [vmem:[#allocation3 + $0x1c8] sm:$0xff] %v530
  %543 = vst [vmem:[#allocation3 + $0x1d0] sm:$0xff] %v531
  %544 = vst [vmem:[#allocation3 + $0x1d8] sm:$0xff] %v532
  %v545 = vld [vmem:[#allocation2 + $0x8] sm:$0xff]
  %v546 = vld [vmem:[#allocation2 + $0x10] sm:$0xff]
  %v547 = vld [vmem:[#allocation2 + $0x18] sm:$0xff]
  %v548 = vld [vmem:[#allocation2 + $0x20] sm:$0xff]
  %v549 = vld [vmem:[#allocation2 + $0x28] sm:$0xff]
  %v550 = vld [vmem:[#allocation2 + $0x30] sm:$0xff]
  %v551 = vld [vmem:[#allocation2 + $0x38] sm:$0xff]
  %v552 = vld [vmem:[#allocation2 + $0x48] sm:$0xff]
  %v553 = vld [vmem:[#allocation2 + $0x50] sm:$0xff]
  %v554 = vld [vmem:[#allocation2 + $0x58] sm:$0xff]
  %v555 = vld [vmem:[#allocation2 + $0x60] sm:$0xff]
  %v556 = vld [vmem:[#allocation2 + $0x68] sm:$0xff]
  %v557 = vld [vmem:[#allocation2 + $0x70] sm:$0xff]
  %v558 = vld [vmem:[#allocation2 + $0x78] sm:$0xff]
  %573 = vrot.lane.b32.xlu0 %v545, 127
  %v574 = vpop.permute.xlu0 %573
  %575 = vrot.lane.b32.xlu0 %v546, 127
  %v576 = vpop.permute.xlu0 %575
  %577 = vrot.lane.b32.xlu0 %v547, 127
  %v578 = vpop.permute.xlu0 %577
  %579 = vrot.lane.b32.xlu0 %v548, 127
  %v580 = vpop.permute.xlu0 %579
  %581 = vrot.lane.b32.xlu0 %v549, 127
  %v582 = vpop.permute.xlu0 %581
  %583 = vrot.lane.b32.xlu0 %v550, 127
  %v584 = vpop.permute.xlu0 %583
  %585 = vrot.lane.b32.xlu0 %v551, 127
  %v586 = vpop.permute.xlu0 %585
  %587 = vrot.lane.b32.xlu0 %v552, 127
  %v588 = vpop.permute.xlu0 %587
  %589 = vrot.lane.b32.xlu0 %v553, 127
  %v590 = vpop.permute.xlu0 %589
  %591 = vrot.lane.b32.xlu0 %v554, 127
  %v592 = vpop.permute.xlu0 %591
  %593 = vrot.lane.b32.xlu0 %v555, 127
  %v594 = vpop.permute.xlu0 %593
  %595 = vrot.lane.b32.xlu0 %v556, 127
  %v596 = vpop.permute.xlu0 %595
  %597 = vrot.lane.b32.xlu0 %v557, 127
  %v598 = vpop.permute.xlu0 %597
  %599 = vrot.lane.b32.xlu0 %v558, 127
  %v600 = vpop.permute.xlu0 %599
  %vm601 = vcmask 1039360
  %v602 = vsel %vm601, %v574, %v576
  %v603 = vsel %vm601, %v576, %v578
  %v604 = vsel %vm601, %v578, %v580
  %v605 = vsel %vm601, %v580, %v582
  %v606 = vsel %vm601, %v582, %v584
  %v607 = vsel %vm601, %v584, %v586
  %v608 = vsel %vm601, %v588, %v590
  %v609 = vsel %vm601, %v590, %v592
  %v610 = vsel %vm601, %v592, %v594
  %v611 = vsel %vm601, %v594, %v596
  %v612 = vsel %vm601, %v596, %v598
  %v613 = vsel %vm601, %v598, %v600
  %626 = vst [vmem:[#allocation3 + $0x1e0] sm:$0xff] %v602
  %627 = vst [vmem:[#allocation3 + $0x1e8] sm:$0xff] %v603
  %628 = vst [vmem:[#allocation3 + $0x1f0] sm:$0xff] %v604
  %629 = vst [vmem:[#allocation3 + $0x1f8] sm:$0xff] %v605
  %630 = vst [vmem:[#allocation3 + $0x200] sm:$0xff] %v606
  %631 = vst [vmem:[#allocation3 + $0x208] sm:$0xff] %v607
  %632 = vst [vmem:[#allocation3 + $0x210] sm:$0xff] %v608
  %633 = vst [vmem:[#allocation3 + $0x218] sm:$0xff] %v609
  %634 = vst [vmem:[#allocation3 + $0x220] sm:$0xff] %v610
  %635 = vst [vmem:[#allocation3 + $0x228] sm:$0xff] %v611
  %636 = vst [vmem:[#allocation3 + $0x230] sm:$0xff] %v612
  %637 = vst [vmem:[#allocation3 + $0x238] sm:$0xff] %v613
  %v638 = vld [vmem:[#allocation2 + $0x8] sm:$0xff]
  %v639 = vld [vmem:[#allocation2 + $0x10] sm:$0xff]
  %v640 = vld [vmem:[#allocation2 + $0x18] sm:$0xff]
  %v641 = vld [vmem:[#allocation2 + $0x20] sm:$0xff]
  %v642 = vld [vmem:[#allocation2 + $0x28] sm:$0xff]
  %v643 = vld [vmem:[#allocation2 + $0x30] sm:$0xff]
  %v644 = vld [vmem:[#allocation2 + $0x38] sm:$0xff]
  %v645 = vld [vmem:[#allocation2 + $0x48] sm:$0xff]
  %v646 = vld [vmem:[#allocation2 + $0x50] sm:$0xff]
  %v647 = vld [vmem:[#allocation2 + $0x58] sm:$0xff]
  %v648 = vld [vmem:[#allocation2 + $0x60] sm:$0xff]
  %v649 = vld [vmem:[#allocation2 + $0x68] sm:$0xff]
  %v650 = vld [vmem:[#allocation2 + $0x70] sm:$0xff]
  %v651 = vld [vmem:[#allocation2 + $0x78] sm:$0xff]
  %666 = vrot.lane.b32.xlu0 %v638, 111
  %v667 = vpop.permute.xlu0 %666
  %668 = vrot.lane.b32.xlu0 %v639, 111
  %v669 = vpop.permute.xlu0 %668
  %670 = vrot.lane.b32.xlu0 %v640, 111
  %v671 = vpop.permute.xlu0 %670
  %672 = vrot.lane.b32.xlu0 %v641, 111
  %v673 = vpop.permute.xlu0 %672
  %674 = vrot.lane.b32.xlu0 %v642, 111
  %v675 = vpop.permute.xlu0 %674
  %676 = vrot.lane.b32.xlu0 %v643, 111
  %v677 = vpop.permute.xlu0 %676
  %678 = vrot.lane.b32.xlu0 %v644, 111
  %v679 = vpop.permute.xlu0 %678
  %680 = vrot.lane.b32.xlu0 %v645, 111
  %v681 = vpop.permute.xlu0 %680
  %682 = vrot.lane.b32.xlu0 %v646, 111
  %v683 = vpop.permute.xlu0 %682
  %684 = vrot.lane.b32.xlu0 %v647, 111
  %v685 = vpop.permute.xlu0 %684
  %686 = vrot.lane.b32.xlu0 %v648, 111
  %v687 = vpop.permute.xlu0 %686
  %688 = vrot.lane.b32.xlu0 %v649, 111
  %v689 = vpop.permute.xlu0 %688
  %690 = vrot.lane.b32.xlu0 %v650, 111
  %v691 = vpop.permute.xlu0 %690
  %692 = vrot.lane.b32.xlu0 %v651, 111
  %v693 = vpop.permute.xlu0 %692
  %vm694 = vcmask 908288
  %v695 = vsel %vm694, %v667, %v669
  %v696 = vsel %vm694, %v669, %v671
  %v697 = vsel %vm694, %v671, %v673
  %v698 = vsel %vm694, %v673, %v675
  %v699 = vsel %vm694, %v675, %v677
  %v700 = vsel %vm694, %v677, %v679
  %v701 = vsel %vm694, %v681, %v683
  %v702 = vsel %vm694, %v683, %v685
  %v703 = vsel %vm694, %v685, %v687
  %v704 = vsel %vm694, %v687, %v689
  %v705 = vsel %vm694, %v689, %v691
  %v706 = vsel %vm694, %v691, %v693
  %719 = vst [vmem:[#allocation3 + $0x240] sm:$0xff] %v695
  %720 = vst [vmem:[#allocation3 + $0x248] sm:$0xff] %v696
  %721 = vst [vmem:[#allocation3 + $0x250] sm:$0xff] %v697
  %722 = vst [vmem:[#allocation3 + $0x258] sm:$0xff] %v698
  %723 = vst [vmem:[#allocation3 + $0x260] sm:$0xff] %v699
  %724 = vst [vmem:[#allocation3 + $0x268] sm:$0xff] %v700
  %725 = vst [vmem:[#allocation3 + $0x270] sm:$0xff] %v701
  %726 = vst [vmem:[#allocation3 + $0x278] sm:$0xff] %v702
  %727 = vst [vmem:[#allocation3 + $0x280] sm:$0xff] %v703
  %728 = vst [vmem:[#allocation3 + $0x288] sm:$0xff] %v704
  %729 = vst [vmem:[#allocation3 + $0x290] sm:$0xff] %v705
  %730 = vst [vmem:[#allocation3 + $0x298] sm:$0xff] %v706
  %v731 = vld [vmem:[#allocation2 + $0x8] sm:$0xff]
  %v732 = vld [vmem:[#allocation2 + $0x10] sm:$0xff]
  %v733 = vld [vmem:[#allocation2 + $0x18] sm:$0xff]
  %v734 = vld [vmem:[#allocation2 + $0x20] sm:$0xff]
  %v735 = vld [vmem:[#allocation2 + $0x28] sm:$0xff]
  %v736 = vld [vmem:[#allocation2 + $0x30] sm:$0xff]
  %v737 = vld [vmem:[#allocation2 + $0x38] sm:$0xff]
  %v738 = vld [vmem:[#allocation2 + $0x48] sm:$0xff]
  %v739 = vld [vmem:[#allocation2 + $0x50] sm:$0xff]
  %v740 = vld [vmem:[#allocation2 + $0x58] sm:$0xff]
  %v741 = vld [vmem:[#allocation2 + $0x60] sm:$0xff]
  %v742 = vld [vmem:[#allocation2 + $0x68] sm:$0xff]
  %v743 = vld [vmem:[#allocation2 + $0x70] sm:$0xff]
  %v744 = vld [vmem:[#allocation2 + $0x78] sm:$0xff]
  %759 = vrot.lane.b32.xlu0 %v731, 110
  %v760 = vpop.permute.xlu0 %759
  %761 = vrot.lane.b32.xlu0 %v732, 110
  %v762 = vpop.permute.xlu0 %761
  %763 = vrot.lane.b32.xlu0 %v733, 110
  %v764 = vpop.permute.xlu0 %763
  %765 = vrot.lane.b32.xlu0 %v734, 110
  %v766 = vpop.permute.xlu0 %765
  %767 = vrot.lane.b32.xlu0 %v735, 110
  %v768 = vpop.permute.xlu0 %767
  %769 = vrot.lane.b32.xlu0 %v736, 110
  %v770 = vpop.permute.xlu0 %769
  %771 = vrot.lane.b32.xlu0 %v737, 110
  %v772 = vpop.permute.xlu0 %771
  %773 = vrot.lane.b32.xlu0 %v738, 110
  %v774 = vpop.permute.xlu0 %773
  %775 = vrot.lane.b32.xlu0 %v739, 110
  %v776 = vpop.permute.xlu0 %775
  %777 = vrot.lane.b32.xlu0 %v740, 110
  %v778 = vpop.permute.xlu0 %777
  %779 = vrot.lane.b32.xlu0 %v741, 110
  %v780 = vpop.permute.xlu0 %779
  %781 = vrot.lane.b32.xlu0 %v742, 110
  %v782 = vpop.permute.xlu0 %781
  %783 = vrot.lane.b32.xlu0 %v743, 110
  %v784 = vpop.permute.xlu0 %783
  %785 = vrot.lane.b32.xlu0 %v744, 110
  %v786 = vpop.permute.xlu0 %785
  %vm787 = vcmask 900096
  %v788 = vsel %vm787, %v760, %v762
  %v789 = vsel %vm787, %v762, %v764
  %v790 = vsel %vm787, %v764, %v766
  %v791 = vsel %vm787, %v766, %v768
  %v792 = vsel %vm787, %v768, %v770
  %v793 = vsel %vm787, %v770, %v772
  %v794 = vsel %vm787, %v774, %v776
  %v795 = vsel %vm787, %v776, %v778
  %v796 = vsel %vm787, %v778, %v780
  %v797 = vsel %vm787, %v780, %v782
  %v798 = vsel %vm787, %v782, %v784
  %v799 = vsel %vm787, %v784, %v786
  %812 = vst [vmem:[#allocation3 + $0x2a0] sm:$0xff] %v788
  %813 = vst [vmem:[#allocation3 + $0x2a8] sm:$0xff] %v789
  %814 = vst [vmem:[#allocation3 + $0x2b0] sm:$0xff] %v790
  %815 = vst [vmem:[#allocation3 + $0x2b8] sm:$0xff] %v791
  %816 = vst [vmem:[#allocation3 + $0x2c0] sm:$0xff] %v792
  %817 = vst [vmem:[#allocation3 + $0x2c8] sm:$0xff] %v793
  %818 = vst [vmem:[#allocation3 + $0x2d0] sm:$0xff] %v794
  %819 = vst [vmem:[#allocation3 + $0x2d8] sm:$0xff] %v795
  %820 = vst [vmem:[#allocation3 + $0x2e0] sm:$0xff] %v796
  %821 = vst [vmem:[#allocation3 + $0x2e8] sm:$0xff] %v797
  %822 = vst [vmem:[#allocation3 + $0x2f0] sm:$0xff] %v798
  %823 = vst [vmem:[#allocation3 + $0x2f8] sm:$0xff] %v799
  %v824 = vld [vmem:[#allocation2 + $0x8] sm:$0xff]
  %v825 = vld [vmem:[#allocation2 + $0x10] sm:$0xff]
  %v826 = vld [vmem:[#allocation2 + $0x18] sm:$0xff]
  %v827 = vld [vmem:[#allocation2 + $0x20] sm:$0xff]
  %v828 = vld [vmem:[#allocation2 + $0x28] sm:$0xff]
  %v829 = vld [vmem:[#allocation2 + $0x30] sm:$0xff]
  %v830 = vld [vmem:[#allocation2 + $0x38] sm:$0xff]
  %v831 = vld [vmem:[#allocation2 + $0x48] sm:$0xff]
  %v832 = vld [vmem:[#allocation2 + $0x50] sm:$0xff]
  %v833 = vld [vmem:[#allocation2 + $0x58] sm:$0xff]
  %v834 = vld [vmem:[#allocation2 + $0x60] sm:$0xff]
  %v835 = vld [vmem:[#allocation2 + $0x68] sm:$0xff]
  %v836 = vld [vmem:[#allocation2 + $0x70] sm:$0xff]
  %v837 = vld [vmem:[#allocation2 + $0x78] sm:$0xff]
  %852 = vrot.lane.b32.xlu0 %v824, 109
  %v853 = vpop.permute.xlu0 %852
  %854 = vrot.lane.b32.xlu0 %v825, 109
  %v855 = vpop.permute.xlu0 %854
  %856 = vrot.lane.b32.xlu0 %v826, 109
  %v857 = vpop.permute.xlu0 %856
  %858 = vrot.lane.b32.xlu0 %v827, 109
  %v859 = vpop.permute.xlu0 %858
  %860 = vrot.lane.b32.xlu0 %v828, 109
  %v861 = vpop.permute.xlu0 %860
  %862 = vrot.lane.b32.xlu0 %v829, 109
  %v863 = vpop.permute.xlu0 %862
  %864 = vrot.lane.b32.xlu0 %v830, 109
  %v865 = vpop.permute.xlu0 %864
  %866 = vrot.lane.b32.xlu0 %v831, 109
  %v867 = vpop.permute.xlu0 %866
  %868 = vrot.lane.b32.xlu0 %v832, 109
  %v869 = vpop.permute.xlu0 %868
  %870 = vrot.lane.b32.xlu0 %v833, 109
  %v871 = vpop.permute.xlu0 %870
  %872 = vrot.lane.b32.xlu0 %v834, 109
  %v873 = vpop.permute.xlu0 %872
  %874 = vrot.lane.b32.xlu0 %v835, 109
  %v875 = vpop.permute.xlu0 %874
  %876 = vrot.lane.b32.xlu0 %v836, 109
  %v877 = vpop.permute.xlu0 %876
  %878 = vrot.lane.b32.xlu0 %v837, 109
  %v879 = vpop.permute.xlu0 %878
  %vm880 = vcmask 891904
  %v881 = vsel %vm880, %v853, %v855
  %v882 = vsel %vm880, %v855, %v857
  %v883 = vsel %vm880, %v857, %v859
  %v884 = vsel %vm880, %v859, %v861
  %v885 = vsel %vm880, %v861, %v863
  %v886 = vsel %vm880, %v863, %v865
  %v887 = vsel %vm880, %v867, %v869
  %v888 = vsel %vm880, %v869, %v871
  %v889 = vsel %vm880, %v871, %v873
  %v890 = vsel %vm880, %v873, %v875
  %v891 = vsel %vm880, %v875, %v877
  %v892 = vsel %vm880, %v877, %v879
  %905 = vst [vmem:[#allocation3 + $0x300] sm:$0xff] %v881
  %906 = vst [vmem:[#allocation3 + $0x308] sm:$0xff] %v882
  %907 = vst [vmem:[#allocation3 + $0x310] sm:$0xff] %v883
  %908 = vst [vmem:[#allocation3 + $0x318] sm:$0xff] %v884
  %909 = vst [vmem:[#allocation3 + $0x320] sm:$0xff] %v885
  %910 = vst [vmem:[#allocation3 + $0x328] sm:$0xff] %v886
  %911 = vst [vmem:[#allocation3 + $0x330] sm:$0xff] %v887
  %912 = vst [vmem:[#allocation3 + $0x338] sm:$0xff] %v888
  %913 = vst [vmem:[#allocation3 + $0x340] sm:$0xff] %v889
  %914 = vst [vmem:[#allocation3 + $0x348] sm:$0xff] %v890
  %915 = vst [vmem:[#allocation3 + $0x350] sm:$0xff] %v891
  %916 = vst [vmem:[#allocation3 + $0x358] sm:$0xff] %v892
  %v917 = vld [vmem:[%s2] sm:$0xff]
  %v918 = vld [vmem:[%s2 + $0x8] sm:$0xf]
  %v919 = vld [vmem:[%s2 + $0xc] sm:$0xff]
  %v920 = vld [vmem:[%s2 + $0x14] sm:$0xf]
  %v921 = vld [vmem:[%s2 + $0x18] sm:$0xff]
  %v922 = vld [vmem:[%s2 + $0x20] sm:$0xf]
  %v923 = vld [vmem:[%s2 + $0x24] sm:$0xff]
  %v924 = vld [vmem:[%s2 + $0x2c] sm:$0xf]
  %v925 = vld [vmem:[#allocation3] sm:$0xff]
  %v926 = vld [vmem:[#allocation3 + $0x8] sm:$0xff]
  %v927 = vld [vmem:[#allocation3 + $0x10] sm:$0xff]
  %v928 = vld [vmem:[#allocation3 + $0x18] sm:$0xff]
  %v929 = vld [vmem:[#allocation3 + $0x20] sm:$0xff]
  %v930 = vld [vmem:[#allocation3 + $0x28] sm:$0xff]
  %v931 = vld [vmem:[#allocation3 + $0x30] sm:$0xff]
  %v932 = vld [vmem:[#allocation3 + $0x38] sm:$0xff]
  %v933 = vld [vmem:[#allocation3 + $0x40] sm:$0xff]
  %v934 = vld [vmem:[#allocation3 + $0x48] sm:$0xff]
  %v935 = vld [vmem:[#allocation3 + $0x50] sm:$0xff]
  %v936 = vld [vmem:[#allocation3 + $0x58] sm:$0xff]
  %v937 = vld [vmem:[#allocation3 + $0x60] sm:$0xff]
  %v938 = vld [vmem:[#allocation3 + $0x68] sm:$0xff]
  %v939 = vld [vmem:[#allocation3 + $0x70] sm:$0xff]
  %v940 = vld [vmem:[#allocation3 + $0x78] sm:$0xff]
  %v941 = vld [vmem:[#allocation3 + $0x80] sm:$0xff]
  %v942 = vld [vmem:[#allocation3 + $0x88] sm:$0xff]
  %v943 = vld [vmem:[#allocation3 + $0x90] sm:$0xff]
  %v944 = vld [vmem:[#allocation3 + $0x98] sm:$0xff]
  %v945 = vld [vmem:[#allocation3 + $0xa0] sm:$0xff]
  %v946 = vld [vmem:[#allocation3 + $0xa8] sm:$0xff]
  %v947 = vld [vmem:[#allocation3 + $0xb0] sm:$0xff]
  %v948 = vld [vmem:[#allocation3 + $0xb8] sm:$0xff]
  %v949 = vld [vmem:[#allocation3 + $0xc0] sm:$0xff]
  %v950 = vld [vmem:[#allocation3 + $0xc8] sm:$0xff]
  %v951 = vld [vmem:[#allocation3 + $0xd0] sm:$0xff]
  %v952 = vld [vmem:[#allocation3 + $0xd8] sm:$0xff]
  %v953 = vld [vmem:[#allocation3 + $0xe0] sm:$0xff]
  %v954 = vld [vmem:[#allocation3 + $0xe8] sm:$0xff]
  %v955 = vld [vmem:[#allocation3 + $0xf0] sm:$0xff]
  %v956 = vld [vmem:[#allocation3 + $0xf8] sm:$0xff]
  %v957 = vld [vmem:[#allocation3 + $0x100] sm:$0xff]
  %v958 = vld [vmem:[#allocation3 + $0x108] sm:$0xff]
  %v959 = vld [vmem:[#allocation3 + $0x110] sm:$0xff]
  %v960 = vld [vmem:[#allocation3 + $0x118] sm:$0xff]
  %v961 = vld [vmem:[#allocation3 + $0x120] sm:$0xff]
  %v962 = vld [vmem:[#allocation3 + $0x128] sm:$0xff]
  %v963 = vld [vmem:[#allocation3 + $0x130] sm:$0xff]
  %v964 = vld [vmem:[#allocation3 + $0x138] sm:$0xff]
  %v965 = vld [vmem:[#allocation3 + $0x140] sm:$0xff]
  %v966 = vld [vmem:[#allocation3 + $0x148] sm:$0xff]
  %v967 = vld [vmem:[#allocation3 + $0x150] sm:$0xff]
  %v968 = vld [vmem:[#allocation3 + $0x158] sm:$0xff]
  %v969 = vld [vmem:[#allocation3 + $0x160] sm:$0xff]
  %v970 = vld [vmem:[#allocation3 + $0x168] sm:$0xff]
  %v971 = vld [vmem:[#allocation3 + $0x170] sm:$0xff]
  %v972 = vld [vmem:[#allocation3 + $0x178] sm:$0xff]
  %v973 = vld [vmem:[#allocation3 + $0x180] sm:$0xff]
  %v974 = vld [vmem:[#allocation3 + $0x188] sm:$0xff]
  %v975 = vld [vmem:[#allocation3 + $0x190] sm:$0xff]
  %v976 = vld [vmem:[#allocation3 + $0x198] sm:$0xff]
  %v977 = vld [vmem:[#allocation3 + $0x1a0] sm:$0xff]
  %v978 = vld [vmem:[#allocation3 + $0x1a8] sm:$0xff]
  %v979 = vld [vmem:[#allocation3 + $0x1b0] sm:$0xff]
  %v980 = vld [vmem:[#allocation3 + $0x1b8] sm:$0xff]
  %v981 = vld [vmem:[#allocation3 + $0x1c0] sm:$0xff]
  %v982 = vld [vmem:[#allocation3 + $0x1c8] sm:$0xff]
  %v983 = vld [vmem:[#allocation3 + $0x1d0] sm:$0xff]
  %v984 = vld [vmem:[#allocation3 + $0x1d8] sm:$0xff]
  %v985 = vld [vmem:[#allocation3 + $0x1e0] sm:$0xff]
  %v986 = vld [vmem:[#allocation3 + $0x1e8] sm:$0xff]
  %v987 = vld [vmem:[#allocation3 + $0x1f0] sm:$0xff]
  %v988 = vld [vmem:[#allocation3 + $0x1f8] sm:$0xff]
  %v989 = vld [vmem:[#allocation3 + $0x200] sm:$0xff]
  %v990 = vld [vmem:[#allocation3 + $0x208] sm:$0xff]
  %v991 = vld [vmem:[#allocation3 + $0x210] sm:$0xff]
  %v992 = vld [vmem:[#allocation3 + $0x218] sm:$0xff]
  %v993 = vld [vmem:[#allocation3 + $0x220] sm:$0xff]
  %v994 = vld [vmem:[#allocation3 + $0x228] sm:$0xff]
  %v995 = vld [vmem:[#allocation3 + $0x230] sm:$0xff]
  %v996 = vld [vmem:[#allocation3 + $0x238] sm:$0xff]
  %v997 = vld [vmem:[#allocation3 + $0x240] sm:$0xff]
  %v998 = vld [vmem:[#allocation3 + $0x248] sm:$0xff]
  %v999 = vld [vmem:[#allocation3 + $0x250] sm:$0xff]
  %v1000 = vld [vmem:[#allocation3 + $0x258] sm:$0xff]
  %v1001 = vld [vmem:[#allocation3 + $0x260] sm:$0xff]
  %v1002 = vld [vmem:[#allocation3 + $0x268] sm:$0xff]
  %v1003 = vld [vmem:[#allocation3 + $0x270] sm:$0xff]
  %v1004 = vld [vmem:[#allocation3 + $0x278] sm:$0xff]
  %v1005 = vld [vmem:[#allocation3 + $0x280] sm:$0xff]
  %v1006 = vld [vmem:[#allocation3 + $0x288] sm:$0xff]
  %v1007 = vld [vmem:[#allocation3 + $0x290] sm:$0xff]
  %v1008 = vld [vmem:[#allocation3 + $0x298] sm:$0xff]
  %v1009 = vld [vmem:[#allocation3 + $0x2a0] sm:$0xff]
  %v1010 = vld [vmem:[#allocation3 + $0x2a8] sm:$0xff]
  %v1011 = vld [vmem:[#allocation3 + $0x2b0] sm:$0xff]
  %v1012 = vld [vmem:[#allocation3 + $0x2b8] sm:$0xff]
  %v1013 = vld [vmem:[#allocation3 + $0x2c0] sm:$0xff]
  %v1014 = vld [vmem:[#allocation3 + $0x2c8] sm:$0xff]
  %v1015 = vld [vmem:[#allocation3 + $0x2d0] sm:$0xff]
  %v1016 = vld [vmem:[#allocation3 + $0x2d8] sm:$0xff]
  %v1017 = vld [vmem:[#allocation3 + $0x2e0] sm:$0xff]
  %v1018 = vld [vmem:[#allocation3 + $0x2e8] sm:$0xff]
  %v1019 = vld [vmem:[#allocation3 + $0x2f0] sm:$0xff]
  %v1020 = vld [vmem:[#allocation3 + $0x2f8] sm:$0xff]
  %v1021 = vld [vmem:[#allocation3 + $0x300] sm:$0xff]
  %v1022 = vld [vmem:[#allocation3 + $0x308] sm:$0xff]
  %v1023 = vld [vmem:[#allocation3 + $0x310] sm:$0xff]
  %v1024 = vld [vmem:[#allocation3 + $0x318] sm:$0xff]
  %v1025 = vld [vmem:[#allocation3 + $0x320] sm:$0xff]
  %v1026 = vld [vmem:[#allocation3 + $0x328] sm:$0xff]
  %v1027 = vld [vmem:[#allocation3 + $0x330] sm:$0xff]
  %v1028 = vld [vmem:[#allocation3 + $0x338] sm:$0xff]
  %v1029 = vld [vmem:[#allocation3 + $0x340] sm:$0xff]
  %v1030 = vld [vmem:[#allocation3 + $0x348] sm:$0xff]
  %v1031 = vld [vmem:[#allocation3 + $0x350] sm:$0xff]
  %v1032 = vld [vmem:[#allocation3 + $0x358] sm:$0xff]
  %v1033 = vld [vmem:[%s3] sm:$0xff]
  %v1034 = vld [vmem:[%s3 + $0x8] sm:$0xff]
  %v1035 = vld [vmem:[%s3 + $0x10] sm:$0xff]
  %v1036 = vld [vmem:[%s3 + $0x18] sm:$0xff]
  %1038 = vset.pattern.permute.xlu0 0
  %1039 = vperm.xlu0 %1038, %v1033
  %v1040 = vpop.permute.xlu0 %1039
  %1043 = vset.pattern.permute.xlu0 0
  %1044 = vperm.xlu0 %1043, %v1034
  %v1045 = vpop.permute.xlu0 %1044
  %1048 = vset.pattern.permute.xlu0 0
  %1049 = vperm.xlu0 %1048, %v1035
  %v1050 = vpop.permute.xlu0 %1049
  %1053 = vset.pattern.permute.xlu0 0
  %1054 = vperm.xlu0 %1053, %v1036
  %v1055 = vpop.permute.xlu0 %1054
  %v1065 = vunpack.c.l.b16 %v917
  %v1066 = vunpack.c.h.b16 %v917
  %v1067 = vunpack.c.l.b16 %v918
  %v1068 = vunpack.c.l.b16 %v919
  %v1069 = vunpack.c.h.b16 %v919
  %v1070 = vunpack.c.l.b16 %v920
  %v1071 = vunpack.c.l.b16 %v921
  %v1072 = vunpack.c.h.b16 %v921
  %v1073 = vunpack.c.l.b16 %v922
  %v1074 = vunpack.c.l.b16 %v923
  %v1075 = vunpack.c.h.b16 %v923
  %v1076 = vunpack.c.l.b16 %v924
  %v1077 = vpack.c.b16 %v1068, %v1065
  %v1078 = vpack.c.b16 %v1069, %v1066
  %v1079 = vpack.c.b16 %v1070, %v1067
  %v1080 = vpack.c.b16 %v1074, %v1071
  %v1081 = vpack.c.b16 %v1075, %v1072
  %v1082 = vpack.c.b16 %v1076, %v1073
  %vm1087 = vcmask 261120
  %v1089 = vsel %vm1087, %v1079, 0
  %v1092 = vsel %vm1087, %v1082, 0
  %1094 = vmatprep.subr.bf16.mxu0 %v926
  %1095 = vmatpush1.bf16.msra.mxu0 %v925
  %1096 = vmatprep.subr.bf16.mxu0 %v932
  %1097 = vmatpush1.bf16.msra.mxu0 %v931
  %1098 = vmatprep.subr.bf16.mxu0 %v938
  %1099 = vmatpush1.bf16.msra.mxu0 %v937
  %1100 = vmatprep.subr.bf16.mxu0 %v944
  %1101 = vmatpush1.bf16.msra.mxu0 %v943
  %1102 = vmatprep.subr.bf16.mxu0 %v950
  %1103 = vmatpush1.bf16.msra.mxu0 %v949
  %1104 = vmatprep.subr.bf16.mxu0 %v956
  %1105 = vmatpush1.bf16.msra.mxu0 %v955
  %1106 = vmatprep.subr.bf16.mxu0 %v962
  %1107 = vmatpush1.bf16.msra.mxu0 %v961
  %1108 = vmatprep.subr.bf16.mxu0 %v968
  %1109 = vmatpush1.bf16.msra.mxu0 %v967
  %1110 = vmatprep.subr.bf16.mxu0 %v974
  %1111 = vmatpush1.bf16.msra.mxu0 %v973
  %1112 = vmatprep.subr.bf16.mxu0 %v980
  %1113 = vmatpush1.bf16.msra.mxu0 %v979
  %1114 = vmatprep.subr.bf16.mxu0 %v986
  %1115 = vmatpush1.bf16.msra.mxu0 %v985
  %1116 = vmatprep.subr.bf16.mxu0 %v992
  %1117 = vmatpush1.bf16.msra.mxu0 %v991
  %1118 = vmatprep.subr.bf16.mxu0 %v998
  %1119 = vmatpush1.bf16.msra.mxu0 %v997
  %1120 = vmatprep.subr.bf16.mxu0 %v1004
  %1121 = vmatpush1.bf16.msra.mxu0 %v1003
  %1122 = vmatprep.subr.bf16.mxu0 %v1010
  %1123 = vmatpush1.bf16.msra.mxu0 %v1009
  %1124 = vmatprep.subr.bf16.mxu0 %v1016
  %1125 = vmatpush1.bf16.msra.mxu0 %v1015
  %1126 = vmatprep.mubr.bf16.mxu0 %v1078
  %1127 = vmatmul.mubr.bf16.gmra.mrb[0].mxu0 %v1077
  %v1128 = vpop.f32.mrb[0].mxu0
  %v1129 = vadd.f32 %v1040, %v1128
  %v1130 = vpop.f32.mrb[0].mxu0
  %v1131 = vadd.f32 %v1040, %v1130
  %v1132 = vpop.f32.mrb[0].mxu0
  %v1133 = vadd.f32 %v1045, %v1132
  %v1134 = vpop.f32.mrb[0].mxu0
  %v1135 = vadd.f32 %v1045, %v1134
  %1136 = vmatprep.mubr.bf16.mxu0 %v1081
  %1137 = vmatmul.mubr.bf16.gmra.mrb[0].mxu0 %v1080
  %v1138 = vpop.f32.mrb[0].mxu0
  %v1139 = vadd.f32 %v1050, %v1138
  %v1140 = vpop.f32.mrb[0].mxu0
  %v1141 = vadd.f32 %v1050, %v1140
  %v1142 = vpop.f32.mrb[0].mxu0
  %v1143 = vadd.f32 %v1055, %v1142
  %v1144 = vpop.f32.mrb[0].mxu0
  %v1145 = vadd.f32 %v1055, %v1144
  %1146 = vdwg.mxu0
  %1147 = vmatprep.subr.bf16.mxu0 %v1022
  %1148 = vmatpush1.bf16.msra.mxu0 %v1021
  %1149 = vmatprep.subr.bf16.mxu0 %v1028
  %1150 = vmatpush1.bf16.msra.mxu0 %v1027
  %1151 = vmatprep.subr.bf16.mxu0 0
  %1152 = vmatpush1.bf16.msra.mxu0 0
  %1153 = vmatprep.subr.bf16.mxu0 0
  %1154 = vmatpush1.bf16.msra.mxu0 0
  %1155 = vmatprep.subr.bf16.mxu0 0
  %1156 = vmatpush1.bf16.msra.mxu0 0
  %1157 = vmatprep.subr.bf16.mxu0 0
  %1158 = vmatpush1.bf16.msra.mxu0 0
  %1159 = vmatprep.subr.bf16.mxu0 0
  %1160 = vmatpush1.bf16.msra.mxu0 0
  %1161 = vmatprep.subr.bf16.mxu0 0
  %1162 = vmatpush1.bf16.msra.mxu0 0
  %1163 = vmatprep.subr.bf16.mxu0 0
  %1164 = vmatpush1.bf16.msra.mxu0 0
  %1165 = vmatprep.subr.bf16.mxu0 0
  %1166 = vmatpush1.bf16.msra.mxu0 0
  %1167 = vmatprep.subr.bf16.mxu0 0
  %1168 = vmatpush1.bf16.msra.mxu0 0
  %1169 = vmatprep.subr.bf16.mxu0 0
  %1170 = vmatpush1.bf16.msra.mxu0 0
  %1171 = vmatprep.subr.bf16.mxu0 0
  %1172 = vmatpush1.bf16.msra.mxu0 0
  %1173 = vmatprep.subr.bf16.mxu0 0
  %1174 = vmatpush1.bf16.msra.mxu0 0
  %1175 = vmatprep.subr.bf16.mxu0 0
  %1176 = vmatpush1.bf16.msra.mxu0 0
  %1177 = vmatprep.subr.bf16.mxu0 0
  %1178 = vmatpush1.bf16.msra.mxu0 0
  %1179 = vmatprep.mubr.bf16.mxu0 0
  %1180 = vmatmul.mubr.bf16.gmra.mrb[0].mxu0 %v1089
  %v1181 = vpop.f32.mrb[0].mxu0
  %v1182 = vadd.f32 %v1129, %v1181
  %v1183 = vpop.f32.mrb[0].mxu0
  %v1184 = vadd.f32 %v1131, %v1183
  %v1185 = vpop.f32.mrb[0].mxu0
  %v1186 = vadd.f32 %v1133, %v1185
  %v1187 = vpop.f32.mrb[0].mxu0
  %v1188 = vadd.f32 %v1135, %v1187
  %1189 = vmatprep.mubr.bf16.mxu0 0
  %1190 = vmatmul.mubr.bf16.gmra.mrb[0].mxu0 %v1092
  %v1191 = vpop.f32.mrb[0].mxu0
  %v1192 = vadd.f32 %v1139, %v1191
  %v1193 = vpop.f32.mrb[0].mxu0
  %v1194 = vadd.f32 %v1141, %v1193
  %v1195 = vpop.f32.mrb[0].mxu0
  %v1196 = vadd.f32 %v1143, %v1195
  %v1197 = vpop.f32.mrb[0].mxu0
  %v1198 = vadd.f32 %v1145, %v1197
  %1199 = vdwg.mxu0
  %1200 = vmatprep.subr.bf16.mxu0 %v928
  %1201 = vmatpush1.bf16.msra.mxu0 %v927
  %1202 = vmatprep.subr.bf16.mxu0 %v934
  %1203 = vmatpush1.bf16.msra.mxu0 %v933
  %1204 = vmatprep.subr.bf16.mxu0 %v940
  %1205 = vmatpush1.bf16.msra.mxu0 %v939
  %1206 = vmatprep.subr.bf16.mxu0 %v946
  %1207 = vmatpush1.bf16.msra.mxu0 %v945
  %1208 = vmatprep.subr.bf16.mxu0 %v952
  %1209 = vmatpush1.bf16.msra.mxu0 %v951
  %1210 = vmatprep.subr.bf16.mxu0 %v958
  %1211 = vmatpush1.bf16.msra.mxu0 %v957
  %1212 = vmatprep.subr.bf16.mxu0 %v964
  %1213 = vmatpush1.bf16.msra.mxu0 %v963
  %1214 = vmatprep.subr.bf16.mxu0 %v970
  %1215 = vmatpush1.bf16.msra.mxu0 %v969
  %1216 = vmatprep.subr.bf16.mxu0 %v976
  %1217 = vmatpush1.bf16.msra.mxu0 %v975
  %1218 = vmatprep.subr.bf16.mxu0 %v982
  %1219 = vmatpush1.bf16.msra.mxu0 %v981
  %1220 = vmatprep.subr.bf16.mxu0 %v988
  %1221 = vmatpush1.bf16.msra.mxu0 %v987
  %1222 = vmatprep.subr.bf16.mxu0 %v994
  %1223 = vmatpush1.bf16.msra.mxu0 %v993
  %1224 = vmatprep.subr.bf16.mxu0 %v1000
  %1225 = vmatpush1.bf16.msra.mxu0 %v999
  %1226 = vmatprep.subr.bf16.mxu0 %v1006
  %1227 = vmatpush1.bf16.msra.mxu0 %v1005
  %1228 = vmatprep.subr.bf16.mxu0 %v1012
  %1229 = vmatpush1.bf16.msra.mxu0 %v1011
  %1230 = vmatprep.subr.bf16.mxu0 %v1018
  %1231 = vmatpush1.bf16.msra.mxu0 %v1017
  %1232 = vmatprep.mubr.bf16.mxu0 %v1078
  %1233 = vmatmul.mubr.bf16.gmra.mrb[0].mxu0 %v1077
  %v1234 = vpop.f32.mrb[0].mxu0
  %v1235 = vadd.f32 %v1040, %v1234
  %v1236 = vpop.f32.mrb[0].mxu0
  %v1237 = vadd.f32 %v1040, %v1236
  %v1238 = vpop.f32.mrb[0].mxu0
  %v1239 = vadd.f32 %v1045, %v1238
  %v1240 = vpop.f32.mrb[0].mxu0
  %v1241 = vadd.f32 %v1045, %v1240
  %1242 = vmatprep.mubr.bf16.mxu0 %v1081
  %1243 = vmatmul.mubr.bf16.gmra.mrb[0].mxu0 %v1080
  %v1244 = vpop.f32.mrb[0].mxu0
  %v1245 = vadd.f32 %v1050, %v1244
  %v1246 = vpop.f32.mrb[0].mxu0
  %v1247 = vadd.f32 %v1050, %v1246
  %v1248 = vpop.f32.mrb[0].mxu0
  %v1249 = vadd.f32 %v1055, %v1248
  %v1250 = vpop.f32.mrb[0].mxu0
  %v1251 = vadd.f32 %v1055, %v1250
  %1252 = vdwg.mxu0
  %1253 = vmatprep.subr.bf16.mxu0 %v1024
  %1254 = vmatpush1.bf16.msra.mxu0 %v1023
  %1255 = vmatprep.subr.bf16.mxu0 %v1030
  %1256 = vmatpush1.bf16.msra.mxu0 %v1029
  %1257 = vmatprep.subr.bf16.mxu0 0
  %1258 = vmatpush1.bf16.msra.mxu0 0
  %1259 = vmatprep.subr.bf16.mxu0 0
  %1260 = vmatpush1.bf16.msra.mxu0 0
  %1261 = vmatprep.subr.bf16.mxu0 0
  %1262 = vmatpush1.bf16.msra.mxu0 0
  %1263 = vmatprep.subr.bf16.mxu0 0
  %1264 = vmatpush1.bf16.msra.mxu0 0
  %1265 = vmatprep.subr.bf16.mxu0 0
  %1266 = vmatpush1.bf16.msra.mxu0 0
  %1267 = vmatprep.subr.bf16.mxu0 0
  %1268 = vmatpush1.bf16.msra.mxu0 0
  %1269 = vmatprep.subr.bf16.mxu0 0
  %1270 = vmatpush1.bf16.msra.mxu0 0
  %1271 = vmatprep.subr.bf16.mxu0 0
  %1272 = vmatpush1.bf16.msra.mxu0 0
  %1273 = vmatprep.subr.bf16.mxu0 0
  %1274 = vmatpush1.bf16.msra.mxu0 0
  %1275 = vmatprep.subr.bf16.mxu0 0
  %1276 = vmatpush1.bf16.msra.mxu0 0
  %1277 = vmatprep.subr.bf16.mxu0 0
  %1278 = vmatpush1.bf16.msra.mxu0 0
  %1279 = vmatprep.subr.bf16.mxu0 0
  %1280 = vmatpush1.bf16.msra.mxu0 0
  %1281 = vmatprep.subr.bf16.mxu0 0
  %1282 = vmatpush1.bf16.msra.mxu0 0
  %1283 = vmatprep.subr.bf16.mxu0 0
  %1284 = vmatpush1.bf16.msra.mxu0 0
  %1285 = vmatprep.mubr.bf16.mxu0 0
  %1286 = vmatmul.mubr.bf16.gmra.mrb[0].mxu0 %v1089
  %v1287 = vpop.f32.mrb[0].mxu0
  %v1288 = vadd.f32 %v1235, %v1287
  %v1289 = vpop.f32.mrb[0].mxu0
  %v1290 = vadd.f32 %v1237, %v1289
  %v1291 = vpop.f32.mrb[0].mxu0
  %v1292 = vadd.f32 %v1239, %v1291
  %v1293 = vpop.f32.mrb[0].mxu0
  %v1294 = vadd.f32 %v1241, %v1293
  %1295 = vmatprep.mubr.bf16.mxu0 0
  %1296 = vmatmul.mubr.bf16.gmra.mrb[0].mxu0 %v1092
  %v1297 = vpop.f32.mrb[0].mxu0
  %v1298 = vadd.f32 %v1245, %v1297
  %v1299 = vpop.f32.mrb[0].mxu0
  %v1300 = vadd.f32 %v1247, %v1299
  %v1301 = vpop.f32.mrb[0].mxu0
  %v1302 = vadd.f32 %v1249, %v1301
  %v1303 = vpop.f32.mrb[0].mxu0
  %v1304 = vadd.f32 %v1251, %v1303
  %1305 = vdwg.mxu0
  %1306 = vmatprep.subr.bf16.mxu0 %v930
  %1307 = vmatpush1.bf16.msra.mxu0 %v929
  %1308 = vmatprep.subr.bf16.mxu0 %v936
  %1309 = vmatpush1.bf16.msra.mxu0 %v935
  %1310 = vmatprep.subr.bf16.mxu0 %v942
  %1311 = vmatpush1.bf16.msra.mxu0 %v941
  %1312 = vmatprep.subr.bf16.mxu0 %v948
  %1313 = vmatpush1.bf16.msra.mxu0 %v947
  %1314 = vmatprep.subr.bf16.mxu0 %v954
  %1315 = vmatpush1.bf16.msra.mxu0 %v953
  %1316 = vmatprep.subr.bf16.mxu0 %v960
  %1317 = vmatpush1.bf16.msra.mxu0 %v959
  %1318 = vmatprep.subr.bf16.mxu0 %v966
  %1319 = vmatpush1.bf16.msra.mxu0 %v965
  %1320 = vmatprep.subr.bf16.mxu0 %v972
  %1321 = vmatpush1.bf16.msra.mxu0 %v971
  %1322 = vmatprep.subr.bf16.mxu0 %v978
  %1323 = vmatpush1.bf16.msra.mxu0 %v977
  %1324 = vmatprep.subr.bf16.mxu0 %v984
  %1325 = vmatpush1.bf16.msra.mxu0 %v983
  %1326 = vmatprep.subr.bf16.mxu0 %v990
  %1327 = vmatpush1.bf16.msra.mxu0 %v989
  %1328 = vmatprep.subr.bf16.mxu0 %v996
  %1329 = vmatpush1.bf16.msra.mxu0 %v995
  %1330 = vmatprep.subr.bf16.mxu0 %v1002
  %1331 = vmatpush1.bf16.msra.mxu0 %v1001
  %1332 = vmatprep.subr.bf16.mxu0 %v1008
  %1333 = vmatpush1.bf16.msra.mxu0 %v1007
  %1334 = vmatprep.subr.bf16.mxu0 %v1014
  %1335 = vmatpush1.bf16.msra.mxu0 %v1013
  %1336 = vmatprep.subr.bf16.mxu0 %v1020
  %1337 = vmatpush1.bf16.msra.mxu0 %v1019
  %1338 = vmatprep.mubr.bf16.mxu0 %v1078
  %1339 = vmatmul.mubr.bf16.gmra.mrb[0].mxu0 %v1077
  %v1340 = vpop.f32.mrb[0].mxu0
  %v1341 = vadd.f32 %v1040, %v1340
  %v1342 = vpop.f32.mrb[0].mxu0
  %v1343 = vadd.f32 %v1040, %v1342
  %v1344 = vpop.f32.mrb[0].mxu0
  %v1345 = vadd.f32 %v1045, %v1344
  %v1346 = vpop.f32.mrb[0].mxu0
  %v1347 = vadd.f32 %v1045, %v1346
  %1348 = vmatprep.mubr.bf16.mxu0 %v1081
  %1349 = vmatmul.mubr.bf16.gmra.mrb[0].mxu0 %v1080
  %v1350 = vpop.f32.mrb[0].mxu0
  %v1351 = vadd.f32 %v1050, %v1350
  %v1352 = vpop.f32.mrb[0].mxu0
  %v1353 = vadd.f32 %v1050, %v1352
  %v1354 = vpop.f32.mrb[0].mxu0
  %v1355 = vadd.f32 %v1055, %v1354
  %v1356 = vpop.f32.mrb[0].mxu0
  %v1357 = vadd.f32 %v1055, %v1356
  %1358 = vdwg.mxu0
  %1359 = vmatprep.subr.bf16.mxu0 %v1026
  %1360 = vmatpush1.bf16.msra.mxu0 %v1025
  %1361 = vmatprep.subr.bf16.mxu0 %v1032
  %1362 = vmatpush1.bf16.msra.mxu0 %v1031
  %1363 = vmatprep.subr.bf16.mxu0 0
  %1364 = vmatpush1.bf16.msra.mxu0 0
  %1365 = vmatprep.subr.bf16.mxu0 0
  %1366 = vmatpush1.bf16.msra.mxu0 0
  %1367 = vmatprep.subr.bf16.mxu0 0
  %1368 = vmatpush1.bf16.msra.mxu0 0
  %1369 = vmatprep.subr.bf16.mxu0 0
  %1370 = vmatpush1.bf16.msra.mxu0 0
  %1371 = vmatprep.subr.bf16.mxu0 0
  %1372 = vmatpush1.bf16.msra.mxu0 0
  %1373 = vmatprep.subr.bf16.mxu0 0
  %1374 = vmatpush1.bf16.msra.mxu0 0
  %1375 = vmatprep.subr.bf16.mxu0 0
  %1376 = vmatpush1.bf16.msra.mxu0 0
  %1377 = vmatprep.subr.bf16.mxu0 0
  %1378 = vmatpush1.bf16.msra.mxu0 0
  %1379 = vmatprep.subr.bf16.mxu0 0
  %1380 = vmatpush1.bf16.msra.mxu0 0
  %1381 = vmatprep.subr.bf16.mxu0 0
  %1382 = vmatpush1.bf16.msra.mxu0 0
  %1383 = vmatprep.subr.bf16.mxu0 0
  %1384 = vmatpush1.bf16.msra.mxu0 0
  %1385 = vmatprep.subr.bf16.mxu0 0
  %1386 = vmatpush1.bf16.msra.mxu0 0
  %1387 = vmatprep.subr.bf16.mxu0 0
  %1388 = vmatpush1.bf16.msra.mxu0 0
  %1389 = vmatprep.subr.bf16.mxu0 0
  %1390 = vmatpush1.bf16.msra.mxu0 0
  %1391 = vmatprep.mubr.bf16.mxu0 0
  %1392 = vmatmul.mubr.bf16.gmra.mrb[0].mxu0 %v1089
  %v1393 = vpop.f32.mrb[0].mxu0
  %v1394 = vadd.f32 %v1341, %v1393
  %v1395 = vpop.f32.mrb[0].mxu0
  %v1396 = vadd.f32 %v1343, %v1395
  %v1397 = vpop.f32.mrb[0].mxu0
  %v1398 = vadd.f32 %v1345, %v1397
  %v1399 = vpop.f32.mrb[0].mxu0
  %v1400 = vadd.f32 %v1347, %v1399
  %1401 = vmatprep.mubr.bf16.mxu0 0
  %1402 = vmatmul.mubr.bf16.gmra.mrb[0].mxu0 %v1092
  %v1403 = vpop.f32.mrb[0].mxu0
  %v1404 = vadd.f32 %v1351, %v1403
  %v1405 = vpop.f32.mrb[0].mxu0
  %v1406 = vadd.f32 %v1353, %v1405
  %v1407 = vpop.f32.mrb[0].mxu0
  %v1408 = vadd.f32 %v1355, %v1407
  %v1409 = vpop.f32.mrb[0].mxu0
  %v1410 = vadd.f32 %v1357, %v1409
  %1411 = vdwg.mxu0
  %v1412 = vmax.f32 %v1182, 0.0
  %v1413 = vmax.f32 %v1184, 0.0
  %v1414 = vmax.f32 %v1288, 0.0
  %v1415 = vmax.f32 %v1290, 0.0
  %v1416 = vmax.f32 %v1394, 0.0
  %v1417 = vmax.f32 %v1396, 0.0
  %v1418 = vmax.f32 %v1186, 0.0
  %v1419 = vmax.f32 %v1188, 0.0
  %v1420 = vmax.f32 %v1292, 0.0
  %v1421 = vmax.f32 %v1294, 0.0
  %v1422 = vmax.f32 %v1398, 0.0
  %v1423 = vmax.f32 %v1400, 0.0
  %v1424 = vmax.f32 %v1192, 0.0
  %v1425 = vmax.f32 %v1194, 0.0
  %v1426 = vmax.f32 %v1298, 0.0
  %v1427 = vmax.f32 %v1300, 0.0
  %v1428 = vmax.f32 %v1404, 0.0
  %v1429 = vmax.f32 %v1406, 0.0
  %v1430 = vmax.f32 %v1196, 0.0
  %v1431 = vmax.f32 %v1198, 0.0
  %v1432 = vmax.f32 %v1302, 0.0
  %v1433 = vmax.f32 %v1304, 0.0
  %v1434 = vmax.f32 %v1408, 0.0
  %v1435 = vmax.f32 %v1410, 0.0
  %v1436 = vld [vmem:[%s4] sm:$0xff]
  %v1437 = vld [vmem:[%s4 + $0x8] sm:$0xff]
  %v1438 = vld [vmem:[%s4 + $0x10] sm:$0xff]
  %v1439 = vld [vmem:[%s4 + $0x18] sm:$0xff]
  %v1440 = vld [vmem:[%s5] sm:$0xff]
  %v1441 = vld [vmem:[%s5 + $0x8] sm:$0xff]
  %v1442 = vld [vmem:[%s5 + $0x10] sm:$0xff]
  %v1443 = vld [vmem:[%s5 + $0x18] sm:$0xff]
  %v1445 = vlaneseq
  %v1446 = vshrl.u32 %v1445, 7
  %v1447 = vsub.s32 0, %v1446
  %v1448 = vrot.slane %v36, %v1447
  %v1449 = vlaneseq
  %v1450 = vshrl.u32 %v1449, 7
  %v1451 = vsub.s32 1, %v1450
  %v1452 = vrot.slane %v36, %v1451
  %v1453 = vlaneseq
  %v1454 = vshrl.u32 %v1453, 7
  %v1455 = vsub.s32 2, %v1454
  %v1456 = vrot.slane %v36, %v1455
  %v1457 = vlaneseq
  %v1458 = vshrl.u32 %v1457, 7
  %v1459 = vsub.s32 3, %v1458
  %v1460 = vrot.slane %v36, %v1459
  %v1461 = vlaneseq
  %v1462 = vshrl.u32 %v1461, 7
  %v1463 = vsub.s32 4, %v1462
  %v1464 = vrot.slane %v36, %v1463
  %v1465 = vlaneseq
  %v1466 = vshrl.u32 %v1465, 7
  %v1467 = vsub.s32 5, %v1466
  %v1468 = vrot.slane %v36, %v1467
  %v1475 = vmul.f32 %v1412, %v1448
  %v1476 = vmul.f32 %v1413, %v1452
  %v1477 = vmul.f32 %v1414, %v1456
  %v1478 = vmul.f32 %v1415, %v1460
  %v1479 = vmul.f32 %v1416, %v1464
  %v1480 = vmul.f32 %v1417, %v1468
  %v1481 = vmul.f32 %v1418, %v1448
  %v1482 = vmul.f32 %v1419, %v1452
  %v1483 = vmul.f32 %v1420, %v1456
  %v1484 = vmul.f32 %v1421, %v1460
  %v1485 = vmul.f32 %v1422, %v1464
  %v1486 = vmul.f32 %v1423, %v1468
  %v1487 = vmul.f32 %v1424, %v1448
  %v1488 = vmul.f32 %v1425, %v1452
  %v1489 = vmul.f32 %v1426, %v1456
  %v1490 = vmul.f32 %v1427, %v1460
  %v1491 = vmul.f32 %v1428, %v1464
  %v1492 = vmul.f32 %v1429, %v1468
  %v1493 = vmul.f32 %v1430, %v1448
  %v1494 = vmul.f32 %v1431, %v1452
  %v1495 = vmul.f32 %v1432, %v1456
  %v1496 = vmul.f32 %v1433, %v1460
  %v1497 = vmul.f32 %v1434, %v1464
  %v1498 = vmul.f32 %v1435, %v1468
  %v1499 = vadd.f32 %v1475, %v1476
  %v1500 = vadd.f32 %v1499, %v1477
  %v1501 = vadd.f32 %v1500, %v1478
  %v1502 = vadd.f32 %v1501, %v1479
  %v1503 = vadd.f32 %v1502, %v1480
  %1504 = vadd.xlane.f32.xlu0 %v1503
  %v1505 = vpop.xlane.xlu0 %1504
  %v1506 = vadd.f32 %v1481, %v1482
  %v1507 = vadd.f32 %v1506, %v1483
  %v1508 = vadd.f32 %v1507, %v1484
  %v1509 = vadd.f32 %v1508, %v1485
  %v1510 = vadd.f32 %v1509, %v1486
  %1511 = vadd.xlane.f32.xlu0 %v1510
  %v1512 = vpop.xlane.xlu0 %1511
  %v1513 = vadd.f32 %v1487, %v1488
  %v1514 = vadd.f32 %v1513, %v1489
  %v1515 = vadd.f32 %v1514, %v1490
  %v1516 = vadd.f32 %v1515, %v1491
  %v1517 = vadd.f32 %v1516, %v1492
  %1518 = vadd.xlane.f32.xlu0 %v1517
  %v1519 = vpop.xlane.xlu0 %1518
  %v1520 = vadd.f32 %v1493, %v1494
  %v1521 = vadd.f32 %v1520, %v1495
  %v1522 = vadd.f32 %v1521, %v1496
  %v1523 = vadd.f32 %v1522, %v1497
  %v1524 = vadd.f32 %v1523, %v1498
  %1525 = vadd.xlane.f32.xlu0 %v1524
  %v1526 = vpop.xlane.xlu0 %1525
  %v1527 = vmul.f32 %v1475, %v1412
  %v1528 = vmul.f32 %v1476, %v1413
  %v1529 = vmul.f32 %v1477, %v1414
  %v1530 = vmul.f32 %v1478, %v1415
  %v1531 = vmul.f32 %v1479, %v1416
  %v1532 = vmul.f32 %v1480, %v1417
  %v1533 = vmul.f32 %v1481, %v1418
  %v1534 = vmul.f32 %v1482, %v1419
  %v1535 = vmul.f32 %v1483, %v1420
  %v1536 = vmul.f32 %v1484, %v1421
  %v1537 = vmul.f32 %v1485, %v1422
  %v1538 = vmul.f32 %v1486, %v1423
  %v1539 = vmul.f32 %v1487, %v1424
  %v1540 = vmul.f32 %v1488, %v1425
  %v1541 = vmul.f32 %v1489, %v1426
  %v1542 = vmul.f32 %v1490, %v1427
  %v1543 = vmul.f32 %v1491, %v1428
  %v1544 = vmul.f32 %v1492, %v1429
  %v1545 = vmul.f32 %v1493, %v1430
  %v1546 = vmul.f32 %v1494, %v1431
  %v1547 = vmul.f32 %v1495, %v1432
  %v1548 = vmul.f32 %v1496, %v1433
  %v1549 = vmul.f32 %v1497, %v1434
  %v1550 = vmul.f32 %v1498, %v1435
  %v1551 = vadd.f32 %v1527, %v1528
  %v1552 = vadd.f32 %v1551, %v1529
  %v1553 = vadd.f32 %v1552, %v1530
  %v1554 = vadd.f32 %v1553, %v1531
  %v1555 = vadd.f32 %v1554, %v1532
  %1556 = vadd.xlane.f32.xlu0 %v1555
  %v1557 = vpop.xlane.xlu0 %1556
  %v1558 = vadd.f32 %v1533, %v1534
  %v1559 = vadd.f32 %v1558, %v1535
  %v1560 = vadd.f32 %v1559, %v1536
  %v1561 = vadd.f32 %v1560, %v1537
  %v1562 = vadd.f32 %v1561, %v1538
  %1563 = vadd.xlane.f32.xlu0 %v1562
  %v1564 = vpop.xlane.xlu0 %1563
  %v1565 = vadd.f32 %v1539, %v1540
  %v1566 = vadd.f32 %v1565, %v1541
  %v1567 = vadd.f32 %v1566, %v1542
  %v1568 = vadd.f32 %v1567, %v1543
  %v1569 = vadd.f32 %v1568, %v1544
  %1570 = vadd.xlane.f32.xlu0 %v1569
  %v1571 = vpop.xlane.xlu0 %1570
  %v1572 = vadd.f32 %v1545, %v1546
  %v1573 = vadd.f32 %v1572, %v1547
  %v1574 = vadd.f32 %v1573, %v1548
  %v1575 = vadd.f32 %v1574, %v1549
  %v1576 = vadd.f32 %v1575, %v1550
  %1577 = vadd.xlane.f32.xlu0 %v1576
  %v1578 = vpop.xlane.xlu0 %1577
  %v1579 = vmul.f32 %v1505, 0.001953125
  %v1580 = vmul.f32 %v1512, 0.001953125
  %v1581 = vmul.f32 %v1519, 0.001953125
  %v1582 = vmul.f32 %v1526, 0.001953125
  %v1583 = vmul.f32 %v1557, 0.001953125
  %v1584 = vmul.f32 %v1564, 0.001953125
  %v1585 = vmul.f32 %v1571, 0.001953125
  %v1586 = vmul.f32 %v1578, 0.001953125
  %v1587 = vmul.f32 %v1579, %v1579
  %v1588 = vmul.f32 %v1580, %v1580
  %v1589 = vmul.f32 %v1581, %v1581
  %v1590 = vmul.f32 %v1582, %v1582
  %v1591 = vsub.f32 %v1583, %v1587
  %v1592 = vsub.f32 %v1584, %v1588
  %v1593 = vsub.f32 %v1585, %v1589
  %v1594 = vsub.f32 %v1586, %v1590
  %v1595 = vmax.f32 %v1591, 0.0
  %v1596 = vmax.f32 %v1592, 0.0
  %v1597 = vmax.f32 %v1593, 0.0
  %v1598 = vmax.f32 %v1594, 0.0
  %v1599 = vadd.f32 %v1595, 1e-05
  %v1600 = vadd.f32 %v1596, 1e-05
  %v1601 = vadd.f32 %v1597, 1e-05
  %v1602 = vadd.f32 %v1598, 1e-05
  %v1603 = vrsqrt.pop %v1599
  %v1604 = vrsqrt.pop %v1600
  %v1605 = vrsqrt.pop %v1601
  %v1606 = vrsqrt.pop %v1602
  %v1607 = vmul.f32 %v1436, %v1603
  %v1608 = vmul.f32 %v1437, %v1604
  %v1609 = vmul.f32 %v1438, %v1605
  %v1610 = vmul.f32 %v1439, %v1606
  %v1611 = vmul.f32 %v1579, %v1607
  %v1612 = vmul.f32 %v1580, %v1608
  %v1613 = vmul.f32 %v1581, %v1609
  %v1614 = vmul.f32 %v1582, %v1610
  %v1615 = vsub.f32 %v1440, %v1611
  %v1616 = vsub.f32 %v1441, %v1612
  %v1617 = vsub.f32 %v1442, %v1613
  %v1618 = vsub.f32 %v1443, %v1614
  %1620 = vset.pattern.permute.xlu0 0
  %1621 = vperm.xlu0 %1620, %v1607
  %v1622 = vpop.permute.xlu0 %1621
  %1625 = vset.pattern.permute.xlu0 0
  %1626 = vperm.xlu0 %1625, %v1608
  %v1627 = vpop.permute.xlu0 %1626
  %1630 = vset.pattern.permute.xlu0 0
  %1631 = vperm.xlu0 %1630, %v1609
  %v1632 = vpop.permute.xlu0 %1631
  %1635 = vset.pattern.permute.xlu0 0
  %1636 = vperm.xlu0 %1635, %v1610
  %v1637 = vpop.permute.xlu0 %1636
  %v1639 = vmul.f32 %v1475, %v1622
  %v1640 = vmul.f32 %v1476, %v1622
  %v1641 = vmul.f32 %v1477, %v1622
  %v1642 = vmul.f32 %v1478, %v1622
  %v1643 = vmul.f32 %v1479, %v1622
  %v1644 = vmul.f32 %v1480, %v1622
  %v1645 = vmul.f32 %v1481, %v1627
  %v1646 = vmul.f32 %v1482, %v1627
  %v1647 = vmul.f32 %v1483, %v1627
  %v1648 = vmul.f32 %v1484, %v1627
  %v1649 = vmul.f32 %v1485, %v1627
  %v1650 = vmul.f32 %v1486, %v1627
  %v1651 = vmul.f32 %v1487, %v1632
  %v1652 = vmul.f32 %v1488, %v1632
  %v1653 = vmul.f32 %v1489, %v1632
  %v1654 = vmul.f32 %v1490, %v1632
  %v1655 = vmul.f32 %v1491, %v1632
  %v1656 = vmul.f32 %v1492, %v1632
  %v1657 = vmul.f32 %v1493, %v1637
  %v1658 = vmul.f32 %v1494, %v1637
  %v1659 = vmul.f32 %v1495, %v1637
  %v1660 = vmul.f32 %v1496, %v1637
  %v1661 = vmul.f32 %v1497, %v1637
  %v1662 = vmul.f32 %v1498, %v1637
  %1664 = vset.pattern.permute.xlu0 0
  %1665 = vperm.xlu0 %1664, %v1615
  %v1666 = vpop.permute.xlu0 %1665
  %1669 = vset.pattern.permute.xlu0 0
  %1670 = vperm.xlu0 %1669, %v1616
  %v1671 = vpop.permute.xlu0 %1670
  %1674 = vset.pattern.permute.xlu0 0
  %1675 = vperm.xlu0 %1674, %v1617
  %v1676 = vpop.permute.xlu0 %1675
  %1679 = vset.pattern.permute.xlu0 0
  %1680 = vperm.xlu0 %1679, %v1618
  %v1681 = vpop.permute.xlu0 %1680
  %v1683 = vmul.f32 %v1666, %v1448
  %v1684 = vmul.f32 %v1666, %v1452
  %v1685 = vmul.f32 %v1666, %v1456
  %v1686 = vmul.f32 %v1666, %v1460
  %v1687 = vmul.f32 %v1666, %v1464
  %v1688 = vmul.f32 %v1666, %v1468
  %v1689 = vmul.f32 %v1671, %v1448
  %v1690 = vmul.f32 %v1671, %v1452
  %v1691 = vmul.f32 %v1671, %v1456
  %v1692 = vmul.f32 %v1671, %v1460
  %v1693 = vmul.f32 %v1671, %v1464
  %v1694 = vmul.f32 %v1671, %v1468
  %v1695 = vmul.f32 %v1676, %v1448
  %v1696 = vmul.f32 %v1676, %v1452
  %v1697 = vmul.f32 %v1676, %v1456
  %v1698 = vmul.f32 %v1676, %v1460
  %v1699 = vmul.f32 %v1676, %v1464
  %v1700 = vmul.f32 %v1676, %v1468
  %v1701 = vmul.f32 %v1681, %v1448
  %v1702 = vmul.f32 %v1681, %v1452
  %v1703 = vmul.f32 %v1681, %v1456
  %v1704 = vmul.f32 %v1681, %v1460
  %v1705 = vmul.f32 %v1681, %v1464
  %v1706 = vmul.f32 %v1681, %v1468
  %v1707 = vadd.f32 %v1639, %v1683
  %v1708 = vadd.f32 %v1640, %v1684
  %v1709 = vadd.f32 %v1641, %v1685
  %v1710 = vadd.f32 %v1642, %v1686
  %v1711 = vadd.f32 %v1643, %v1687
  %v1712 = vadd.f32 %v1644, %v1688
  %v1713 = vadd.f32 %v1645, %v1689
  %v1714 = vadd.f32 %v1646, %v1690
  %v1715 = vadd.f32 %v1647, %v1691
  %v1716 = vadd.f32 %v1648, %v1692
  %v1717 = vadd.f32 %v1649, %v1693
  %v1718 = vadd.f32 %v1650, %v1694
  %v1719 = vadd.f32 %v1651, %v1695
  %v1720 = vadd.f32 %v1652, %v1696
  %v1721 = vadd.f32 %v1653, %v1697
  %v1722 = vadd.f32 %v1654, %v1698
  %v1723 = vadd.f32 %v1655, %v1699
  %v1724 = vadd.f32 %v1656, %v1700
  %v1725 = vadd.f32 %v1657, %v1701
  %v1726 = vadd.f32 %v1658, %v1702
  %v1727 = vadd.f32 %v1659, %v1703
  %v1728 = vadd.f32 %v1660, %v1704
  %v1729 = vadd.f32 %v1661, %v1705
  %v1730 = vadd.f32 %v1662, %v1706
  %v1731 = vpack.c.bf16 %v1713, %v1707
  %v1732 = vpack.c.bf16 %v1714, %v1708
  %v1733 = vpack.c.bf16 %v1715, %v1709
  %v1734 = vpack.c.bf16 %v1716, %v1710
  %v1735 = vpack.c.bf16 %v1717, %v1711
  %v1736 = vpack.c.bf16 %v1718, %v1712
  %v1737 = vpack.c.bf16 %v1725, %v1719
  %v1738 = vpack.c.bf16 %v1726, %v1720
  %v1739 = vpack.c.bf16 %v1727, %v1721
  %v1740 = vpack.c.bf16 %v1728, %v1722
  %v1741 = vpack.c.bf16 %v1729, %v1723
  %v1742 = vpack.c.bf16 %v1730, %v1724
  %1743 = vst [vmem:[#allocation2 + $0x8] sm:$0xff] %v1731
  %1744 = vst [vmem:[#allocation2 + $0x10] sm:$0xff] %v1732
  %1745 = vst [vmem:[#allocation2 + $0x18] sm:$0xff] %v1733
  %1746 = vst [vmem:[#allocation2 + $0x20] sm:$0xff] %v1734
  %1747 = vst [vmem:[#allocation2 + $0x28] sm:$0xff] %v1735
  %1748 = vst [vmem:[#allocation2 + $0x30] sm:$0xff] %v1736
  %1749 = vst [vmem:[#allocation2 + $0x48] sm:$0xff] %v1737
  %1750 = vst [vmem:[#allocation2 + $0x50] sm:$0xff] %v1738
  %1751 = vst [vmem:[#allocation2 + $0x58] sm:$0xff] %v1739
  %1752 = vst [vmem:[#allocation2 + $0x60] sm:$0xff] %v1740
  %1753 = vst [vmem:[#allocation2 + $0x68] sm:$0xff] %v1741
  %1754 = vst [vmem:[#allocation2 + $0x70] sm:$0xff] %v1742
  %v1755 = vld [vmem:[#allocation2] sm:$0xff]
  %v1756 = vld [vmem:[#allocation2 + $0x8] sm:$0xff]
  %v1757 = vld [vmem:[#allocation2 + $0x10] sm:$0xff]
  %v1758 = vld [vmem:[#allocation2 + $0x18] sm:$0xff]
  %v1759 = vld [vmem:[#allocation2 + $0x20] sm:$0xff]
  %v1760 = vld [vmem:[#allocation2 + $0x28] sm:$0xff]
  %v1761 = vld [vmem:[#allocation2 + $0x30] sm:$0xff]
  %v1762 = vld [vmem:[#allocation2 + $0x40] sm:$0xff]
  %v1763 = vld [vmem:[#allocation2 + $0x48] sm:$0xff]
  %v1764 = vld [vmem:[#allocation2 + $0x50] sm:$0xff]
  %v1765 = vld [vmem:[#allocation2 + $0x58] sm:$0xff]
  %v1766 = vld [vmem:[#allocation2 + $0x60] sm:$0xff]
  %v1767 = vld [vmem:[#allocation2 + $0x68] sm:$0xff]
  %v1768 = vld [vmem:[#allocation2 + $0x70] sm:$0xff]
  %1783 = vrot.lane.b32.xlu0 %v1755, 19
  %v1784 = vpop.permute.xlu0 %1783
  %1785 = vrot.lane.b32.xlu0 %v1756, 19
  %v1786 = vpop.permute.xlu0 %1785
  %1787 = vrot.lane.b32.xlu0 %v1757, 19
  %v1788 = vpop.permute.xlu0 %1787
  %1789 = vrot.lane.b32.xlu0 %v1758, 19
  %v1790 = vpop.permute.xlu0 %1789
  %1791 = vrot.lane.b32.xlu0 %v1759, 19
  %v1792 = vpop.permute.xlu0 %1791
  %1793 = vrot.lane.b32.xlu0 %v1760, 19
  %v1794 = vpop.permute.xlu0 %1793
  %1795 = vrot.lane.b32.xlu0 %v1761, 19
  %v1796 = vpop.permute.xlu0 %1795
  %1797 = vrot.lane.b32.xlu0 %v1762, 19
  %v1798 = vpop.permute.xlu0 %1797
  %1799 = vrot.lane.b32.xlu0 %v1763, 19
  %v1800 = vpop.permute.xlu0 %1799
  %1801 = vrot.lane.b32.xlu0 %v1764, 19
  %v1802 = vpop.permute.xlu0 %1801
  %1803 = vrot.lane.b32.xlu0 %v1765, 19
  %v1804 = vpop.permute.xlu0 %1803
  %1805 = vrot.lane.b32.xlu0 %v1766, 19
  %v1806 = vpop.permute.xlu0 %1805
  %1807 = vrot.lane.b32.xlu0 %v1767, 19
  %v1808 = vpop.permute.xlu0 %1807
  %1809 = vrot.lane.b32.xlu0 %v1768, 19
  %v1810 = vpop.permute.xlu0 %1809
  %v1811 = vsel %vm205, %v1784, %v1786
  %v1812 = vsel %vm205, %v1786, %v1788
  %v1813 = vsel %vm205, %v1788, %v1790
  %v1814 = vsel %vm205, %v1790, %v1792
  %v1815 = vsel %vm205, %v1792, %v1794
  %v1816 = vsel %vm205, %v1794, %v1796
  %v1817 = vsel %vm205, %v1798, %v1800
  %v1818 = vsel %vm205, %v1800, %v1802
  %v1819 = vsel %vm205, %v1802, %v1804
  %v1820 = vsel %vm205, %v1804, %v1806
  %v1821 = vsel %vm205, %v1806, %v1808
  %v1822 = vsel %vm205, %v1808, %v1810
  %1835 = vst [vmem:[#allocation3] sm:$0xff] %v1811
  %1836 = vst [vmem:[#allocation3 + $0x8] sm:$0xff] %v1812
  %1837 = vst [vmem:[#allocation3 + $0x10] sm:$0xff] %v1813
  %1838 = vst [vmem:[#allocation3 + $0x18] sm:$0xff] %v1814
  %1839 = vst [vmem:[#allocation3 + $0x20] sm:$0xff] %v1815
  %1840 = vst [vmem:[#allocation3 + $0x28] sm:$0xff] %v1816
  %1841 = vst [vmem:[#allocation3 + $0x30] sm:$0xff] %v1817
  %1842 = vst [vmem:[#allocation3 + $0x38] sm:$0xff] %v1818
  %1843 = vst [vmem:[#allocation3 + $0x40] sm:$0xff] %v1819
  %1844 = vst [vmem:[#allocation3 + $0x48] sm:$0xff] %v1820
  %1845 = vst [vmem:[#allocation3 + $0x50] sm:$0xff] %v1821
  %1846 = vst [vmem:[#allocation3 + $0x58] sm:$0xff] %v1822
  %v1847 = vld [vmem:[#allocation2] sm:$0xff]
  %v1848 = vld [vmem:[#allocation2 + $0x8] sm:$0xff]
  %v1849 = vld [vmem:[#allocation2 + $0x10] sm:$0xff]
  %v1850 = vld [vmem:[#allocation2 + $0x18] sm:$0xff]
  %v1851 = vld [vmem:[#allocation2 + $0x20] sm:$0xff]
  %v1852 = vld [vmem:[#allocation2 + $0x28] sm:$0xff]
  %v1853 = vld [vmem:[#allocation2 + $0x30] sm:$0xff]
  %v1854 = vld [vmem:[#allocation2 + $0x40] sm:$0xff]
  %v1855 = vld [vmem:[#allocation2 + $0x48] sm:$0xff]
  %v1856 = vld [vmem:[#allocation2 + $0x50] sm:$0xff]
  %v1857 = vld [vmem:[#allocation2 + $0x58] sm:$0xff]
  %v1858 = vld [vmem:[#allocation2 + $0x60] sm:$0xff]
  %v1859 = vld [vmem:[#allocation2 + $0x68] sm:$0xff]
  %v1860 = vld [vmem:[#allocation2 + $0x70] sm:$0xff]
  %1875 = vrot.lane.b32.xlu0 %v1847, 18
  %v1876 = vpop.permute.xlu0 %1875
  %1877 = vrot.lane.b32.xlu0 %v1848, 18
  %v1878 = vpop.permute.xlu0 %1877
  %1879 = vrot.lane.b32.xlu0 %v1849, 18
  %v1880 = vpop.permute.xlu0 %1879
  %1881 = vrot.lane.b32.xlu0 %v1850, 18
  %v1882 = vpop.permute.xlu0 %1881
  %1883 = vrot.lane.b32.xlu0 %v1851, 18
  %v1884 = vpop.permute.xlu0 %1883
  %1885 = vrot.lane.b32.xlu0 %v1852, 18
  %v1886 = vpop.permute.xlu0 %1885
  %1887 = vrot.lane.b32.xlu0 %v1853, 18
  %v1888 = vpop.permute.xlu0 %1887
  %1889 = vrot.lane.b32.xlu0 %v1854, 18
  %v1890 = vpop.permute.xlu0 %1889
  %1891 = vrot.lane.b32.xlu0 %v1855, 18
  %v1892 = vpop.permute.xlu0 %1891
  %1893 = vrot.lane.b32.xlu0 %v1856, 18
  %v1894 = vpop.permute.xlu0 %1893
  %1895 = vrot.lane.b32.xlu0 %v1857, 18
  %v1896 = vpop.permute.xlu0 %1895
  %1897 = vrot.lane.b32.xlu0 %v1858, 18
  %v1898 = vpop.permute.xlu0 %1897
  %1899 = vrot.lane.b32.xlu0 %v1859, 18
  %v1900 = vpop.permute.xlu0 %1899
  %1901 = vrot.lane.b32.xlu0 %v1860, 18
  %v1902 = vpop.permute.xlu0 %1901
  %v1903 = vsel %vm298, %v1876, %v1878
  %v1904 = vsel %vm298, %v1878, %v1880
  %v1905 = vsel %vm298, %v1880, %v1882
  %v1906 = vsel %vm298, %v1882, %v1884
  %v1907 = vsel %vm298, %v1884, %v1886
  %v1908 = vsel %vm298, %v1886, %v1888
  %v1909 = vsel %vm298, %v1890, %v1892
  %v1910 = vsel %vm298, %v1892, %v1894
  %v1911 = vsel %vm298, %v1894, %v1896
  %v1912 = vsel %vm298, %v1896, %v1898
  %v1913 = vsel %vm298, %v1898, %v1900
  %v1914 = vsel %vm298, %v1900, %v1902
  %1927 = vst [vmem:[#allocation3 + $0x60] sm:$0xff] %v1903
  %1928 = vst [vmem:[#allocation3 + $0x68] sm:$0xff] %v1904
  %1929 = vst [vmem:[#allocation3 + $0x70] sm:$0xff] %v1905
  %1930 = vst [vmem:[#allocation3 + $0x78] sm:$0xff] %v1906
  %1931 = vst [vmem:[#allocation3 + $0x80] sm:$0xff] %v1907
  %1932 = vst [vmem:[#allocation3 + $0x88] sm:$0xff] %v1908
  %1933 = vst [vmem:[#allocation3 + $0x90] sm:$0xff] %v1909
  %1934 = vst [vmem:[#allocation3 + $0x98] sm:$0xff] %v1910
  %1935 = vst [vmem:[#allocation3 + $0xa0] sm:$0xff] %v1911
  %1936 = vst [vmem:[#allocation3 + $0xa8] sm:$0xff] %v1912
  %1937 = vst [vmem:[#allocation3 + $0xb0] sm:$0xff] %v1913
  %1938 = vst [vmem:[#allocation3 + $0xb8] sm:$0xff] %v1914
  %v1939 = vld [vmem:[#allocation2] sm:$0xff]
  %v1940 = vld [vmem:[#allocation2 + $0x8] sm:$0xff]
  %v1941 = vld [vmem:[#allocation2 + $0x10] sm:$0xff]
  %v1942 = vld [vmem:[#allocation2 + $0x18] sm:$0xff]
  %v1943 = vld [vmem:[#allocation2 + $0x20] sm:$0xff]
  %v1944 = vld [vmem:[#allocation2 + $0x28] sm:$0xff]
  %v1945 = vld [vmem:[#allocation2 + $0x30] sm:$0xff]
  %v1946 = vld [vmem:[#allocation2 + $0x40] sm:$0xff]
  %v1947 = vld [vmem:[#allocation2 + $0x48] sm:$0xff]
  %v1948 = vld [vmem:[#allocation2 + $0x50] sm:$0xff]
  %v1949 = vld [vmem:[#allocation2 + $0x58] sm:$0xff]
  %v1950 = vld [vmem:[#allocation2 + $0x60] sm:$0xff]
  %v1951 = vld [vmem:[#allocation2 + $0x68] sm:$0xff]
  %v1952 = vld [vmem:[#allocation2 + $0x70] sm:$0xff]
  %1967 = vrot.lane.b32.xlu0 %v1939, 17
  %v1968 = vpop.permute.xlu0 %1967
  %1969 = vrot.lane.b32.xlu0 %v1940, 17
  %v1970 = vpop.permute.xlu0 %1969
  %1971 = vrot.lane.b32.xlu0 %v1941, 17
  %v1972 = vpop.permute.xlu0 %1971
  %1973 = vrot.lane.b32.xlu0 %v1942, 17
  %v1974 = vpop.permute.xlu0 %1973
  %1975 = vrot.lane.b32.xlu0 %v1943, 17
  %v1976 = vpop.permute.xlu0 %1975
  %1977 = vrot.lane.b32.xlu0 %v1944, 17
  %v1978 = vpop.permute.xlu0 %1977
  %1979 = vrot.lane.b32.xlu0 %v1945, 17
  %v1980 = vpop.permute.xlu0 %1979
  %1981 = vrot.lane.b32.xlu0 %v1946, 17
  %v1982 = vpop.permute.xlu0 %1981
  %1983 = vrot.lane.b32.xlu0 %v1947, 17
  %v1984 = vpop.permute.xlu0 %1983
  %1985 = vrot.lane.b32.xlu0 %v1948, 17
  %v1986 = vpop.permute.xlu0 %1985
  %1987 = vrot.lane.b32.xlu0 %v1949, 17
  %v1988 = vpop.permute.xlu0 %1987
  %1989 = vrot.lane.b32.xlu0 %v1950, 17
  %v1990 = vpop.permute.xlu0 %1989
  %1991 = vrot.lane.b32.xlu0 %v1951, 17
  %v1992 = vpop.permute.xlu0 %1991
  %1993 = vrot.lane.b32.xlu0 %v1952, 17
  %v1994 = vpop.permute.xlu0 %1993
  %v1995 = vsel %vm391, %v1968, %v1970
  %v1996 = vsel %vm391, %v1970, %v1972
  %v1997 = vsel %vm391, %v1972, %v1974
  %v1998 = vsel %vm391, %v1974, %v1976
  %v1999 = vsel %vm391, %v1976, %v1978
  %v2000 = vsel %vm391, %v1978, %v1980
  %v2001 = vsel %vm391, %v1982, %v1984
  %v2002 = vsel %vm391, %v1984, %v1986
  %v2003 = vsel %vm391, %v1986, %v1988
  %v2004 = vsel %vm391, %v1988, %v1990
  %v2005 = vsel %vm391, %v1990, %v1992
  %v2006 = vsel %vm391, %v1992, %v1994
  %2019 = vst [vmem:[#allocation3 + $0xc0] sm:$0xff] %v1995
  %2020 = vst [vmem:[#allocation3 + $0xc8] sm:$0xff] %v1996
  %2021 = vst [vmem:[#allocation3 + $0xd0] sm:$0xff] %v1997
  %2022 = vst [vmem:[#allocation3 + $0xd8] sm:$0xff] %v1998
  %2023 = vst [vmem:[#allocation3 + $0xe0] sm:$0xff] %v1999
  %2024 = vst [vmem:[#allocation3 + $0xe8] sm:$0xff] %v2000
  %2025 = vst [vmem:[#allocation3 + $0xf0] sm:$0xff] %v2001
  %2026 = vst [vmem:[#allocation3 + $0xf8] sm:$0xff] %v2002
  %2027 = vst [vmem:[#allocation3 + $0x100] sm:$0xff] %v2003
  %2028 = vst [vmem:[#allocation3 + $0x108] sm:$0xff] %v2004
  %2029 = vst [vmem:[#allocation3 + $0x110] sm:$0xff] %v2005
  %2030 = vst [vmem:[#allocation3 + $0x118] sm:$0xff] %v2006
  %v2031 = vld [vmem:[#allocation2] sm:$0xff]
  %v2032 = vld [vmem:[#allocation2 + $0x8] sm:$0xff]
  %v2033 = vld [vmem:[#allocation2 + $0x10] sm:$0xff]
  %v2034 = vld [vmem:[#allocation2 + $0x18] sm:$0xff]
  %v2035 = vld [vmem:[#allocation2 + $0x20] sm:$0xff]
  %v2036 = vld [vmem:[#allocation2 + $0x28] sm:$0xff]
  %v2037 = vld [vmem:[#allocation2 + $0x30] sm:$0xff]
  %v2038 = vld [vmem:[#allocation2 + $0x40] sm:$0xff]
  %v2039 = vld [vmem:[#allocation2 + $0x48] sm:$0xff]
  %v2040 = vld [vmem:[#allocation2 + $0x50] sm:$0xff]
  %v2041 = vld [vmem:[#allocation2 + $0x58] sm:$0xff]
  %v2042 = vld [vmem:[#allocation2 + $0x60] sm:$0xff]
  %v2043 = vld [vmem:[#allocation2 + $0x68] sm:$0xff]
  %v2044 = vld [vmem:[#allocation2 + $0x70] sm:$0xff]
  %2059 = vrot.lane.b32.xlu0 %v2031, 1
  %v2060 = vpop.permute.xlu0 %2059
  %2061 = vrot.lane.b32.xlu0 %v2032, 1
  %v2062 = vpop.permute.xlu0 %2061
  %2063 = vrot.lane.b32.xlu0 %v2033, 1
  %v2064 = vpop.permute.xlu0 %2063
  %2065 = vrot.lane.b32.xlu0 %v2034, 1
  %v2066 = vpop.permute.xlu0 %2065
  %2067 = vrot.lane.b32.xlu0 %v2035, 1
  %v2068 = vpop.permute.xlu0 %2067
  %2069 = vrot.lane.b32.xlu0 %v2036, 1
  %v2070 = vpop.permute.xlu0 %2069
  %2071 = vrot.lane.b32.xlu0 %v2037, 1
  %v2072 = vpop.permute.xlu0 %2071
  %2073 = vrot.lane.b32.xlu0 %v2038, 1
  %v2074 = vpop.permute.xlu0 %2073
  %2075 = vrot.lane.b32.xlu0 %v2039, 1
  %v2076 = vpop.permute.xlu0 %2075
  %2077 = vrot.lane.b32.xlu0 %v2040, 1
  %v2078 = vpop.permute.xlu0 %2077
  %2079 = vrot.lane.b32.xlu0 %v2041, 1
  %v2080 = vpop.permute.xlu0 %2079
  %2081 = vrot.lane.b32.xlu0 %v2042, 1
  %v2082 = vpop.permute.xlu0 %2081
  %2083 = vrot.lane.b32.xlu0 %v2043, 1
  %v2084 = vpop.permute.xlu0 %2083
  %2085 = vrot.lane.b32.xlu0 %v2044, 1
  %v2086 = vpop.permute.xlu0 %2085
  %v2087 = vsel %vm484, %v2060, %v2062
  %v2088 = vsel %vm484, %v2062, %v2064
  %v2089 = vsel %vm484, %v2064, %v2066
  %v2090 = vsel %vm484, %v2066, %v2068
  %v2091 = vsel %vm484, %v2068, %v2070
  %v2092 = vsel %vm484, %v2070, %v2072
  %v2093 = vsel %vm484, %v2074, %v2076
  %v2094 = vsel %vm484, %v2076, %v2078
  %v2095 = vsel %vm484, %v2078, %v2080
  %v2096 = vsel %vm484, %v2080, %v2082
  %v2097 = vsel %vm484, %v2082, %v2084
  %v2098 = vsel %vm484, %v2084, %v2086
  %2111 = vst [vmem:[#allocation3 + $0x120] sm:$0xff] %v2087
  %2112 = vst [vmem:[#allocation3 + $0x128] sm:$0xff] %v2088
  %2113 = vst [vmem:[#allocation3 + $0x130] sm:$0xff] %v2089
  %2114 = vst [vmem:[#allocation3 + $0x138] sm:$0xff] %v2090
  %2115 = vst [vmem:[#allocation3 + $0x140] sm:$0xff] %v2091
  %2116 = vst [vmem:[#allocation3 + $0x148] sm:$0xff] %v2092
  %2117 = vst [vmem:[#allocation3 + $0x150] sm:$0xff] %v2093
  %2118 = vst [vmem:[#allocation3 + $0x158] sm:$0xff] %v2094
  %2119 = vst [vmem:[#allocation3 + $0x160] sm:$0xff] %v2095
  %2120 = vst [vmem:[#allocation3 + $0x168] sm:$0xff] %v2096
  %2121 = vst [vmem:[#allocation3 + $0x170] sm:$0xff] %v2097
  %2122 = vst [vmem:[#allocation3 + $0x178] sm:$0xff] %v2098
  %v2123 = vld [vmem:[#allocation2 + $0x8] sm:$0xff]
  %v2124 = vld [vmem:[#allocation2 + $0x10] sm:$0xff]
  %v2125 = vld [vmem:[#allocation2 + $0x18] sm:$0xff]
  %v2126 = vld [vmem:[#allocation2 + $0x20] sm:$0xff]
  %v2127 = vld [vmem:[#allocation2 + $0x28] sm:$0xff]
  %v2128 = vld [vmem:[#allocation2 + $0x30] sm:$0xff]
  %v2129 = vld [vmem:[#allocation2 + $0x48] sm:$0xff]
  %v2130 = vld [vmem:[#allocation2 + $0x50] sm:$0xff]
  %v2131 = vld [vmem:[#allocation2 + $0x58] sm:$0xff]
  %v2132 = vld [vmem:[#allocation2 + $0x60] sm:$0xff]
  %v2133 = vld [vmem:[#allocation2 + $0x68] sm:$0xff]
  %v2134 = vld [vmem:[#allocation2 + $0x70] sm:$0xff]
  %2135 = vst [vmem:[#allocation3 + $0x180] sm:$0xff] %v2123
  %2136 = vst [vmem:[#allocation3 + $0x188] sm:$0xff] %v2124
  %2137 = vst [vmem:[#allocation3 + $0x190] sm:$0xff] %v2125
  %2138 = vst [vmem:[#allocation3 + $0x198] sm:$0xff] %v2126
  %2139 = vst [vmem:[#allocation3 + $0x1a0] sm:$0xff] %v2127
  %2140 = vst [vmem:[#allocation3 + $0x1a8] sm:$0xff] %v2128
  %2141 = vst [vmem:[#allocation3 + $0x1b0] sm:$0xff] %v2129
  %2142 = vst [vmem:[#allocation3 + $0x1b8] sm:$0xff] %v2130
  %2143 = vst [vmem:[#allocation3 + $0x1c0] sm:$0xff] %v2131
  %2144 = vst [vmem:[#allocation3 + $0x1c8] sm:$0xff] %v2132
  %2145 = vst [vmem:[#allocation3 + $0x1d0] sm:$0xff] %v2133
  %2146 = vst [vmem:[#allocation3 + $0x1d8] sm:$0xff] %v2134
  %v2147 = vld [vmem:[#allocation2 + $0x8] sm:$0xff]
  %v2148 = vld [vmem:[#allocation2 + $0x10] sm:$0xff]
  %v2149 = vld [vmem:[#allocation2 + $0x18] sm:$0xff]
  %v2150 = vld [vmem:[#allocation2 + $0x20] sm:$0xff]
  %v2151 = vld [vmem:[#allocation2 + $0x28] sm:$0xff]
  %v2152 = vld [vmem:[#allocation2 + $0x30] sm:$0xff]
  %v2153 = vld [vmem:[#allocation2 + $0x38] sm:$0xff]
  %v2154 = vld [vmem:[#allocation2 + $0x48] sm:$0xff]
  %v2155 = vld [vmem:[#allocation2 + $0x50] sm:$0xff]
  %v2156 = vld [vmem:[#allocation2 + $0x58] sm:$0xff]
  %v2157 = vld [vmem:[#allocation2 + $0x60] sm:$0xff]
  %v2158 = vld [vmem:[#allocation2 + $0x68] sm:$0xff]
  %v2159 = vld [vmem:[#allocation2 + $0x70] sm:$0xff]
  %v2160 = vld [vmem:[#allocation2 + $0x78] sm:$0xff]
  %2175 = vrot.lane.b32.xlu0 %v2147, 127
  %v2176 = vpop.permute.xlu0 %2175
  %2177 = vrot.lane.b32.xlu0 %v2148, 127
  %v2178 = vpop.permute.xlu0 %2177
  %2179 = vrot.lane.b32.xlu0 %v2149, 127
  %v2180 = vpop.permute.xlu0 %2179
  %2181 = vrot.lane.b32.xlu0 %v2150, 127
  %v2182 = vpop.permute.xlu0 %2181
  %2183 = vrot.lane.b32.xlu0 %v2151, 127
  %v2184 = vpop.permute.xlu0 %2183
  %2185 = vrot.lane.b32.xlu0 %v2152, 127
  %v2186 = vpop.permute.xlu0 %2185
  %2187 = vrot.lane.b32.xlu0 %v2153, 127
  %v2188 = vpop.permute.xlu0 %2187
  %2189 = vrot.lane.b32.xlu0 %v2154, 127
  %v2190 = vpop.permute.xlu0 %2189
  %2191 = vrot.lane.b32.xlu0 %v2155, 127
  %v2192 = vpop.permute.xlu0 %2191
  %2193 = vrot.lane.b32.xlu0 %v2156, 127
  %v2194 = vpop.permute.xlu0 %2193
  %2195 = vrot.lane.b32.xlu0 %v2157, 127
  %v2196 = vpop.permute.xlu0 %2195
  %2197 = vrot.lane.b32.xlu0 %v2158, 127
  %v2198 = vpop.permute.xlu0 %2197
  %2199 = vrot.lane.b32.xlu0 %v2159, 127
  %v2200 = vpop.permute.xlu0 %2199
  %2201 = vrot.lane.b32.xlu0 %v2160, 127
  %v2202 = vpop.permute.xlu0 %2201
  %v2203 = vsel %vm601, %v2176, %v2178
  %v2204 = vsel %vm601, %v2178, %v2180
  %v2205 = vsel %vm601, %v2180, %v2182
  %v2206 = vsel %vm601, %v2182, %v2184
  %v2207 = vsel %vm601, %v2184, %v2186
  %v2208 = vsel %vm601, %v2186, %v2188
  %v2209 = vsel %vm601, %v2190, %v2192
  %v2210 = vsel %vm601, %v2192, %v2194
  %v2211 = vsel %vm601, %v2194, %v2196
  %v2212 = vsel %vm601, %v2196, %v2198
  %v2213 = vsel %vm601, %v2198, %v2200
  %v2214 = vsel %vm601, %v2200, %v2202
  %2227 = vst [vmem:[#allocation3 + $0x1e0] sm:$0xff] %v2203
  %2228 = vst [vmem:[#allocation3 + $0x1e8] sm:$0xff] %v2204
  %2229 = vst [vmem:[#allocation3 + $0x1f0] sm:$0xff] %v2205
  %2230 = vst [vmem:[#allocation3 + $0x1f8] sm:$0xff] %v2206
  %2231 = vst [vmem:[#allocation3 + $0x200] sm:$0xff] %v2207
  %2232 = vst [vmem:[#allocation3 + $0x208] sm:$0xff] %v2208
  %2233 = vst [vmem:[#allocation3 + $0x210] sm:$0xff] %v2209
  %2234 = vst [vmem:[#allocation3 + $0x218] sm:$0xff] %v2210
  %2235 = vst [vmem:[#allocation3 + $0x220] sm:$0xff] %v2211
  %2236 = vst [vmem:[#allocation3 + $0x228] sm:$0xff] %v2212
  %2237 = vst [vmem:[#allocation3 + $0x230] sm:$0xff] %v2213
  %2238 = vst [vmem:[#allocation3 + $0x238] sm:$0xff] %v2214
  %v2239 = vld [vmem:[#allocation2 + $0x8] sm:$0xff]
  %v2240 = vld [vmem:[#allocation2 + $0x10] sm:$0xff]
  %v2241 = vld [vmem:[#allocation2 + $0x18] sm:$0xff]
  %v2242 = vld [vmem:[#allocation2 + $0x20] sm:$0xff]
  %v2243 = vld [vmem:[#allocation2 + $0x28] sm:$0xff]
  %v2244 = vld [vmem:[#allocation2 + $0x30] sm:$0xff]
  %v2245 = vld [vmem:[#allocation2 + $0x38] sm:$0xff]
  %v2246 = vld [vmem:[#allocation2 + $0x48] sm:$0xff]
  %v2247 = vld [vmem:[#allocation2 + $0x50] sm:$0xff]
  %v2248 = vld [vmem:[#allocation2 + $0x58] sm:$0xff]
  %v2249 = vld [vmem:[#allocation2 + $0x60] sm:$0xff]
  %v2250 = vld [vmem:[#allocation2 + $0x68] sm:$0xff]
  %v2251 = vld [vmem:[#allocation2 + $0x70] sm:$0xff]
  %v2252 = vld [vmem:[#allocation2 + $0x78] sm:$0xff]
  %2267 = vrot.lane.b32.xlu0 %v2239, 111
  %v2268 = vpop.permute.xlu0 %2267
  %2269 = vrot.lane.b32.xlu0 %v2240, 111
  %v2270 = vpop.permute.xlu0 %2269
  %2271 = vrot.lane.b32.xlu0 %v2241, 111
  %v2272 = vpop.permute.xlu0 %2271
  %2273 = vrot.lane.b32.xlu0 %v2242, 111
  %v2274 = vpop.permute.xlu0 %2273
  %2275 = vrot.lane.b32.xlu0 %v2243, 111
  %v2276 = vpop.permute.xlu0 %2275
  %2277 = vrot.lane.b32.xlu0 %v2244, 111
  %v2278 = vpop.permute.xlu0 %2277
  %2279 = vrot.lane.b32.xlu0 %v2245, 111
  %v2280 = vpop.permute.xlu0 %2279
  %2281 = vrot.lane.b32.xlu0 %v2246, 111
  %v2282 = vpop.permute.xlu0 %2281
  %2283 = vrot.lane.b32.xlu0 %v2247, 111
  %v2284 = vpop.permute.xlu0 %2283
  %2285 = vrot.lane.b32.xlu0 %v2248, 111
  %v2286 = vpop.permute.xlu0 %2285
  %2287 = vrot.lane.b32.xlu0 %v2249, 111
  %v2288 = vpop.permute.xlu0 %2287
  %2289 = vrot.lane.b32.xlu0 %v2250, 111
  %v2290 = vpop.permute.xlu0 %2289
  %2291 = vrot.lane.b32.xlu0 %v2251, 111
  %v2292 = vpop.permute.xlu0 %2291
  %2293 = vrot.lane.b32.xlu0 %v2252, 111
  %v2294 = vpop.permute.xlu0 %2293
  %v2295 = vsel %vm694, %v2268, %v2270
  %v2296 = vsel %vm694, %v2270, %v2272
  %v2297 = vsel %vm694, %v2272, %v2274
  %v2298 = vsel %vm694, %v2274, %v2276
  %v2299 = vsel %vm694, %v2276, %v2278
  %v2300 = vsel %vm694, %v2278, %v2280
  %v2301 = vsel %vm694, %v2282, %v2284
  %v2302 = vsel %vm694, %v2284, %v2286
  %v2303 = vsel %vm694, %v2286, %v2288
  %v2304 = vsel %vm694, %v2288, %v2290
  %v2305 = vsel %vm694, %v2290, %v2292
  %v2306 = vsel %vm694, %v2292, %v2294
  %2319 = vst [vmem:[#allocation3 + $0x240] sm:$0xff] %v2295
  %2320 = vst [vmem:[#allocation3 + $0x248] sm:$0xff] %v2296
  %2321 = vst [vmem:[#allocation3 + $0x250] sm:$0xff] %v2297
  %2322 = vst [vmem:[#allocation3 + $0x258] sm:$0xff] %v2298
  %2323 = vst [vmem:[#allocation3 + $0x260] sm:$0xff] %v2299
  %2324 = vst [vmem:[#allocation3 + $0x268] sm:$0xff] %v2300
  %2325 = vst [vmem:[#allocation3 + $0x270] sm:$0xff] %v2301
  %2326 = vst [vmem:[#allocation3 + $0x278] sm:$0xff] %v2302
  %2327 = vst [vmem:[#allocation3 + $0x280] sm:$0xff] %v2303
  %2328 = vst [vmem:[#allocation3 + $0x288] sm:$0xff] %v2304
  %2329 = vst [vmem:[#allocation3 + $0x290] sm:$0xff] %v2305
  %2330 = vst [vmem:[#allocation3 + $0x298] sm:$0xff] %v2306
  %v2331 = vld [vmem:[#allocation2 + $0x8] sm:$0xff]
  %v2332 = vld [vmem:[#allocation2 + $0x10] sm:$0xff]
  %v2333 = vld [vmem:[#allocation2 + $0x18] sm:$0xff]
  %v2334 = vld [vmem:[#allocation2 + $0x20] sm:$0xff]
  %v2335 = vld [vmem:[#allocation2 + $0x28] sm:$0xff]
  %v2336 = vld [vmem:[#allocation2 + $0x30] sm:$0xff]
  %v2337 = vld [vmem:[#allocation2 + $0x38] sm:$0xff]
  %v2338 = vld [vmem:[#allocation2 + $0x48] sm:$0xff]
  %v2339 = vld [vmem:[#allocation2 + $0x50] sm:$0xff]
  %v2340 = vld [vmem:[#allocation2 + $0x58] sm:$0xff]
  %v2341 = vld [vmem:[#allocation2 + $0x60] sm:$0xff]
  %v2342 = vld [vmem:[#allocation2 + $0x68] sm:$0xff]
  %v2343 = vld [vmem:[#allocation2 + $0x70] sm:$0xff]
  %v2344 = vld [vmem:[#allocation2 + $0x78] sm:$0xff]
  %2359 = vrot.lane.b32.xlu0 %v2331, 110
  %v2360 = vpop.permute.xlu0 %2359
  %2361 = vrot.lane.b32.xlu0 %v2332, 110
  %v2362 = vpop.permute.xlu0 %2361
  %2363 = vrot.lane.b32.xlu0 %v2333, 110
  %v2364 = vpop.permute.xlu0 %2363
  %2365 = vrot.lane.b32.xlu0 %v2334, 110
  %v2366 = vpop.permute.xlu0 %2365
  %2367 = vrot.lane.b32.xlu0 %v2335, 110
  %v2368 = vpop.permute.xlu0 %2367
  %2369 = vrot.lane.b32.xlu0 %v2336, 110
  %v2370 = vpop.permute.xlu0 %2369
  %2371 = vrot.lane.b32.xlu0 %v2337, 110
  %v2372 = vpop.permute.xlu0 %2371
  %2373 = vrot.lane.b32.xlu0 %v2338, 110
  %v2374 = vpop.permute.xlu0 %2373
  %2375 = vrot.lane.b32.xlu0 %v2339, 110
  %v2376 = vpop.permute.xlu0 %2375
  %2377 = vrot.lane.b32.xlu0 %v2340, 110
  %v2378 = vpop.permute.xlu0 %2377
  %2379 = vrot.lane.b32.xlu0 %v2341, 110
  %v2380 = vpop.permute.xlu0 %2379
  %2381 = vrot.lane.b32.xlu0 %v2342, 110
  %v2382 = vpop.permute.xlu0 %2381
  %2383 = vrot.lane.b32.xlu0 %v2343, 110
  %v2384 = vpop.permute.xlu0 %2383
  %2385 = vrot.lane.b32.xlu0 %v2344, 110
  %v2386 = vpop.permute.xlu0 %2385
  %v2387 = vsel %vm787, %v2360, %v2362
  %v2388 = vsel %vm787, %v2362, %v2364
  %v2389 = vsel %vm787, %v2364, %v2366
  %v2390 = vsel %vm787, %v2366, %v2368
  %v2391 = vsel %vm787, %v2368, %v2370
  %v2392 = vsel %vm787, %v2370, %v2372
  %v2393 = vsel %vm787, %v2374, %v2376
  %v2394 = vsel %vm787, %v2376, %v2378
  %v2395 = vsel %vm787, %v2378, %v2380
  %v2396 = vsel %vm787, %v2380, %v2382
  %v2397 = vsel %vm787, %v2382, %v2384
  %v2398 = vsel %vm787, %v2384, %v2386
  %2411 = vst [vmem:[#allocation3 + $0x2a0] sm:$0xff] %v2387
  %2412 = vst [vmem:[#allocation3 + $0x2a8] sm:$0xff] %v2388
  %2413 = vst [vmem:[#allocation3 + $0x2b0] sm:$0xff] %v2389
  %2414 = vst [vmem:[#allocation3 + $0x2b8] sm:$0xff] %v2390
  %2415 = vst [vmem:[#allocation3 + $0x2c0] sm:$0xff] %v2391
  %2416 = vst [vmem:[#allocation3 + $0x2c8] sm:$0xff] %v2392
  %2417 = vst [vmem:[#allocation3 + $0x2d0] sm:$0xff] %v2393
  %2418 = vst [vmem:[#allocation3 + $0x2d8] sm:$0xff] %v2394
  %2419 = vst [vmem:[#allocation3 + $0x2e0] sm:$0xff] %v2395
  %2420 = vst [vmem:[#allocation3 + $0x2e8] sm:$0xff] %v2396
  %2421 = vst [vmem:[#allocation3 + $0x2f0] sm:$0xff] %v2397
  %2422 = vst [vmem:[#allocation3 + $0x2f8] sm:$0xff] %v2398
  %v2423 = vld [vmem:[#allocation2 + $0x8] sm:$0xff]
  %v2424 = vld [vmem:[#allocation2 + $0x10] sm:$0xff]
  %v2425 = vld [vmem:[#allocation2 + $0x18] sm:$0xff]
  %v2426 = vld [vmem:[#allocation2 + $0x20] sm:$0xff]
  %v2427 = vld [vmem:[#allocation2 + $0x28] sm:$0xff]
  %v2428 = vld [vmem:[#allocation2 + $0x30] sm:$0xff]
  %v2429 = vld [vmem:[#allocation2 + $0x38] sm:$0xff]
  %v2430 = vld [vmem:[#allocation2 + $0x48] sm:$0xff]
  %v2431 = vld [vmem:[#allocation2 + $0x50] sm:$0xff]
  %v2432 = vld [vmem:[#allocation2 + $0x58] sm:$0xff]
  %v2433 = vld [vmem:[#allocation2 + $0x60] sm:$0xff]
  %v2434 = vld [vmem:[#allocation2 + $0x68] sm:$0xff]
  %v2435 = vld [vmem:[#allocation2 + $0x70] sm:$0xff]
  %v2436 = vld [vmem:[#allocation2 + $0x78] sm:$0xff]
  %2451 = vrot.lane.b32.xlu0 %v2423, 109
  %v2452 = vpop.permute.xlu0 %2451
  %2453 = vrot.lane.b32.xlu0 %v2424, 109
  %v2454 = vpop.permute.xlu0 %2453
  %2455 = vrot.lane.b32.xlu0 %v2425, 109
  %v2456 = vpop.permute.xlu0 %2455
  %2457 = vrot.lane.b32.xlu0 %v2426, 109
  %v2458 = vpop.permute.xlu0 %2457
  %2459 = vrot.lane.b32.xlu0 %v2427, 109
  %v2460 = vpop.permute.xlu0 %2459
  %2461 = vrot.lane.b32.xlu0 %v2428, 109
  %v2462 = vpop.permute.xlu0 %2461
  %2463 = vrot.lane.b32.xlu0 %v2429, 109
  %v2464 = vpop.permute.xlu0 %2463
  %2465 = vrot.lane.b32.xlu0 %v2430, 109
  %v2466 = vpop.permute.xlu0 %2465
  %2467 = vrot.lane.b32.xlu0 %v2431, 109
  %v2468 = vpop.permute.xlu0 %2467
  %2469 = vrot.lane.b32.xlu0 %v2432, 109
  %v2470 = vpop.permute.xlu0 %2469
  %2471 = vrot.lane.b32.xlu0 %v2433, 109
  %v2472 = vpop.permute.xlu0 %2471
  %2473 = vrot.lane.b32.xlu0 %v2434, 109
  %v2474 = vpop.permute.xlu0 %2473
  %2475 = vrot.lane.b32.xlu0 %v2435, 109
  %v2476 = vpop.permute.xlu0 %2475
  %2477 = vrot.lane.b32.xlu0 %v2436, 109
  %v2478 = vpop.permute.xlu0 %2477
  %v2479 = vsel %vm880, %v2452, %v2454
  %v2480 = vsel %vm880, %v2454, %v2456
  %v2481 = vsel %vm880, %v2456, %v2458
  %v2482 = vsel %vm880, %v2458, %v2460
  %v2483 = vsel %vm880, %v2460, %v2462
  %v2484 = vsel %vm880, %v2462, %v2464
  %v2485 = vsel %vm880, %v2466, %v2468
  %v2486 = vsel %vm880, %v2468, %v2470
  %v2487 = vsel %vm880, %v2470, %v2472
  %v2488 = vsel %vm880, %v2472, %v2474
  %v2489 = vsel %vm880, %v2474, %v2476
  %v2490 = vsel %vm880, %v2476, %v2478
  %2503 = vst [vmem:[#allocation3 + $0x300] sm:$0xff] %v2479
  %2504 = vst [vmem:[#allocation3 + $0x308] sm:$0xff] %v2480
  %2505 = vst [vmem:[#allocation3 + $0x310] sm:$0xff] %v2481
  %2506 = vst [vmem:[#allocation3 + $0x318] sm:$0xff] %v2482
  %2507 = vst [vmem:[#allocation3 + $0x320] sm:$0xff] %v2483
  %2508 = vst [vmem:[#allocation3 + $0x328] sm:$0xff] %v2484
  %2509 = vst [vmem:[#allocation3 + $0x330] sm:$0xff] %v2485
  %2510 = vst [vmem:[#allocation3 + $0x338] sm:$0xff] %v2486
  %2511 = vst [vmem:[#allocation3 + $0x340] sm:$0xff] %v2487
  %2512 = vst [vmem:[#allocation3 + $0x348] sm:$0xff] %v2488
  %2513 = vst [vmem:[#allocation3 + $0x350] sm:$0xff] %v2489
  %2514 = vst [vmem:[#allocation3 + $0x358] sm:$0xff] %v2490
  %s2515 = scalar_lea.vmem %s2, 48
  %v2516 = vld [vmem:[%s2515] sm:$0xff]
  %v2517 = vld [vmem:[%s2515 + $0x8] sm:$0xf]
  %v2518 = vld [vmem:[%s2515 + $0xc] sm:$0xff]
  %v2519 = vld [vmem:[%s2515 + $0x14] sm:$0xf]
  %v2520 = vld [vmem:[%s2515 + $0x18] sm:$0xff]
  %v2521 = vld [vmem:[%s2515 + $0x20] sm:$0xf]
  %v2522 = vld [vmem:[%s2515 + $0x24] sm:$0xff]
  %v2523 = vld [vmem:[%s2515 + $0x2c] sm:$0xf]
  %v2524 = vld [vmem:[#allocation3] sm:$0xff]
  %v2525 = vld [vmem:[#allocation3 + $0x8] sm:$0xff]
  %v2526 = vld [vmem:[#allocation3 + $0x10] sm:$0xff]
  %v2527 = vld [vmem:[#allocation3 + $0x18] sm:$0xff]
  %v2528 = vld [vmem:[#allocation3 + $0x20] sm:$0xff]
  %v2529 = vld [vmem:[#allocation3 + $0x28] sm:$0xff]
  %v2530 = vld [vmem:[#allocation3 + $0x30] sm:$0xff]
  %v2531 = vld [vmem:[#allocation3 + $0x38] sm:$0xff]
  %v2532 = vld [vmem:[#allocation3 + $0x40] sm:$0xff]
  %v2533 = vld [vmem:[#allocation3 + $0x48] sm:$0xff]
  %v2534 = vld [vmem:[#allocation3 + $0x50] sm:$0xff]
  %v2535 = vld [vmem:[#allocation3 + $0x58] sm:$0xff]
  %v2536 = vld [vmem:[#allocation3 + $0x60] sm:$0xff]
  %v2537 = vld [vmem:[#allocation3 + $0x68] sm:$0xff]
  %v2538 = vld [vmem:[#allocation3 + $0x70] sm:$0xff]
  %v2539 = vld [vmem:[#allocation3 + $0x78] sm:$0xff]
  %v2540 = vld [vmem:[#allocation3 + $0x80] sm:$0xff]
  %v2541 = vld [vmem:[#allocation3 + $0x88] sm:$0xff]
  %v2542 = vld [vmem:[#allocation3 + $0x90] sm:$0xff]
  %v2543 = vld [vmem:[#allocation3 + $0x98] sm:$0xff]
  %v2544 = vld [vmem:[#allocation3 + $0xa0] sm:$0xff]
  %v2545 = vld [vmem:[#allocation3 + $0xa8] sm:$0xff]
  %v2546 = vld [vmem:[#allocation3 + $0xb0] sm:$0xff]
  %v2547 = vld [vmem:[#allocation3 + $0xb8] sm:$0xff]
  %v2548 = vld [vmem:[#allocation3 + $0xc0] sm:$0xff]
  %v2549 = vld [vmem:[#allocation3 + $0xc8] sm:$0xff]
  %v2550 = vld [vmem:[#allocation3 + $0xd0] sm:$0xff]
  %v2551 = vld [vmem:[#allocation3 + $0xd8] sm:$0xff]
  %v2552 = vld [vmem:[#allocation3 + $0xe0] sm:$0xff]
  %v2553 = vld [vmem:[#allocation3 + $0xe8] sm:$0xff]
  %v2554 = vld [vmem:[#allocation3 + $0xf0] sm:$0xff]
  %v2555 = vld [vmem:[#allocation3 + $0xf8] sm:$0xff]
  %v2556 = vld [vmem:[#allocation3 + $0x100] sm:$0xff]
  %v2557 = vld [vmem:[#allocation3 + $0x108] sm:$0xff]
  %v2558 = vld [vmem:[#allocation3 + $0x110] sm:$0xff]
  %v2559 = vld [vmem:[#allocation3 + $0x118] sm:$0xff]
  %v2560 = vld [vmem:[#allocation3 + $0x120] sm:$0xff]
  %v2561 = vld [vmem:[#allocation3 + $0x128] sm:$0xff]
  %v2562 = vld [vmem:[#allocation3 + $0x130] sm:$0xff]
  %v2563 = vld [vmem:[#allocation3 + $0x138] sm:$0xff]
  %v2564 = vld [vmem:[#allocation3 + $0x140] sm:$0xff]
  %v2565 = vld [vmem:[#allocation3 + $0x148] sm:$0xff]
  %v2566 = vld [vmem:[#allocation3 + $0x150] sm:$0xff]
  %v2567 = vld [vmem:[#allocation3 + $0x158] sm:$0xff]
  %v2568 = vld [vmem:[#allocation3 + $0x160] sm:$0xff]
  %v2569 = vld [vmem:[#allocation3 + $0x168] sm:$0xff]
  %v2570 = vld [vmem:[#allocation3 + $0x170] sm:$0xff]
  %v2571 = vld [vmem:[#allocation3 + $0x178] sm:$0xff]
  %v2572 = vld [vmem:[#allocation3 + $0x180] sm:$0xff]
  %v2573 = vld [vmem:[#allocation3 + $0x188] sm:$0xff]
  %v2574 = vld [vmem:[#allocation3 + $0x190] sm:$0xff]
  %v2575 = vld [vmem:[#allocation3 + $0x198] sm:$0xff]
  %v2576 = vld [vmem:[#allocation3 + $0x1a0] sm:$0xff]
  %v2577 = vld [vmem:[#allocation3 + $0x1a8] sm:$0xff]
  %v2578 = vld [vmem:[#allocation3 + $0x1b0] sm:$0xff]
  %v2579 = vld [vmem:[#allocation3 + $0x1b8] sm:$0xff]
  %v2580 = vld [vmem:[#allocation3 + $0x1c0] sm:$0xff]
  %v2581 = vld [vmem:[#allocation3 + $0x1c8] sm:$0xff]
  %v2582 = vld [vmem:[#allocation3 + $0x1d0] sm:$0xff]
  %v2583 = vld [vmem:[#allocation3 + $0x1d8] sm:$0xff]
  %v2584 = vld [vmem:[#allocation3 + $0x1e0] sm:$0xff]
  %v2585 = vld [vmem:[#allocation3 + $0x1e8] sm:$0xff]
  %v2586 = vld [vmem:[#allocation3 + $0x1f0] sm:$0xff]
  %v2587 = vld [vmem:[#allocation3 + $0x1f8] sm:$0xff]
  %v2588 = vld [vmem:[#allocation3 + $0x200] sm:$0xff]
  %v2589 = vld [vmem:[#allocation3 + $0x208] sm:$0xff]
  %v2590 = vld [vmem:[#allocation3 + $0x210] sm:$0xff]
  %v2591 = vld [vmem:[#allocation3 + $0x218] sm:$0xff]
  %v2592 = vld [vmem:[#allocation3 + $0x220] sm:$0xff]
  %v2593 = vld [vmem:[#allocation3 + $0x228] sm:$0xff]
  %v2594 = vld [vmem:[#allocation3 + $0x230] sm:$0xff]
  %v2595 = vld [vmem:[#allocation3 + $0x238] sm:$0xff]
  %v2596 = vld [vmem:[#allocation3 + $0x240] sm:$0xff]
  %v2597 = vld [vmem:[#allocation3 + $0x248] sm:$0xff]
  %v2598 = vld [vmem:[#allocation3 + $0x250] sm:$0xff]
  %v2599 = vld [vmem:[#allocation3 + $0x258] sm:$0xff]
  %v2600 = vld [vmem:[#allocation3 + $0x260] sm:$0xff]
  %v2601 = vld [vmem:[#allocation3 + $0x268] sm:$0xff]
  %v2602 = vld [vmem:[#allocation3 + $0x270] sm:$0xff]
  %v2603 = vld [vmem:[#allocation3 + $0x278] sm:$0xff]
  %v2604 = vld [vmem:[#allocation3 + $0x280] sm:$0xff]
  %v2605 = vld [vmem:[#allocation3 + $0x288] sm:$0xff]
  %v2606 = vld [vmem:[#allocation3 + $0x290] sm:$0xff]
  %v2607 = vld [vmem:[#allocation3 + $0x298] sm:$0xff]
  %v2608 = vld [vmem:[#allocation3 + $0x2a0] sm:$0xff]
  %v2609 = vld [vmem:[#allocation3 + $0x2a8] sm:$0xff]
  %v2610 = vld [vmem:[#allocation3 + $0x2b0] sm:$0xff]
  %v2611 = vld [vmem:[#allocation3 + $0x2b8] sm:$0xff]
  %v2612 = vld [vmem:[#allocation3 + $0x2c0] sm:$0xff]
  %v2613 = vld [vmem:[#allocation3 + $0x2c8] sm:$0xff]
  %v2614 = vld [vmem:[#allocation3 + $0x2d0] sm:$0xff]
  %v2615 = vld [vmem:[#allocation3 + $0x2d8] sm:$0xff]
  %v2616 = vld [vmem:[#allocation3 + $0x2e0] sm:$0xff]
  %v2617 = vld [vmem:[#allocation3 + $0x2e8] sm:$0xff]
  %v2618 = vld [vmem:[#allocation3 + $0x2f0] sm:$0xff]
  %v2619 = vld [vmem:[#allocation3 + $0x2f8] sm:$0xff]
  %v2620 = vld [vmem:[#allocation3 + $0x300] sm:$0xff]
  %v2621 = vld [vmem:[#allocation3 + $0x308] sm:$0xff]
  %v2622 = vld [vmem:[#allocation3 + $0x310] sm:$0xff]
  %v2623 = vld [vmem:[#allocation3 + $0x318] sm:$0xff]
  %v2624 = vld [vmem:[#allocation3 + $0x320] sm:$0xff]
  %v2625 = vld [vmem:[#allocation3 + $0x328] sm:$0xff]
  %v2626 = vld [vmem:[#allocation3 + $0x330] sm:$0xff]
  %v2627 = vld [vmem:[#allocation3 + $0x338] sm:$0xff]
  %v2628 = vld [vmem:[#allocation3 + $0x340] sm:$0xff]
  %v2629 = vld [vmem:[#allocation3 + $0x348] sm:$0xff]
  %v2630 = vld [vmem:[#allocation3 + $0x350] sm:$0xff]
  %v2631 = vld [vmem:[#allocation3 + $0x358] sm:$0xff]
  %s2632 = scalar_lea.vmem %s3, 32
  %v2633 = vld [vmem:[%s2632] sm:$0xff]
  %v2634 = vld [vmem:[%s2632 + $0x8] sm:$0xff]
  %v2635 = vld [vmem:[%s2632 + $0x10] sm:$0xff]
  %v2636 = vld [vmem:[%s2632 + $0x18] sm:$0xff]
  %2638 = vset.pattern.permute.xlu0 0
  %2639 = vperm.xlu0 %2638, %v2633
  %v2640 = vpop.permute.xlu0 %2639
  %2643 = vset.pattern.permute.xlu0 0
  %2644 = vperm.xlu0 %2643, %v2634
  %v2645 = vpop.permute.xlu0 %2644
  %2648 = vset.pattern.permute.xlu0 0
  %2649 = vperm.xlu0 %2648, %v2635
  %v2650 = vpop.permute.xlu0 %2649
  %2653 = vset.pattern.permute.xlu0 0
  %2654 = vperm.xlu0 %2653, %v2636
  %v2655 = vpop.permute.xlu0 %2654
  %v2665 = vunpack.c.l.b16 %v2516
  %v2666 = vunpack.c.h.b16 %v2516
  %v2667 = vunpack.c.l.b16 %v2517
  %v2668 = vunpack.c.l.b16 %v2518
  %v2669 = vunpack.c.h.b16 %v2518
  %v2670 = vunpack.c.l.b16 %v2519
  %v2671 = vunpack.c.l.b16 %v2520
  %v2672 = vunpack.c.h.b16 %v2520
  %v2673 = vunpack.c.l.b16 %v2521
  %v2674 = vunpack.c.l.b16 %v2522
  %v2675 = vunpack.c.h.b16 %v2522
  %v2676 = vunpack.c.l.b16 %v2523
  %v2677 = vpack.c.b16 %v2668, %v2665
  %v2678 = vpack.c.b16 %v2669, %v2666
  %v2679 = vpack.c.b16 %v2670, %v2667
  %v2680 = vpack.c.b16 %v2674, %v2671
  %v2681 = vpack.c.b16 %v2675, %v2672
  %v2682 = vpack.c.b16 %v2676, %v2673
  %v2688 = vsel %vm1087, %v2679, 0
  %v2691 = vsel %vm1087, %v2682, 0
  %2693 = vmatprep.subr.bf16.mxu0 %v2525
  %2694 = vmatpush1.bf16.msra.mxu0 %v2524
  %2695 = vmatprep.subr.bf16.mxu0 %v2531
  %2696 = vmatpush1.bf16.msra.mxu0 %v2530
  %2697 = vmatprep.subr.bf16.mxu0 %v2537
  %2698 = vmatpush1.bf16.msra.mxu0 %v2536
  %2699 = vmatprep.subr.bf16.mxu0 %v2543
  %2700 = vmatpush1.bf16.msra.mxu0 %v2542
  %2701 = vmatprep.subr.bf16.mxu0 %v2549
  %2702 = vmatpush1.bf16.msra.mxu0 %v2548
  %2703 = vmatprep.subr.bf16.mxu0 %v2555
  %2704 = vmatpush1.bf16.msra.mxu0 %v2554
  %2705 = vmatprep.subr.bf16.mxu0 %v2561
  %2706 = vmatpush1.bf16.msra.mxu0 %v2560
  %2707 = vmatprep.subr.bf16.mxu0 %v2567
  %2708 = vmatpush1.bf16.msra.mxu0 %v2566
  %2709 = vmatprep.subr.bf16.mxu0 %v2573
  %2710 = vmatpush1.bf16.msra.mxu0 %v2572
  %2711 = vmatprep.subr.bf16.mxu0 %v2579
  %2712 = vmatpush1.bf16.msra.mxu0 %v2578
  %2713 = vmatprep.subr.bf16.mxu0 %v2585
  %2714 = vmatpush1.bf16.msra.mxu0 %v2584
  %2715 = vmatprep.subr.bf16.mxu0 %v2591
  %2716 = vmatpush1.bf16.msra.mxu0 %v2590
  %2717 = vmatprep.subr.bf16.mxu0 %v2597
  %2718 = vmatpush1.bf16.msra.mxu0 %v2596
  %2719 = vmatprep.subr.bf16.mxu0 %v2603
  %2720 = vmatpush1.bf16.msra.mxu0 %v2602
  %2721 = vmatprep.subr.bf16.mxu0 %v2609
  %2722 = vmatpush1.bf16.msra.mxu0 %v2608
  %2723 = vmatprep.subr.bf16.mxu0 %v2615
  %2724 = vmatpush1.bf16.msra.mxu0 %v2614
  %2725 = vmatprep.mubr.bf16.mxu0 %v2678
  %2726 = vmatmul.mubr.bf16.gmra.mrb[0].mxu0 %v2677
  %v2727 = vpop.f32.mrb[0].mxu0
  %v2728 = vadd.f32 %v2640, %v2727
  %v2729 = vpop.f32.mrb[0].mxu0
  %v2730 = vadd.f32 %v2640, %v2729
  %v2731 = vpop.f32.mrb[0].mxu0
  %v2732 = vadd.f32 %v2645, %v2731
  %v2733 = vpop.f32.mrb[0].mxu0
  %v2734 = vadd.f32 %v2645, %v2733
  %2735 = vmatprep.mubr.bf16.mxu0 %v2681
  %2736 = vmatmul.mubr.bf16.gmra.mrb[0].mxu0 %v2680
  %v2737 = vpop.f32.mrb[0].mxu0
  %v2738 = vadd.f32 %v2650, %v2737
  %v2739 = vpop.f32.mrb[0].mxu0
  %v2740 = vadd.f32 %v2650, %v2739
  %v2741 = vpop.f32.mrb[0].mxu0
  %v2742 = vadd.f32 %v2655, %v2741
  %v2743 = vpop.f32.mrb[0].mxu0
  %v2744 = vadd.f32 %v2655, %v2743
  %2745 = vdwg.mxu0
  %2746 = vmatprep.subr.bf16.mxu0 %v2621
  %2747 = vmatpush1.bf16.msra.mxu0 %v2620
  %2748 = vmatprep.subr.bf16.mxu0 %v2627
  %2749 = vmatpush1.bf16.msra.mxu0 %v2626
  %2750 = vmatprep.subr.bf16.mxu0 0
  %2751 = vmatpush1.bf16.msra.mxu0 0
  %2752 = vmatprep.subr.bf16.mxu0 0
  %2753 = vmatpush1.bf16.msra.mxu0 0
  %2754 = vmatprep.subr.bf16.mxu0 0
  %2755 = vmatpush1.bf16.msra.mxu0 0
  %2756 = vmatprep.subr.bf16.mxu0 0
  %2757 = vmatpush1.bf16.msra.mxu0 0
  %2758 = vmatprep.subr.bf16.mxu0 0
  %2759 = vmatpush1.bf16.msra.mxu0 0
  %2760 = vmatprep.subr.bf16.mxu0 0
  %2761 = vmatpush1.bf16.msra.mxu0 0
  %2762 = vmatprep.subr.bf16.mxu0 0
  %2763 = vmatpush1.bf16.msra.mxu0 0
  %2764 = vmatprep.subr.bf16.mxu0 0
  %2765 = vmatpush1.bf16.msra.mxu0 0
  %2766 = vmatprep.subr.bf16.mxu0 0
  %2767 = vmatpush1.bf16.msra.mxu0 0
  %2768 = vmatprep.subr.bf16.mxu0 0
  %2769 = vmatpush1.bf16.msra.mxu0 0
  %2770 = vmatprep.subr.bf16.mxu0 0
  %2771 = vmatpush1.bf16.msra.mxu0 0
  %2772 = vmatprep.subr.bf16.mxu0 0
  %2773 = vmatpush1.bf16.msra.mxu0 0
  %2774 = vmatprep.subr.bf16.mxu0 0
  %2775 = vmatpush1.bf16.msra.mxu0 0
  %2776 = vmatprep.subr.bf16.mxu0 0
  %2777 = vmatpush1.bf16.msra.mxu0 0
  %2778 = vmatprep.mubr.bf16.mxu0 0
  %2779 = vmatmul.mubr.bf16.gmra.mrb[0].mxu0 %v2688
  %v2780 = vpop.f32.mrb[0].mxu0
  %v2781 = vadd.f32 %v2728, %v2780
  %v2782 = vpop.f32.mrb[0].mxu0
  %v2783 = vadd.f32 %v2730, %v2782
  %v2784 = vpop.f32.mrb[0].mxu0
  %v2785 = vadd.f32 %v2732, %v2784
  %v2786 = vpop.f32.mrb[0].mxu0
  %v2787 = vadd.f32 %v2734, %v2786
  %2788 = vmatprep.mubr.bf16.mxu0 0
  %2789 = vmatmul.mubr.bf16.gmra.mrb[0].mxu0 %v2691
  %v2790 = vpop.f32.mrb[0].mxu0
  %v2791 = vadd.f32 %v2738, %v2790
  %v2792 = vpop.f32.mrb[0].mxu0
  %v2793 = vadd.f32 %v2740, %v2792
  %v2794 = vpop.f32.mrb[0].mxu0
  %v2795 = vadd.f32 %v2742, %v2794
  %v2796 = vpop.f32.mrb[0].mxu0
  %v2797 = vadd.f32 %v2744, %v2796
  %2798 = vdwg.mxu0
  %2799 = vmatprep.subr.bf16.mxu0 %v2527
  %2800 = vmatpush1.bf16.msra.mxu0 %v2526
  %2801 = vmatprep.subr.bf16.mxu0 %v2533
  %2802 = vmatpush1.bf16.msra.mxu0 %v2532
  %2803 = vmatprep.subr.bf16.mxu0 %v2539
  %2804 = vmatpush1.bf16.msra.mxu0 %v2538
  %2805 = vmatprep.subr.bf16.mxu0 %v2545
  %2806 = vmatpush1.bf16.msra.mxu0 %v2544
  %2807 = vmatprep.subr.bf16.mxu0 %v2551
  %2808 = vmatpush1.bf16.msra.mxu0 %v2550
  %2809 = vmatprep.subr.bf16.mxu0 %v2557
  %2810 = vmatpush1.bf16.msra.mxu0 %v2556
  %2811 = vmatprep.subr.bf16.mxu0 %v2563
  %2812 = vmatpush1.bf16.msra.mxu0 %v2562
  %2813 = vmatprep.subr.bf16.mxu0 %v2569
  %2814 = vmatpush1.bf16.msra.mxu0 %v2568
  %2815 = vmatprep.subr.bf16.mxu0 %v2575
  %2816 = vmatpush1.bf16.msra.mxu0 %v2574
  %2817 = vmatprep.subr.bf16.mxu0 %v2581
  %2818 = vmatpush1.bf16.msra.mxu0 %v2580
  %2819 = vmatprep.subr.bf16.mxu0 %v2587
  %2820 = vmatpush1.bf16.msra.mxu0 %v2586
  %2821 = vmatprep.subr.bf16.mxu0 %v2593
  %2822 = vmatpush1.bf16.msra.mxu0 %v2592
  %2823 = vmatprep.subr.bf16.mxu0 %v2599
  %2824 = vmatpush1.bf16.msra.mxu0 %v2598
  %2825 = vmatprep.subr.bf16.mxu0 %v2605
  %2826 = vmatpush1.bf16.msra.mxu0 %v2604
  %2827 = vmatprep.subr.bf16.mxu0 %v2611
  %2828 = vmatpush1.bf16.msra.mxu0 %v2610
  %2829 = vmatprep.subr.bf16.mxu0 %v2617
  %2830 = vmatpush1.bf16.msra.mxu0 %v2616
  %2831 = vmatprep.mubr.bf16.mxu0 %v2678
  %2832 = vmatmul.mubr.bf16.gmra.mrb[0].mxu0 %v2677
  %v2833 = vpop.f32.mrb[0].mxu0
  %v2834 = vadd.f32 %v2640, %v2833
  %v2835 = vpop.f32.mrb[0].mxu0
  %v2836 = vadd.f32 %v2640, %v2835
  %v2837 = vpop.f32.mrb[0].mxu0
  %v2838 = vadd.f32 %v2645, %v2837
  %v2839 = vpop.f32.mrb[0].mxu0
  %v2840 = vadd.f32 %v2645, %v2839
  %2841 = vmatprep.mubr.bf16.mxu0 %v2681
  %2842 = vmatmul.mubr.bf16.gmra.mrb[0].mxu0 %v2680
  %v2843 = vpop.f32.mrb[0].mxu0
  %v2844 = vadd.f32 %v2650, %v2843
  %v2845 = vpop.f32.mrb[0].mxu0
  %v2846 = vadd.f32 %v2650, %v2845
  %v2847 = vpop.f32.mrb[0].mxu0
  %v2848 = vadd.f32 %v2655, %v2847
  %v2849 = vpop.f32.mrb[0].mxu0
  %v2850 = vadd.f32 %v2655, %v2849
  %2851 = vdwg.mxu0
  %2852 = vmatprep.subr.bf16.mxu0 %v2623
  %2853 = vmatpush1.bf16.msra.mxu0 %v2622
  %2854 = vmatprep.subr.bf16.mxu0 %v2629
  %2855 = vmatpush1.bf16.msra.mxu0 %v2628
  %2856 = vmatprep.subr.bf16.mxu0 0
  %2857 = vmatpush1.bf16.msra.mxu0 0
  %2858 = vmatprep.subr.bf16.mxu0 0
  %2859 = vmatpush1.bf16.msra.mxu0 0
  %2860 = vmatprep.subr.bf16.mxu0 0
  %2861 = vmatpush1.bf16.msra.mxu0 0
  %2862 = vmatprep.subr.bf16.mxu0 0
  %2863 = vmatpush1.bf16.msra.mxu0 0
  %2864 = vmatprep.subr.bf16.mxu0 0
  %2865 = vmatpush1.bf16.msra.mxu0 0
  %2866 = vmatprep.subr.bf16.mxu0 0
  %2867 = vmatpush1.bf16.msra.mxu0 0
  %2868 = vmatprep.subr.bf16.mxu0 0
  %2869 = vmatpush1.bf16.msra.mxu0 0
  %2870 = vmatprep.subr.bf16.mxu0 0
  %2871 = vmatpush1.bf16.msra.mxu0 0
  %2872 = vmatprep.subr.bf16.mxu0 0
  %2873 = vmatpush1.bf16.msra.mxu0 0
  %2874 = vmatprep.subr.bf16.mxu0 0
  %2875 = vmatpush1.bf16.msra.mxu0 0
  %2876 = vmatprep.subr.bf16.mxu0 0
  %2877 = vmatpush1.bf16.msra.mxu0 0
  %2878 = vmatprep.subr.bf16.mxu0 0
  %2879 = vmatpush1.bf16.msra.mxu0 0
  %2880 = vmatprep.subr.bf16.mxu0 0
  %2881 = vmatpush1.bf16.msra.mxu0 0
  %2882 = vmatprep.subr.bf16.mxu0 0
  %2883 = vmatpush1.bf16.msra.mxu0 0
  %2884 = vmatprep.mubr.bf16.mxu0 0
  %2885 = vmatmul.mubr.bf16.gmra.mrb[0].mxu0 %v2688
  %v2886 = vpop.f32.mrb[0].mxu0
  %v2887 = vadd.f32 %v2834, %v2886
  %v2888 = vpop.f32.mrb[0].mxu0
  %v2889 = vadd.f32 %v2836, %v2888
  %v2890 = vpop.f32.mrb[0].mxu0
  %v2891 = vadd.f32 %v2838, %v2890
  %v2892 = vpop.f32.mrb[0].mxu0
  %v2893 = vadd.f32 %v2840, %v2892
  %2894 = vmatprep.mubr.bf16.mxu0 0
  %2895 = vmatmul.mubr.bf16.gmra.mrb[0].mxu0 %v2691
  %v2896 = vpop.f32.mrb[0].mxu0
  %v2897 = vadd.f32 %v2844, %v2896
  %v2898 = vpop.f32.mrb[0].mxu0
  %v2899 = vadd.f32 %v2846, %v2898
  %v2900 = vpop.f32.mrb[0].mxu0
  %v2901 = vadd.f32 %v2848, %v2900
  %v2902 = vpop.f32.mrb[0].mxu0
  %v2903 = vadd.f32 %v2850, %v2902
  %2904 = vdwg.mxu0
  %2905 = vmatprep.subr.bf16.mxu0 %v2529
  %2906 = vmatpush1.bf16.msra.mxu0 %v2528
  %2907 = vmatprep.subr.bf16.mxu0 %v2535
  %2908 = vmatpush1.bf16.msra.mxu0 %v2534
  %2909 = vmatprep.subr.bf16.mxu0 %v2541
  %2910 = vmatpush1.bf16.msra.mxu0 %v2540
  %2911 = vmatprep.subr.bf16.mxu0 %v2547
  %2912 = vmatpush1.bf16.msra.mxu0 %v2546
  %2913 = vmatprep.subr.bf16.mxu0 %v2553
  %2914 = vmatpush1.bf16.msra.mxu0 %v2552
  %2915 = vmatprep.subr.bf16.mxu0 %v2559
  %2916 = vmatpush1.bf16.msra.mxu0 %v2558
  %2917 = vmatprep.subr.bf16.mxu0 %v2565
  %2918 = vmatpush1.bf16.msra.mxu0 %v2564
  %2919 = vmatprep.subr.bf16.mxu0 %v2571
  %2920 = vmatpush1.bf16.msra.mxu0 %v2570
  %2921 = vmatprep.subr.bf16.mxu0 %v2577
  %2922 = vmatpush1.bf16.msra.mxu0 %v2576
  %2923 = vmatprep.subr.bf16.mxu0 %v2583
  %2924 = vmatpush1.bf16.msra.mxu0 %v2582
  %2925 = vmatprep.subr.bf16.mxu0 %v2589
  %2926 = vmatpush1.bf16.msra.mxu0 %v2588
  %2927 = vmatprep.subr.bf16.mxu0 %v2595
  %2928 = vmatpush1.bf16.msra.mxu0 %v2594
  %2929 = vmatprep.subr.bf16.mxu0 %v2601
  %2930 = vmatpush1.bf16.msra.mxu0 %v2600
  %2931 = vmatprep.subr.bf16.mxu0 %v2607
  %2932 = vmatpush1.bf16.msra.mxu0 %v2606
  %2933 = vmatprep.subr.bf16.mxu0 %v2613
  %2934 = vmatpush1.bf16.msra.mxu0 %v2612
  %2935 = vmatprep.subr.bf16.mxu0 %v2619
  %2936 = vmatpush1.bf16.msra.mxu0 %v2618
  %2937 = vmatprep.mubr.bf16.mxu0 %v2678
  %2938 = vmatmul.mubr.bf16.gmra.mrb[0].mxu0 %v2677
  %v2939 = vpop.f32.mrb[0].mxu0
  %v2940 = vadd.f32 %v2640, %v2939
  %v2941 = vpop.f32.mrb[0].mxu0
  %v2942 = vadd.f32 %v2640, %v2941
  %v2943 = vpop.f32.mrb[0].mxu0
  %v2944 = vadd.f32 %v2645, %v2943
  %v2945 = vpop.f32.mrb[0].mxu0
  %v2946 = vadd.f32 %v2645, %v2945
  %2947 = vmatprep.mubr.bf16.mxu0 %v2681
  %2948 = vmatmul.mubr.bf16.gmra.mrb[0].mxu0 %v2680
  %v2949 = vpop.f32.mrb[0].mxu0
  %v2950 = vadd.f32 %v2650, %v2949
  %v2951 = vpop.f32.mrb[0].mxu0
  %v2952 = vadd.f32 %v2650, %v2951
  %v2953 = vpop.f32.mrb[0].mxu0
  %v2954 = vadd.f32 %v2655, %v2953
  %v2955 = vpop.f32.mrb[0].mxu0
  %v2956 = vadd.f32 %v2655, %v2955
  %2957 = vdwg.mxu0
  %2958 = vmatprep.subr.bf16.mxu0 %v2625
  %2959 = vmatpush1.bf16.msra.mxu0 %v2624
  %2960 = vmatprep.subr.bf16.mxu0 %v2631
  %2961 = vmatpush1.bf16.msra.mxu0 %v2630
  %2962 = vmatprep.subr.bf16.mxu0 0
  %2963 = vmatpush1.bf16.msra.mxu0 0
  %2964 = vmatprep.subr.bf16.mxu0 0
  %2965 = vmatpush1.bf16.msra.mxu0 0
  %2966 = vmatprep.subr.bf16.mxu0 0
  %2967 = vmatpush1.bf16.msra.mxu0 0
  %2968 = vmatprep.subr.bf16.mxu0 0
  %2969 = vmatpush1.bf16.msra.mxu0 0
  %2970 = vmatprep.subr.bf16.mxu0 0
  %2971 = vmatpush1.bf16.msra.mxu0 0
  %2972 = vmatprep.subr.bf16.mxu0 0
  %2973 = vmatpush1.bf16.msra.mxu0 0
  %2974 = vmatprep.subr.bf16.mxu0 0
  %2975 = vmatpush1.bf16.msra.mxu0 0
  %2976 = vmatprep.subr.bf16.mxu0 0
  %2977 = vmatpush1.bf16.msra.mxu0 0
  %2978 = vmatprep.subr.bf16.mxu0 0
  %2979 = vmatpush1.bf16.msra.mxu0 0
  %2980 = vmatprep.subr.bf16.mxu0 0
  %2981 = vmatpush1.bf16.msra.mxu0 0
  %2982 = vmatprep.subr.bf16.mxu0 0
  %2983 = vmatpush1.bf16.msra.mxu0 0
  %2984 = vmatprep.subr.bf16.mxu0 0
  %2985 = vmatpush1.bf16.msra.mxu0 0
  %2986 = vmatprep.subr.bf16.mxu0 0
  %2987 = vmatpush1.bf16.msra.mxu0 0
  %2988 = vmatprep.subr.bf16.mxu0 0
  %2989 = vmatpush1.bf16.msra.mxu0 0
  %2990 = vmatprep.mubr.bf16.mxu0 0
  %2991 = vmatmul.mubr.bf16.gmra.mrb[0].mxu0 %v2688
  %v2992 = vpop.f32.mrb[0].mxu0
  %v2993 = vadd.f32 %v2940, %v2992
  %v2994 = vpop.f32.mrb[0].mxu0
  %v2995 = vadd.f32 %v2942, %v2994
  %v2996 = vpop.f32.mrb[0].mxu0
  %v2997 = vadd.f32 %v2944, %v2996
  %v2998 = vpop.f32.mrb[0].mxu0
  %v2999 = vadd.f32 %v2946, %v2998
  %3000 = vmatprep.mubr.bf16.mxu0 0
  %3001 = vmatmul.mubr.bf16.gmra.mrb[0].mxu0 %v2691
  %v3002 = vpop.f32.mrb[0].mxu0
  %v3003 = vadd.f32 %v2950, %v3002
  %v3004 = vpop.f32.mrb[0].mxu0
  %v3005 = vadd.f32 %v2952, %v3004
  %v3006 = vpop.f32.mrb[0].mxu0
  %v3007 = vadd.f32 %v2954, %v3006
  %v3008 = vpop.f32.mrb[0].mxu0
  %v3009 = vadd.f32 %v2956, %v3008
  %3010 = vdwg.mxu0
  %v3011 = vmax.f32 %v2781, 0.0
  %v3012 = vmax.f32 %v2783, 0.0
  %v3013 = vmax.f32 %v2887, 0.0
  %v3014 = vmax.f32 %v2889, 0.0
  %v3015 = vmax.f32 %v2993, 0.0
  %v3016 = vmax.f32 %v2995, 0.0
  %v3017 = vmax.f32 %v2785, 0.0
  %v3018 = vmax.f32 %v2787, 0.0
  %v3019 = vmax.f32 %v2891, 0.0
  %v3020 = vmax.f32 %v2893, 0.0
  %v3021 = vmax.f32 %v2997, 0.0
  %v3022 = vmax.f32 %v2999, 0.0
  %v3023 = vmax.f32 %v2791, 0.0
  %v3024 = vmax.f32 %v2793, 0.0
  %v3025 = vmax.f32 %v2897, 0.0
  %v3026 = vmax.f32 %v2899, 0.0
  %v3027 = vmax.f32 %v3003, 0.0
  %v3028 = vmax.f32 %v3005, 0.0
  %v3029 = vmax.f32 %v2795, 0.0
  %v3030 = vmax.f32 %v2797, 0.0
  %v3031 = vmax.f32 %v2901, 0.0
  %v3032 = vmax.f32 %v2903, 0.0
  %v3033 = vmax.f32 %v3007, 0.0
  %v3034 = vmax.f32 %v3009, 0.0
  %s3035 = scalar_lea.vmem %s4, 32
  %v3036 = vld [vmem:[%s3035] sm:$0xff]
  %v3037 = vld [vmem:[%s3035 + $0x8] sm:$0xff]
  %v3038 = vld [vmem:[%s3035 + $0x10] sm:$0xff]
  %v3039 = vld [vmem:[%s3035 + $0x18] sm:$0xff]
  %s3040 = scalar_lea.vmem %s5, 32
  %v3041 = vld [vmem:[%s3040] sm:$0xff]
  %v3042 = vld [vmem:[%s3040 + $0x8] sm:$0xff]
  %v3043 = vld [vmem:[%s3040 + $0x10] sm:$0xff]
  %v3044 = vld [vmem:[%s3040 + $0x18] sm:$0xff]
  %v3045 = vmul.f32 %v3011, %v1448
  %v3046 = vmul.f32 %v3012, %v1452
  %v3047 = vmul.f32 %v3013, %v1456
  %v3048 = vmul.f32 %v3014, %v1460
  %v3049 = vmul.f32 %v3015, %v1464
  %v3050 = vmul.f32 %v3016, %v1468
  %v3051 = vmul.f32 %v3017, %v1448
  %v3052 = vmul.f32 %v3018, %v1452
  %v3053 = vmul.f32 %v3019, %v1456
  %v3054 = vmul.f32 %v3020, %v1460
  %v3055 = vmul.f32 %v3021, %v1464
  %v3056 = vmul.f32 %v3022, %v1468
  %v3057 = vmul.f32 %v3023, %v1448
  %v3058 = vmul.f32 %v3024, %v1452
  %v3059 = vmul.f32 %v3025, %v1456
  %v3060 = vmul.f32 %v3026, %v1460
  %v3061 = vmul.f32 %v3027, %v1464
  %v3062 = vmul.f32 %v3028, %v1468
  %v3063 = vmul.f32 %v3029, %v1448
  %v3064 = vmul.f32 %v3030, %v1452
  %v3065 = vmul.f32 %v3031, %v1456
  %v3066 = vmul.f32 %v3032, %v1460
  %v3067 = vmul.f32 %v3033, %v1464
  %v3068 = vmul.f32 %v3034, %v1468
  %v3069 = vadd.f32 %v3045, %v3046
  %v3070 = vadd.f32 %v3069, %v3047
  %v3071 = vadd.f32 %v3070, %v3048
  %v3072 = vadd.f32 %v3071, %v3049
  %v3073 = vadd.f32 %v3072, %v3050
  %3074 = vadd.xlane.f32.xlu0 %v3073
  %v3075 = vpop.xlane.xlu0 %3074
  %v3076 = vadd.f32 %v3051, %v3052
  %v3077 = vadd.f32 %v3076, %v3053
  %v3078 = vadd.f32 %v3077, %v3054
  %v3079 = vadd.f32 %v3078, %v3055
  %v3080 = vadd.f32 %v3079, %v3056
  %3081 = vadd.xlane.f32.xlu0 %v3080
  %v3082 = vpop.xlane.xlu0 %3081
  %v3083 = vadd.f32 %v3057, %v3058
  %v3084 = vadd.f32 %v3083, %v3059
  %v3085 = vadd.f32 %v3084, %v3060
  %v3086 = vadd.f32 %v3085, %v3061
  %v3087 = vadd.f32 %v3086, %v3062
  %3088 = vadd.xlane.f32.xlu0 %v3087
  %v3089 = vpop.xlane.xlu0 %3088
  %v3090 = vadd.f32 %v3063, %v3064
  %v3091 = vadd.f32 %v3090, %v3065
  %v3092 = vadd.f32 %v3091, %v3066
  %v3093 = vadd.f32 %v3092, %v3067
  %v3094 = vadd.f32 %v3093, %v3068
  %3095 = vadd.xlane.f32.xlu0 %v3094
  %v3096 = vpop.xlane.xlu0 %3095
  %v3097 = vmul.f32 %v3045, %v3011
  %v3098 = vmul.f32 %v3046, %v3012
  %v3099 = vmul.f32 %v3047, %v3013
  %v3100 = vmul.f32 %v3048, %v3014
  %v3101 = vmul.f32 %v3049, %v3015
  %v3102 = vmul.f32 %v3050, %v3016
  %v3103 = vmul.f32 %v3051, %v3017
  %v3104 = vmul.f32 %v3052, %v3018
  %v3105 = vmul.f32 %v3053, %v3019
  %v3106 = vmul.f32 %v3054, %v3020
  %v3107 = vmul.f32 %v3055, %v3021
  %v3108 = vmul.f32 %v3056, %v3022
  %v3109 = vmul.f32 %v3057, %v3023
  %v3110 = vmul.f32 %v3058, %v3024
  %v3111 = vmul.f32 %v3059, %v3025
  %v3112 = vmul.f32 %v3060, %v3026
  %v3113 = vmul.f32 %v3061, %v3027
  %v3114 = vmul.f32 %v3062, %v3028
  %v3115 = vmul.f32 %v3063, %v3029
  %v3116 = vmul.f32 %v3064, %v3030
  %v3117 = vmul.f32 %v3065, %v3031
  %v3118 = vmul.f32 %v3066, %v3032
  %v3119 = vmul.f32 %v3067, %v3033
  %v3120 = vmul.f32 %v3068, %v3034
  %v3121 = vadd.f32 %v3097, %v3098
  %v3122 = vadd.f32 %v3121, %v3099
  %v3123 = vadd.f32 %v3122, %v3100
  %v3124 = vadd.f32 %v3123, %v3101
  %v3125 = vadd.f32 %v3124, %v3102
  %3126 = vadd.xlane.f32.xlu0 %v3125
  %v3127 = vpop.xlane.xlu0 %3126
  %v3128 = vadd.f32 %v3103, %v3104
  %v3129 = vadd.f32 %v3128, %v3105
  %v3130 = vadd.f32 %v3129, %v3106
  %v3131 = vadd.f32 %v3130, %v3107
  %v3132 = vadd.f32 %v3131, %v3108
  %3133 = vadd.xlane.f32.xlu0 %v3132
  %v3134 = vpop.xlane.xlu0 %3133
  %v3135 = vadd.f32 %v3109, %v3110
  %v3136 = vadd.f32 %v3135, %v3111
  %v3137 = vadd.f32 %v3136, %v3112
  %v3138 = vadd.f32 %v3137, %v3113
  %v3139 = vadd.f32 %v3138, %v3114
  %3140 = vadd.xlane.f32.xlu0 %v3139
  %v3141 = vpop.xlane.xlu0 %3140
  %v3142 = vadd.f32 %v3115, %v3116
  %v3143 = vadd.f32 %v3142, %v3117
  %v3144 = vadd.f32 %v3143, %v3118
  %v3145 = vadd.f32 %v3144, %v3119
  %v3146 = vadd.f32 %v3145, %v3120
  %3147 = vadd.xlane.f32.xlu0 %v3146
  %v3148 = vpop.xlane.xlu0 %3147
  %v3149 = vmul.f32 %v3075, 0.001953125
  %v3150 = vmul.f32 %v3082, 0.001953125
  %v3151 = vmul.f32 %v3089, 0.001953125
  %v3152 = vmul.f32 %v3096, 0.001953125
  %v3153 = vmul.f32 %v3127, 0.001953125
  %v3154 = vmul.f32 %v3134, 0.001953125
  %v3155 = vmul.f32 %v3141, 0.001953125
  %v3156 = vmul.f32 %v3148, 0.001953125
  %v3157 = vmul.f32 %v3149, %v3149
  %v3158 = vmul.f32 %v3150, %v3150
  %v3159 = vmul.f32 %v3151, %v3151
  %v3160 = vmul.f32 %v3152, %v3152
  %v3161 = vsub.f32 %v3153, %v3157
  %v3162 = vsub.f32 %v3154, %v3158
  %v3163 = vsub.f32 %v3155, %v3159
  %v3164 = vsub.f32 %v3156, %v3160
  %v3165 = vmax.f32 %v3161, 0.0
  %v3166 = vmax.f32 %v3162, 0.0
  %v3167 = vmax.f32 %v3163, 0.0
  %v3168 = vmax.f32 %v3164, 0.0
  %v3169 = vadd.f32 %v3165, 1e-05
  %v3170 = vadd.f32 %v3166, 1e-05
  %v3171 = vadd.f32 %v3167, 1e-05
  %v3172 = vadd.f32 %v3168, 1e-05
  %v3173 = vrsqrt.pop %v3169
  %v3174 = vrsqrt.pop %v3170
  %v3175 = vrsqrt.pop %v3171
  %v3176 = vrsqrt.pop %v3172
  %v3177 = vmul.f32 %v3036, %v3173
  %v3178 = vmul.f32 %v3037, %v3174
  %v3179 = vmul.f32 %v3038, %v3175
  %v3180 = vmul.f32 %v3039, %v3176
  %v3181 = vmul.f32 %v3149, %v3177
  %v3182 = vmul.f32 %v3150, %v3178
  %v3183 = vmul.f32 %v3151, %v3179
  %v3184 = vmul.f32 %v3152, %v3180
  %v3185 = vsub.f32 %v3041, %v3181
  %v3186 = vsub.f32 %v3042, %v3182
  %v3187 = vsub.f32 %v3043, %v3183
  %v3188 = vsub.f32 %v3044, %v3184
  %3190 = vset.pattern.permute.xlu0 0
  %3191 = vperm.xlu0 %3190, %v3177
  %v3192 = vpop.permute.xlu0 %3191
  %3195 = vset.pattern.permute.xlu0 0
  %3196 = vperm.xlu0 %3195, %v3178
  %v3197 = vpop.permute.xlu0 %3196
  %3200 = vset.pattern.permute.xlu0 0
  %3201 = vperm.xlu0 %3200, %v3179
  %v3202 = vpop.permute.xlu0 %3201
  %3205 = vset.pattern.permute.xlu0 0
  %3206 = vperm.xlu0 %3205, %v3180
  %v3207 = vpop.permute.xlu0 %3206
  %v3209 = vmul.f32 %v3045, %v3192
  %v3210 = vmul.f32 %v3046, %v3192
  %v3211 = vmul.f32 %v3047, %v3192
  %v3212 = vmul.f32 %v3048, %v3192
  %v3213 = vmul.f32 %v3049, %v3192
  %v3214 = vmul.f32 %v3050, %v3192
  %v3215 = vmul.f32 %v3051, %v3197
  %v3216 = vmul.f32 %v3052, %v3197
  %v3217 = vmul.f32 %v3053, %v3197
  %v3218 = vmul.f32 %v3054, %v3197
  %v3219 = vmul.f32 %v3055, %v3197
  %v3220 = vmul.f32 %v3056, %v3197
  %v3221 = vmul.f32 %v3057, %v3202
  %v3222 = vmul.f32 %v3058, %v3202
  %v3223 = vmul.f32 %v3059, %v3202
  %v3224 = vmul.f32 %v3060, %v3202
  %v3225 = vmul.f32 %v3061, %v3202
  %v3226 = vmul.f32 %v3062, %v3202
  %v3227 = vmul.f32 %v3063, %v3207
  %v3228 = vmul.f32 %v3064, %v3207
  %v3229 = vmul.f32 %v3065, %v3207
  %v3230 = vmul.f32 %v3066, %v3207
  %v3231 = vmul.f32 %v3067, %v3207
  %v3232 = vmul.f32 %v3068, %v3207
  %3234 = vset.pattern.permute.xlu0 0
  %3235 = vperm.xlu0 %3234, %v3185
  %v3236 = vpop.permute.xlu0 %3235
  %3239 = vset.pattern.permute.xlu0 0
  %3240 = vperm.xlu0 %3239, %v3186
  %v3241 = vpop.permute.xlu0 %3240
  %3244 = vset.pattern.permute.xlu0 0
  %3245 = vperm.xlu0 %3244, %v3187
  %v3246 = vpop.permute.xlu0 %3245
  %3249 = vset.pattern.permute.xlu0 0
  %3250 = vperm.xlu0 %3249, %v3188
  %v3251 = vpop.permute.xlu0 %3250
  %v3253 = vmul.f32 %v3236, %v1448
  %v3254 = vmul.f32 %v3236, %v1452
  %v3255 = vmul.f32 %v3236, %v1456
  %v3256 = vmul.f32 %v3236, %v1460
  %v3257 = vmul.f32 %v3236, %v1464
  %v3258 = vmul.f32 %v3236, %v1468
  %v3259 = vmul.f32 %v3241, %v1448
  %v3260 = vmul.f32 %v3241, %v1452
  %v3261 = vmul.f32 %v3241, %v1456
  %v3262 = vmul.f32 %v3241, %v1460
  %v3263 = vmul.f32 %v3241, %v1464
  %v3264 = vmul.f32 %v3241, %v1468
  %v3265 = vmul.f32 %v3246, %v1448
  %v3266 = vmul.f32 %v3246, %v1452
  %v3267 = vmul.f32 %v3246, %v1456
  %v3268 = vmul.f32 %v3246, %v1460
  %v3269 = vmul.f32 %v3246, %v1464
  %v3270 = vmul.f32 %v3246, %v1468
  %v3271 = vmul.f32 %v3251, %v1448
  %v3272 = vmul.f32 %v3251, %v1452
  %v3273 = vmul.f32 %v3251, %v1456
  %v3274 = vmul.f32 %v3251, %v1460
  %v3275 = vmul.f32 %v3251, %v1464
  %v3276 = vmul.f32 %v3251, %v1468
  %v3277 = vadd.f32 %v3209, %v3253
  %v3278 = vadd.f32 %v3210, %v3254
  %v3279 = vadd.f32 %v3211, %v3255
  %v3280 = vadd.f32 %v3212, %v3256
  %v3281 = vadd.f32 %v3213, %v3257
  %v3282 = vadd.f32 %v3214, %v3258
  %v3283 = vadd.f32 %v3215, %v3259
  %v3284 = vadd.f32 %v3216, %v3260
  %v3285 = vadd.f32 %v3217, %v3261
  %v3286 = vadd.f32 %v3218, %v3262
  %v3287 = vadd.f32 %v3219, %v3263
  %v3288 = vadd.f32 %v3220, %v3264
  %v3289 = vadd.f32 %v3221, %v3265
  %v3290 = vadd.f32 %v3222, %v3266
  %v3291 = vadd.f32 %v3223, %v3267
  %v3292 = vadd.f32 %v3224, %v3268
  %v3293 = vadd.f32 %v3225, %v3269
  %v3294 = vadd.f32 %v3226, %v3270
  %v3295 = vadd.f32 %v3227, %v3271
  %v3296 = vadd.f32 %v3228, %v3272
  %v3297 = vadd.f32 %v3229, %v3273
  %v3298 = vadd.f32 %v3230, %v3274
  %v3299 = vadd.f32 %v3231, %v3275
  %v3300 = vadd.f32 %v3232, %v3276
  %v3301 = vpack.c.bf16 %v3283, %v3277
  %v3302 = vpack.c.bf16 %v3284, %v3278
  %v3303 = vpack.c.bf16 %v3285, %v3279
  %v3304 = vpack.c.bf16 %v3286, %v3280
  %v3305 = vpack.c.bf16 %v3287, %v3281
  %v3306 = vpack.c.bf16 %v3288, %v3282
  %v3307 = vpack.c.bf16 %v3295, %v3289
  %v3308 = vpack.c.bf16 %v3296, %v3290
  %v3309 = vpack.c.bf16 %v3297, %v3291
  %v3310 = vpack.c.bf16 %v3298, %v3292
  %v3311 = vpack.c.bf16 %v3299, %v3293
  %v3312 = vpack.c.bf16 %v3300, %v3294
  %3313 = vst [vmem:[#allocation2 + $0x8] sm:$0xff] %v3301
  %3314 = vst [vmem:[#allocation2 + $0x10] sm:$0xff] %v3302
  %3315 = vst [vmem:[#allocation2 + $0x18] sm:$0xff] %v3303
  %3316 = vst [vmem:[#allocation2 + $0x20] sm:$0xff] %v3304
  %3317 = vst [vmem:[#allocation2 + $0x28] sm:$0xff] %v3305
  %3318 = vst [vmem:[#allocation2 + $0x30] sm:$0xff] %v3306
  %3319 = vst [vmem:[#allocation2 + $0x48] sm:$0xff] %v3307
  %3320 = vst [vmem:[#allocation2 + $0x50] sm:$0xff] %v3308
  %3321 = vst [vmem:[#allocation2 + $0x58] sm:$0xff] %v3309
  %3322 = vst [vmem:[#allocation2 + $0x60] sm:$0xff] %v3310
  %3323 = vst [vmem:[#allocation2 + $0x68] sm:$0xff] %v3311
  %3324 = vst [vmem:[#allocation2 + $0x70] sm:$0xff] %v3312
  %v3325 = vld [vmem:[#allocation2 + $0x8] sm:$0xff]
  %v3326 = vld [vmem:[#allocation2 + $0x10] sm:$0xff]
  %v3327 = vld [vmem:[#allocation2 + $0x18] sm:$0xff]
  %v3328 = vld [vmem:[#allocation2 + $0x20] sm:$0xff]
  %v3329 = vld [vmem:[#allocation2 + $0x28] sm:$0xff]
  %v3330 = vld [vmem:[#allocation2 + $0x30] sm:$0xff]
  %v3331 = vld [vmem:[#allocation2 + $0x48] sm:$0xff]
  %v3332 = vld [vmem:[#allocation2 + $0x50] sm:$0xff]
  %v3333 = vld [vmem:[#allocation2 + $0x58] sm:$0xff]
  %v3334 = vld [vmem:[#allocation2 + $0x60] sm:$0xff]
  %v3335 = vld [vmem:[#allocation2 + $0x68] sm:$0xff]
  %v3336 = vld [vmem:[#allocation2 + $0x70] sm:$0xff]
  %v3337 = vld [vmem:[%s6] sm:$0xf]
  %v3338 = vld [vmem:[%s6 + $0x4] sm:$0xf]
  %v3339 = vld [vmem:[%s6 + $0x8] sm:$0xf]
  %v3340 = vld [vmem:[%s6 + $0xc] sm:$0xf]
  %v3341 = vld [vmem:[%s7] sm:$0xff]
  %v3342 = vld [vmem:[%s7 + $0x8] sm:$0xff]
  %v3343 = vld [vmem:[%s7 + $0x10] sm:$0xff]
  %v3344 = vld [vmem:[%s7 + $0x18] sm:$0xff]
  %3346 = vset.pattern.permute.xlu0 0
  %3347 = vperm.xlu0 %3346, %v3341
  %v3348 = vpop.permute.xlu0 %3347
  %3351 = vset.pattern.permute.xlu0 0
  %3352 = vperm.xlu0 %3351, %v3342
  %v3353 = vpop.permute.xlu0 %3352
  %3356 = vset.pattern.permute.xlu0 0
  %3357 = vperm.xlu0 %3356, %v3343
  %v3358 = vpop.permute.xlu0 %3357
  %3361 = vset.pattern.permute.xlu0 0
  %3362 = vperm.xlu0 %3361, %v3344
  %v3363 = vpop.permute.xlu0 %3362
  %v3369 = vunpack.c.l.b16 %v3337
  %v3370 = vunpack.c.l.b16 %v3338
  %v3371 = vunpack.c.l.b16 %v3339
  %v3372 = vunpack.c.l.b16 %v3340
  %v3373 = vpack.c.b16 %v3370, %v3369
  %v3374 = vpack.c.b16 %v3372, %v3371
  %v3376 = vsel %vm1087, %v3373, 0
  %v3379 = vsel %vm1087, %v3374, 0
  %3381 = vmatprep.subr.bf16.mxu0 %v3326
  %3382 = vmatpush1.bf16.msra.mxu0 %v3325
  %3383 = vmatprep.subr.bf16.mxu0 %v3332
  %3384 = vmatpush1.bf16.msra.mxu0 %v3331
  %3385 = vmatprep.subr.bf16.mxu0 0
  %3386 = vmatpush1.bf16.msra.mxu0 0
  %3387 = vmatprep.subr.bf16.mxu0 0
  %3388 = vmatpush1.bf16.msra.mxu0 0
  %3389 = vmatprep.subr.bf16.mxu0 0
  %3390 = vmatpush1.bf16.msra.mxu0 0
  %3391 = vmatprep.subr.bf16.mxu0 0
  %3392 = vmatpush1.bf16.msra.mxu0 0
  %3393 = vmatprep.subr.bf16.mxu0 0
  %3394 = vmatpush1.bf16.msra.mxu0 0
  %3395 = vmatprep.subr.bf16.mxu0 0
  %3396 = vmatpush1.bf16.msra.mxu0 0
  %3397 = vmatprep.subr.bf16.mxu0 0
  %3398 = vmatpush1.bf16.msra.mxu0 0
  %3399 = vmatprep.subr.bf16.mxu0 0
  %3400 = vmatpush1.bf16.msra.mxu0 0
  %3401 = vmatprep.subr.bf16.mxu0 0
  %3402 = vmatpush1.bf16.msra.mxu0 0
  %3403 = vmatprep.subr.bf16.mxu0 0
  %3404 = vmatpush1.bf16.msra.mxu0 0
  %3405 = vmatprep.subr.bf16.mxu0 0
  %3406 = vmatpush1.bf16.msra.mxu0 0
  %3407 = vmatprep.subr.bf16.mxu0 0
  %3408 = vmatpush1.bf16.msra.mxu0 0
  %3409 = vmatprep.subr.bf16.mxu0 0
  %3410 = vmatpush1.bf16.msra.mxu0 0
  %3411 = vmatprep.subr.bf16.mxu0 0
  %3412 = vmatpush1.bf16.msra.mxu0 0
  %3413 = vmatprep.mubr.bf16.mxu0 0
  %3414 = vmatmul.mubr.bf16.gmra.mrb[0].mxu0 %v3376
  %v3415 = vpop.f32.mrb[0].mxu0
  %v3416 = vadd.f32 %v3348, %v3415
  %v3417 = vpop.f32.mrb[0].mxu0
  %v3418 = vadd.f32 %v3348, %v3417
  %v3419 = vpop.f32.mrb[0].mxu0
  %v3420 = vadd.f32 %v3353, %v3419
  %v3421 = vpop.f32.mrb[0].mxu0
  %v3422 = vadd.f32 %v3353, %v3421
  %3423 = vmatprep.mubr.bf16.mxu0 0
  %3424 = vmatmul.mubr.bf16.gmra.mrb[0].mxu0 %v3379
  %v3425 = vpop.f32.mrb[0].mxu0
  %v3426 = vadd.f32 %v3358, %v3425
  %v3427 = vpop.f32.mrb[0].mxu0
  %v3428 = vadd.f32 %v3358, %v3427
  %v3429 = vpop.f32.mrb[0].mxu0
  %v3430 = vadd.f32 %v3363, %v3429
  %v3431 = vpop.f32.mrb[0].mxu0
  %v3432 = vadd.f32 %v3363, %v3431
  %3433 = vdwg.mxu0
  %3434 = vmatprep.subr.bf16.mxu0 %v3328
  %3435 = vmatpush1.bf16.msra.mxu0 %v3327
  %3436 = vmatprep.subr.bf16.mxu0 %v3334
  %3437 = vmatpush1.bf16.msra.mxu0 %v3333
  %3438 = vmatprep.subr.bf16.mxu0 0
  %3439 = vmatpush1.bf16.msra.mxu0 0
  %3440 = vmatprep.subr.bf16.mxu0 0
  %3441 = vmatpush1.bf16.msra.mxu0 0
  %3442 = vmatprep.subr.bf16.mxu0 0
  %3443 = vmatpush1.bf16.msra.mxu0 0
  %3444 = vmatprep.subr.bf16.mxu0 0
  %3445 = vmatpush1.bf16.msra.mxu0 0
  %3446 = vmatprep.subr.bf16.mxu0 0
  %3447 = vmatpush1.bf16.msra.mxu0 0
  %3448 = vmatprep.subr.bf16.mxu0 0
  %3449 = vmatpush1.bf16.msra.mxu0 0
  %3450 = vmatprep.subr.bf16.mxu0 0
  %3451 = vmatpush1.bf16.msra.mxu0 0
  %3452 = vmatprep.subr.bf16.mxu0 0
  %3453 = vmatpush1.bf16.msra.mxu0 0
  %3454 = vmatprep.subr.bf16.mxu0 0
  %3455 = vmatpush1.bf16.msra.mxu0 0
  %3456 = vmatprep.subr.bf16.mxu0 0
  %3457 = vmatpush1.bf16.msra.mxu0 0
  %3458 = vmatprep.subr.bf16.mxu0 0
  %3459 = vmatpush1.bf16.msra.mxu0 0
  %3460 = vmatprep.subr.bf16.mxu0 0
  %3461 = vmatpush1.bf16.msra.mxu0 0
  %3462 = vmatprep.subr.bf16.mxu0 0
  %3463 = vmatpush1.bf16.msra.mxu0 0
  %3464 = vmatprep.subr.bf16.mxu0 0
  %3465 = vmatpush1.bf16.msra.mxu0 0
  %3466 = vmatprep.mubr.bf16.mxu0 0
  %3467 = vmatmul.mubr.bf16.gmra.mrb[0].mxu0 %v3376
  %v3468 = vpop.f32.mrb[0].mxu0
  %v3469 = vadd.f32 %v3348, %v3468
  %v3470 = vpop.f32.mrb[0].mxu0
  %v3471 = vadd.f32 %v3348, %v3470
  %v3472 = vpop.f32.mrb[0].mxu0
  %v3473 = vadd.f32 %v3353, %v3472
  %v3474 = vpop.f32.mrb[0].mxu0
  %v3475 = vadd.f32 %v3353, %v3474
  %3476 = vmatprep.mubr.bf16.mxu0 0
  %3477 = vmatmul.mubr.bf16.gmra.mrb[0].mxu0 %v3379
  %v3478 = vpop.f32.mrb[0].mxu0
  %v3479 = vadd.f32 %v3358, %v3478
  %v3480 = vpop.f32.mrb[0].mxu0
  %v3481 = vadd.f32 %v3358, %v3480
  %v3482 = vpop.f32.mrb[0].mxu0
  %v3483 = vadd.f32 %v3363, %v3482
  %v3484 = vpop.f32.mrb[0].mxu0
  %v3485 = vadd.f32 %v3363, %v3484
  %3486 = vdwg.mxu0
  %3487 = vmatprep.subr.bf16.mxu0 %v3330
  %3488 = vmatpush1.bf16.msra.mxu0 %v3329
  %3489 = vmatprep.subr.bf16.mxu0 %v3336
  %3490 = vmatpush1.bf16.msra.mxu0 %v3335
  %3491 = vmatprep.subr.bf16.mxu0 0
  %3492 = vmatpush1.bf16.msra.mxu0 0
  %3493 = vmatprep.subr.bf16.mxu0 0
  %3494 = vmatpush1.bf16.msra.mxu0 0
  %3495 = vmatprep.subr.bf16.mxu0 0
  %3496 = vmatpush1.bf16.msra.mxu0 0
  %3497 = vmatprep.subr.bf16.mxu0 0
  %3498 = vmatpush1.bf16.msra.mxu0 0
  %3499 = vmatprep.subr.bf16.mxu0 0
  %3500 = vmatpush1.bf16.msra.mxu0 0
  %3501 = vmatprep.subr.bf16.mxu0 0
  %3502 = vmatpush1.bf16.msra.mxu0 0
  %3503 = vmatprep.subr.bf16.mxu0 0
  %3504 = vmatpush1.bf16.msra.mxu0 0
  %3505 = vmatprep.subr.bf16.mxu0 0
  %3506 = vmatpush1.bf16.msra.mxu0 0
  %3507 = vmatprep.subr.bf16.mxu0 0
  %3508 = vmatpush1.bf16.msra.mxu0 0
  %3509 = vmatprep.subr.bf16.mxu0 0
  %3510 = vmatpush1.bf16.msra.mxu0 0
  %3511 = vmatprep.subr.bf16.mxu0 0
  %3512 = vmatpush1.bf16.msra.mxu0 0
  %3513 = vmatprep.subr.bf16.mxu0 0
  %3514 = vmatpush1.bf16.msra.mxu0 0
  %3515 = vmatprep.subr.bf16.mxu0 0
  %3516 = vmatpush1.bf16.msra.mxu0 0
  %3517 = vmatprep.subr.bf16.mxu0 0
  %3518 = vmatpush1.bf16.msra.mxu0 0
  %3519 = vmatprep.mubr.bf16.mxu0 0
  %3520 = vmatmul.mubr.bf16.gmra.mrb[0].mxu0 %v3376
  %v3521 = vpop.f32.mrb[0].mxu0
  %v3522 = vadd.f32 %v3348, %v3521
  %v3523 = vpop.f32.mrb[0].mxu0
  %v3524 = vadd.f32 %v3348, %v3523
  %v3525 = vpop.f32.mrb[0].mxu0
  %v3526 = vadd.f32 %v3353, %v3525
  %v3527 = vpop.f32.mrb[0].mxu0
  %v3528 = vadd.f32 %v3353, %v3527
  %3529 = vmatprep.mubr.bf16.mxu0 0
  %3530 = vmatmul.mubr.bf16.gmra.mrb[0].mxu0 %v3379
  %v3531 = vpop.f32.mrb[0].mxu0
  %v3532 = vadd.f32 %v3358, %v3531
  %v3533 = vpop.f32.mrb[0].mxu0
  %v3534 = vadd.f32 %v3358, %v3533
  %v3535 = vpop.f32.mrb[0].mxu0
  %v3536 = vadd.f32 %v3363, %v3535
  %v3537 = vpop.f32.mrb[0].mxu0
  %v3538 = vadd.f32 %v3363, %v3537
  %3539 = vdwg.mxu0
  %v3540 = vld [vmem:[%s8] sm:$0xff]
  %v3541 = vld [vmem:[%s8 + $0x8] sm:$0xff]
  %v3542 = vld [vmem:[%s8 + $0x10] sm:$0xff]
  %v3543 = vld [vmem:[%s8 + $0x18] sm:$0xff]
  %v3544 = vld [vmem:[%s9] sm:$0xff]
  %v3545 = vld [vmem:[%s9 + $0x8] sm:$0xff]
  %v3546 = vld [vmem:[%s9 + $0x10] sm:$0xff]
  %v3547 = vld [vmem:[%s9 + $0x18] sm:$0xff]
  %v3548 = vmul.f32 %v3416, %v1448
  %v3549 = vmul.f32 %v3418, %v1452
  %v3550 = vmul.f32 %v3469, %v1456
  %v3551 = vmul.f32 %v3471, %v1460
  %v3552 = vmul.f32 %v3522, %v1464
  %v3553 = vmul.f32 %v3524, %v1468
  %v3554 = vmul.f32 %v3420, %v1448
  %v3555 = vmul.f32 %v3422, %v1452
  %v3556 = vmul.f32 %v3473, %v1456
  %v3557 = vmul.f32 %v3475, %v1460
  %v3558 = vmul.f32 %v3526, %v1464
  %v3559 = vmul.f32 %v3528, %v1468
  %v3560 = vmul.f32 %v3426, %v1448
  %v3561 = vmul.f32 %v3428, %v1452
  %v3562 = vmul.f32 %v3479, %v1456
  %v3563 = vmul.f32 %v3481, %v1460
  %v3564 = vmul.f32 %v3532, %v1464
  %v3565 = vmul.f32 %v3534, %v1468
  %v3566 = vmul.f32 %v3430, %v1448
  %v3567 = vmul.f32 %v3432, %v1452
  %v3568 = vmul.f32 %v3483, %v1456
  %v3569 = vmul.f32 %v3485, %v1460
  %v3570 = vmul.f32 %v3536, %v1464
  %v3571 = vmul.f32 %v3538, %v1468
  %v3572 = vadd.f32 %v3548, %v3549
  %v3573 = vadd.f32 %v3572, %v3550
  %v3574 = vadd.f32 %v3573, %v3551
  %v3575 = vadd.f32 %v3574, %v3552
  %v3576 = vadd.f32 %v3575, %v3553
  %3577 = vadd.xlane.f32.xlu0 %v3576
  %v3578 = vpop.xlane.xlu0 %3577
  %v3579 = vadd.f32 %v3554, %v3555
  %v3580 = vadd.f32 %v3579, %v3556
  %v3581 = vadd.f32 %v3580, %v3557
  %v3582 = vadd.f32 %v3581, %v3558
  %v3583 = vadd.f32 %v3582, %v3559
  %3584 = vadd.xlane.f32.xlu0 %v3583
  %v3585 = vpop.xlane.xlu0 %3584
  %v3586 = vadd.f32 %v3560, %v3561
  %v3587 = vadd.f32 %v3586, %v3562
  %v3588 = vadd.f32 %v3587, %v3563
  %v3589 = vadd.f32 %v3588, %v3564
  %v3590 = vadd.f32 %v3589, %v3565
  %3591 = vadd.xlane.f32.xlu0 %v3590
  %v3592 = vpop.xlane.xlu0 %3591
  %v3593 = vadd.f32 %v3566, %v3567
  %v3594 = vadd.f32 %v3593, %v3568
  %v3595 = vadd.f32 %v3594, %v3569
  %v3596 = vadd.f32 %v3595, %v3570
  %v3597 = vadd.f32 %v3596, %v3571
  %3598 = vadd.xlane.f32.xlu0 %v3597
  %v3599 = vpop.xlane.xlu0 %3598
  %v3600 = vmul.f32 %v3548, %v3416
  %v3601 = vmul.f32 %v3549, %v3418
  %v3602 = vmul.f32 %v3550, %v3469
  %v3603 = vmul.f32 %v3551, %v3471
  %v3604 = vmul.f32 %v3552, %v3522
  %v3605 = vmul.f32 %v3553, %v3524
  %v3606 = vmul.f32 %v3554, %v3420
  %v3607 = vmul.f32 %v3555, %v3422
  %v3608 = vmul.f32 %v3556, %v3473
  %v3609 = vmul.f32 %v3557, %v3475
  %v3610 = vmul.f32 %v3558, %v3526
  %v3611 = vmul.f32 %v3559, %v3528
  %v3612 = vmul.f32 %v3560, %v3426
  %v3613 = vmul.f32 %v3561, %v3428
  %v3614 = vmul.f32 %v3562, %v3479
  %v3615 = vmul.f32 %v3563, %v3481
  %v3616 = vmul.f32 %v3564, %v3532
  %v3617 = vmul.f32 %v3565, %v3534
  %v3618 = vmul.f32 %v3566, %v3430
  %v3619 = vmul.f32 %v3567, %v3432
  %v3620 = vmul.f32 %v3568, %v3483
  %v3621 = vmul.f32 %v3569, %v3485
  %v3622 = vmul.f32 %v3570, %v3536
  %v3623 = vmul.f32 %v3571, %v3538
  %v3624 = vadd.f32 %v3600, %v3601
  %v3625 = vadd.f32 %v3624, %v3602
  %v3626 = vadd.f32 %v3625, %v3603
  %v3627 = vadd.f32 %v3626, %v3604
  %v3628 = vadd.f32 %v3627, %v3605
  %3629 = vadd.xlane.f32.xlu0 %v3628
  %v3630 = vpop.xlane.xlu0 %3629
  %v3631 = vadd.f32 %v3606, %v3607
  %v3632 = vadd.f32 %v3631, %v3608
  %v3633 = vadd.f32 %v3632, %v3609
  %v3634 = vadd.f32 %v3633, %v3610
  %v3635 = vadd.f32 %v3634, %v3611
  %3636 = vadd.xlane.f32.xlu0 %v3635
  %v3637 = vpop.xlane.xlu0 %3636
  %v3638 = vadd.f32 %v3612, %v3613
  %v3639 = vadd.f32 %v3638, %v3614
  %v3640 = vadd.f32 %v3639, %v3615
  %v3641 = vadd.f32 %v3640, %v3616
  %v3642 = vadd.f32 %v3641, %v3617
  %3643 = vadd.xlane.f32.xlu0 %v3642
  %v3644 = vpop.xlane.xlu0 %3643
  %v3645 = vadd.f32 %v3618, %v3619
  %v3646 = vadd.f32 %v3645, %v3620
  %v3647 = vadd.f32 %v3646, %v3621
  %v3648 = vadd.f32 %v3647, %v3622
  %v3649 = vadd.f32 %v3648, %v3623
  %3650 = vadd.xlane.f32.xlu0 %v3649
  %v3651 = vpop.xlane.xlu0 %3650
  %v3652 = vmul.f32 %v3578, 0.001953125
  %v3653 = vmul.f32 %v3585, 0.001953125
  %v3654 = vmul.f32 %v3592, 0.001953125
  %v3655 = vmul.f32 %v3599, 0.001953125
  %v3656 = vmul.f32 %v3630, 0.001953125
  %v3657 = vmul.f32 %v3637, 0.001953125
  %v3658 = vmul.f32 %v3644, 0.001953125
  %v3659 = vmul.f32 %v3651, 0.001953125
  %v3660 = vmul.f32 %v3652, %v3652
  %v3661 = vmul.f32 %v3653, %v3653
  %v3662 = vmul.f32 %v3654, %v3654
  %v3663 = vmul.f32 %v3655, %v3655
  %v3664 = vsub.f32 %v3656, %v3660
  %v3665 = vsub.f32 %v3657, %v3661
  %v3666 = vsub.f32 %v3658, %v3662
  %v3667 = vsub.f32 %v3659, %v3663
  %v3668 = vmax.f32 %v3664, 0.0
  %v3669 = vmax.f32 %v3665, 0.0
  %v3670 = vmax.f32 %v3666, 0.0
  %v3671 = vmax.f32 %v3667, 0.0
  %v3672 = vadd.f32 %v3668, 1e-05
  %v3673 = vadd.f32 %v3669, 1e-05
  %v3674 = vadd.f32 %v3670, 1e-05
  %v3675 = vadd.f32 %v3671, 1e-05
  %v3676 = vrsqrt.pop %v3672
  %v3677 = vrsqrt.pop %v3673
  %v3678 = vrsqrt.pop %v3674
  %v3679 = vrsqrt.pop %v3675
  %v3680 = vmul.f32 %v3540, %v3676
  %v3681 = vmul.f32 %v3541, %v3677
  %v3682 = vmul.f32 %v3542, %v3678
  %v3683 = vmul.f32 %v3543, %v3679
  %v3684 = vmul.f32 %v3652, %v3680
  %v3685 = vmul.f32 %v3653, %v3681
  %v3686 = vmul.f32 %v3654, %v3682
  %v3687 = vmul.f32 %v3655, %v3683
  %v3688 = vsub.f32 %v3544, %v3684
  %v3689 = vsub.f32 %v3545, %v3685
  %v3690 = vsub.f32 %v3546, %v3686
  %v3691 = vsub.f32 %v3547, %v3687
  %3693 = vset.pattern.permute.xlu0 0
  %3694 = vperm.xlu0 %3693, %v3680
  %v3695 = vpop.permute.xlu0 %3694
  %3698 = vset.pattern.permute.xlu0 0
  %3699 = vperm.xlu0 %3698, %v3681
  %v3700 = vpop.permute.xlu0 %3699
  %3703 = vset.pattern.permute.xlu0 0
  %3704 = vperm.xlu0 %3703, %v3682
  %v3705 = vpop.permute.xlu0 %3704
  %3708 = vset.pattern.permute.xlu0 0
  %3709 = vperm.xlu0 %3708, %v3683
  %v3710 = vpop.permute.xlu0 %3709
  %v3712 = vmul.f32 %v3548, %v3695
  %v3713 = vmul.f32 %v3549, %v3695
  %v3714 = vmul.f32 %v3550, %v3695
  %v3715 = vmul.f32 %v3551, %v3695
  %v3716 = vmul.f32 %v3552, %v3695
  %v3717 = vmul.f32 %v3553, %v3695
  %v3718 = vmul.f32 %v3554, %v3700
  %v3719 = vmul.f32 %v3555, %v3700
  %v3720 = vmul.f32 %v3556, %v3700
  %v3721 = vmul.f32 %v3557, %v3700
  %v3722 = vmul.f32 %v3558, %v3700
  %v3723 = vmul.f32 %v3559, %v3700
  %v3724 = vmul.f32 %v3560, %v3705
  %v3725 = vmul.f32 %v3561, %v3705
  %v3726 = vmul.f32 %v3562, %v3705
  %v3727 = vmul.f32 %v3563, %v3705
  %v3728 = vmul.f32 %v3564, %v3705
  %v3729 = vmul.f32 %v3565, %v3705
  %v3730 = vmul.f32 %v3566, %v3710
  %v3731 = vmul.f32 %v3567, %v3710
  %v3732 = vmul.f32 %v3568, %v3710
  %v3733 = vmul.f32 %v3569, %v3710
  %v3734 = vmul.f32 %v3570, %v3710
  %v3735 = vmul.f32 %v3571, %v3710
  %3737 = vset.pattern.permute.xlu0 0
  %3738 = vperm.xlu0 %3737, %v3688
  %v3739 = vpop.permute.xlu0 %3738
  %3742 = vset.pattern.permute.xlu0 0
  %3743 = vperm.xlu0 %3742, %v3689
  %v3744 = vpop.permute.xlu0 %3743
  %3747 = vset.pattern.permute.xlu0 0
  %3748 = vperm.xlu0 %3747, %v3690
  %v3749 = vpop.permute.xlu0 %3748
  %3752 = vset.pattern.permute.xlu0 0
  %3753 = vperm.xlu0 %3752, %v3691
  %v3754 = vpop.permute.xlu0 %3753
  %v3756 = vmul.f32 %v3739, %v1448
  %v3757 = vmul.f32 %v3739, %v1452
  %v3758 = vmul.f32 %v3739, %v1456
  %v3759 = vmul.f32 %v3739, %v1460
  %v3760 = vmul.f32 %v3739, %v1464
  %v3761 = vmul.f32 %v3739, %v1468
  %v3762 = vmul.f32 %v3744, %v1448
  %v3763 = vmul.f32 %v3744, %v1452
  %v3764 = vmul.f32 %v3744, %v1456
  %v3765 = vmul.f32 %v3744, %v1460
  %v3766 = vmul.f32 %v3744, %v1464
  %v3767 = vmul.f32 %v3744, %v1468
  %v3768 = vmul.f32 %v3749, %v1448
  %v3769 = vmul.f32 %v3749, %v1452
  %v3770 = vmul.f32 %v3749, %v1456
  %v3771 = vmul.f32 %v3749, %v1460
  %v3772 = vmul.f32 %v3749, %v1464
  %v3773 = vmul.f32 %v3749, %v1468
  %v3774 = vmul.f32 %v3754, %v1448
  %v3775 = vmul.f32 %v3754, %v1452
  %v3776 = vmul.f32 %v3754, %v1456
  %v3777 = vmul.f32 %v3754, %v1460
  %v3778 = vmul.f32 %v3754, %v1464
  %v3779 = vmul.f32 %v3754, %v1468
  %v3780 = vadd.f32 %v3712, %v3756
  %v3781 = vadd.f32 %v3713, %v3757
  %v3782 = vadd.f32 %v3714, %v3758
  %v3783 = vadd.f32 %v3715, %v3759
  %v3784 = vadd.f32 %v3716, %v3760
  %v3785 = vadd.f32 %v3717, %v3761
  %v3786 = vadd.f32 %v3718, %v3762
  %v3787 = vadd.f32 %v3719, %v3763
  %v3788 = vadd.f32 %v3720, %v3764
  %v3789 = vadd.f32 %v3721, %v3765
  %v3790 = vadd.f32 %v3722, %v3766
  %v3791 = vadd.f32 %v3723, %v3767
  %v3792 = vadd.f32 %v3724, %v3768
  %v3793 = vadd.f32 %v3725, %v3769
  %v3794 = vadd.f32 %v3726, %v3770
  %v3795 = vadd.f32 %v3727, %v3771
  %v3796 = vadd.f32 %v3728, %v3772
  %v3797 = vadd.f32 %v3729, %v3773
  %v3798 = vadd.f32 %v3730, %v3774
  %v3799 = vadd.f32 %v3731, %v3775
  %v3800 = vadd.f32 %v3732, %v3776
  %v3801 = vadd.f32 %v3733, %v3777
  %v3802 = vadd.f32 %v3734, %v3778
  %v3803 = vadd.f32 %v3735, %v3779
  %3804 = vst [vmem:[%s10] sm:$0xff] %v3780
  %3805 = vst [vmem:[%s10 + $0x8] sm:$0xff] %v3781
  %3806 = vst [vmem:[%s10 + $0x10] sm:$0xff] %v3782
  %3807 = vst [vmem:[%s10 + $0x18] sm:$0xff] %v3783
  %3808 = vst [vmem:[%s10 + $0x20] sm:$0xff] %v3784
  %3809 = vst [vmem:[%s10 + $0x28] sm:$0xff] %v3785
  %3810 = vst [vmem:[%s10 + $0x30] sm:$0xff] %v3786
  %3811 = vst [vmem:[%s10 + $0x38] sm:$0xff] %v3787
  %3812 = vst [vmem:[%s10 + $0x40] sm:$0xff] %v3788
  %3813 = vst [vmem:[%s10 + $0x48] sm:$0xff] %v3789
  %3814 = vst [vmem:[%s10 + $0x50] sm:$0xff] %v3790
  %3815 = vst [vmem:[%s10 + $0x58] sm:$0xff] %v3791
  %3816 = vst [vmem:[%s10 + $0x60] sm:$0xff] %v3792
  %3817 = vst [vmem:[%s10 + $0x68] sm:$0xff] %v3793
  %3818 = vst [vmem:[%s10 + $0x70] sm:$0xff] %v3794
  %3819 = vst [vmem:[%s10 + $0x78] sm:$0xff] %v3795
  %3820 = vst [vmem:[%s10 + $0x80] sm:$0xff] %v3796
  %3821 = vst [vmem:[%s10 + $0x88] sm:$0xff] %v3797
  %3822 = vst [vmem:[%s10 + $0x90] sm:$0xff] %v3798
  %3823 = vst [vmem:[%s10 + $0x98] sm:$0xff] %v3799
  %3824 = vst [vmem:[%s10 + $0xa0] sm:$0xff] %v3800
  %3825 = vst [vmem:[%s10 + $0xa8] sm:$0xff] %v3801
  %3826 = vst [vmem:[%s10 + $0xb0] sm:$0xff] %v3802
  %3827 = vst [vmem:[%s10 + $0xb8] sm:$0xff] %v3803
  // Predicated region
  $region42: #{mynet_forward.1} parent=0 // pred_check
    _
  $region43: #{mynet_forward.1} parent=0 // pred_check_branch
    %3829 = sbr.rel (0) target = $region45
  $region44: #{mynet_forward.1} parent=0 // pred_region
    _
  $region45: #{mynet_forward.1} parent=0 // pred_fallthru
    _
  // Predicated region
  $region46: #{mynet_forward.1} parent=0 // pred_check
    _
  $region47: #{mynet_forward.1} parent=0 // pred_check_branch
    %3831 = sbr.rel (0) target = $region49
  $region48: #{mynet_forward.1} parent=0 // pred_region
    _
  $region49: #{mynet_forward.1} parent=0 // pred_fallthru
    _

</llo_original>
